<compile_context>
chip_gen: v7x
topology: tpu7x:2x2x1
jax: 0.10.0
libtpu: 0.0.40
codegen_flags: <defaults>
</compile_context>

<pallas_src>
import jax
import jax.numpy as jnp
from jax.experimental import pallas as pl
from jax.experimental.pallas import tpu as pltpu


# ---------------------------------------------------------------------------
# Pallas kernels
# ---------------------------------------------------------------------------
def _conv_relu_pool_kernel(x_ref, w_ref, b_ref, o_ref):
    """Fused conv-as-GEMM + 2x2 max-pool + bias + ReLU for one image.

    x_ref: (1, 4, HW, K) bf16 patches; quad q = dh*2+dw holds the patches of
           pool-window corner (dh, dw) for every pooled location (hq, wq),
           row-major.
    w_ref: (K, Cout) bf16 (grid-invariant, VMEM-resident).
    b_ref: (1, Cout) f32.
    o_ref: (1, HW, Cout) bf16 pooled activation.

    max-pool commutes with (+bias, ReLU) (both monotone increasing), so pool
    the raw GEMM outputs first, then run the epilogue on 1/4 of the elements.
    """
    w = w_ref[...]
    acc = jnp.dot(x_ref[0, 0], w, preferred_element_type=jnp.float32)
    for q in range(1, 4):                      # static unroll over pool corners
        acc = jnp.maximum(
            acc, jnp.dot(x_ref[0, q], w, preferred_element_type=jnp.float32))
    o_ref[0] = jnp.maximum(acc + b_ref[...], 0.0).astype(o_ref.dtype)


def _linear_kernel(x_ref, w_ref, b_ref, o_ref):
    acc = jnp.dot(x_ref[...], w_ref[...], preferred_element_type=jnp.float32)
    o_ref[...] = (acc + b_ref[...]).astype(o_ref.dtype)


# ---------------------------------------------------------------------------
# Wrappers
# ---------------------------------------------------------------------------
def conv_relu_pool(x, w2, b, kh, kw, pad):
    """Fused conv(k, stride 1, padding=pad) + ReLU + 2x2/2 max-pool.

    x: (N, H, W, Cin) bf16, w2: (kh*kw*Cin, Cout) bf16, b: (1, Cout) f32.
    Returns (N, Ho//2, Wo//2, Cout) bf16 (NHWC).
    """
    N, H, W, Cin = x.shape
    K, Cout = w2.shape
    Ho = H + 2 * pad - kh + 1
    Wo = W + 2 * pad - kw + 1
    Hq, Wq = Ho // 2, Wo // 2
    HW = Hq * Wq

    xp = jnp.pad(x, ((0, 0), (pad, pad), (pad, pad), (0, 0)))
    # Patches grouped pool-corner-major: quad q = dh*2+dw contains, for every
    # pooled location, the im2col patch of conv-output (2*hq+dh, 2*wq+dw).
    quads = []
    for dh in range(2):
        for dw in range(2):
            taps = []
            for i in range(kh):
                for j in range(kw):
                    taps.append(xp[:, dh + i::2, dw + j::2, :][:, :Hq, :Wq, :])
            quads.append(jnp.concatenate(taps, axis=-1))        # (N, Hq, Wq, K)
    patches = jnp.stack(quads, axis=1).reshape(N, 4, HW, K)     # (N, 4, HW, K)

    out = pl.pallas_call(
        _conv_relu_pool_kernel,
        out_shape=jax.ShapeDtypeStruct((N, HW, Cout), x.dtype),
        grid=(N,),
        in_specs=[
            pl.BlockSpec((1, 4, HW, K), lambda n: (n, 0, 0, 0)),
            pl.BlockSpec((K, Cout), lambda n: (0, 0)),   # weights stay resident
            pl.BlockSpec((1, Cout), lambda n: (0, 0)),
        ],
        out_specs=pl.BlockSpec((1, HW, Cout), lambda n: (n, 0, 0)),
        compiler_params=pltpu.CompilerParams(
            dimension_semantics=("parallel",)),
    )(patches, w2, b)
    return out.reshape(N, Hq, Wq, Cout)


def linear(x, w, b):
    """y = x @ w + b.  x: (M, K) bf16, w: (K, Nout) bf16, b: (1, Nout) f32."""
    M, K = x.shape
    _, Nout = w.shape
    tm = 256 if (M % 256 == 0) else M      # full block for small / odd batches
    return pl.pallas_call(
        _linear_kernel,
        out_shape=jax.ShapeDtypeStruct((M, Nout), jnp.float32),
        grid=(pl.cdiv(M, tm),),
        in_specs=[
            pl.BlockSpec((tm, K), lambda i: (i, 0)),
            pl.BlockSpec((K, Nout), lambda i: (0, 0)),
            pl.BlockSpec((1, Nout), lambda i: (0, 0)),
        ],
        out_specs=pl.BlockSpec((tm, Nout), lambda i: (i, 0)),
        compiler_params=pltpu.CompilerParams(
            dimension_semantics=("parallel",)),
    )(x, w, b)


# ---------------------------------------------------------------------------
# Deterministic parameter init (PyTorch-style uniform fan-in bounds),
# with all layout repacking / bf16 casts hoisted to init time.
# ---------------------------------------------------------------------------
def init_params(key):
    ks = jax.random.split(key, 8)

    def conv_init(kw_, kb_, cout, cin, k):
        fan_in = cin * k * k
        bound = 1.0 / jnp.sqrt(float(fan_in))
        w = jax.random.uniform(kw_, (cout, cin, k, k), jnp.float32, -bound, bound)
        b = jax.random.uniform(kb_, (cout,), jnp.float32, -bound, bound)
        # Pack to (kh*kw*Cin, Cout) matching patch column order (tap-major,
        # channel-minor); bf16 for the MXU.
        w2 = w.transpose(2, 3, 1, 0).reshape(k * k * cin, cout).astype(jnp.bfloat16)
        return w2, b.reshape(1, cout)

    w1, b1 = conv_init(ks[0], ks[1], 16, 1, 5)
    w2, b2 = conv_init(ks[2], ks[3], 32, 16, 3)
    w3, b3 = conv_init(ks[4], ks[5], 64, 32, 3)

    fan_in = 64 * 5 * 5
    bound = 1.0 / jnp.sqrt(float(fan_in))
    wf = jax.random.uniform(ks[6], (10, fan_in), jnp.float32, -bound, bound)
    bf = jax.random.uniform(ks[7], (10,), jnp.float32, -bound, bound)
    # PyTorch's .view(-1, 64*5*5) flattens (c, h, w); our activations are NHWC,
    # so permute the FC weight columns to (h, w, c) once and pre-transpose.
    wfT = (wf.reshape(10, 64, 5, 5).transpose(0, 2, 3, 1)
             .reshape(10, fan_in).T.astype(jnp.bfloat16))       # (1600, 10)
    return dict(w1=w1, b1=b1, w2=w2, b2=b2, w3=w3, b3=b3,
                wfT=wfT, bf=bf.reshape(1, 10))


# ---------------------------------------------------------------------------
# Forward pass (matches PyTorch Classifier.forward)
# ---------------------------------------------------------------------------
@jax.jit
def classifier_forward(params, x):
    # x: (N, 1, 28, 28) NCHW like the PyTorch module -> NHWC bf16 once.
    x = x.transpose(0, 2, 3, 1).astype(jnp.bfloat16)            # (N, 28, 28, 1)
    x = conv_relu_pool(x, params["w1"], params["b1"], 5, 5, 2)  # (N, 14, 14, 16)
    x = conv_relu_pool(x, params["w2"], params["b2"], 3, 3, 2)  # (N,  8,  8, 32)
    x = conv_relu_pool(x, params["w3"], params["b3"], 3, 3, 2)  # (N,  5,  5, 64)
    x = x.reshape(x.shape[0], -1)                               # (N, 1600) (h,w,c)
    return linear(x, params["wfT"], params["bf"])               # (N, 10) float32


if __name__ == "__main__":
    key = jax.random.PRNGKey(0)
    kp, kx = jax.random.split(key)
    params = init_params(kp)
    # Input spatial size must be 28x28 so the flattened feature is 64*5*5.
    x = jax.random.normal(kx, (2, 1, 28, 28), jnp.float32)
    out = classifier_forward(params, x)
    out = jax.block_until_ready(out)
    assert out.shape == (2, 10), out.shape
    print("KERNEL_OK")
</pallas_src>

<mosaic_0001>
module attributes {stable_mosaic.version = 11 : i64} {
  func.func @_conv_relu_pool_kernel(%arg0: i32, %arg1: memref<1x4x196x25xbf16, #tpu.memory_space<vmem>>, %arg2: memref<25x16xbf16, #tpu.memory_space<vmem>>, %arg3: memref<1x16xf32, #tpu.memory_space<vmem>>, %arg4: memref<1x196x16xbf16, #tpu.memory_space<vmem>>) attributes {dimension_semantics = [#tpu.dimension_semantics<parallel>], iteration_bounds = array<i64: 2>, scalar_prefetch = 0 : i64, scratch_operands = 0 : i64, tpu.core_type = #tpu.core_type<tc>, window_params = [{transform_indices = @transform_0, window_bounds = array<i64: 1, 4, 196, 25>}, {pipeline_mode = #tpu.pipeline_mode<synchronous>, transform_indices = @transform_1, window_bounds = array<i64: 25, 16>}, {pipeline_mode = #tpu.pipeline_mode<synchronous>, transform_indices = @transform_2, window_bounds = array<i64: 1, 16>}, {transform_indices = @transform_3, window_bounds = array<i64: 1, 196, 16>}]} {
    %c0 = arith.constant 0 : index
    %c0_0 = arith.constant 0 : index
    %0 = vector.load %arg2[%c0, %c0_0] : memref<25x16xbf16, #tpu.memory_space<vmem>>, vector<25x16xbf16>
    %c0_1 = arith.constant 0 : index
    %c0_2 = arith.constant 0 : index
    %c0_3 = arith.constant 0 : index
    %c0_4 = arith.constant 0 : index
    %1 = vector.load %arg1[%c0_1, %c0_2, %c0_3, %c0_4] : memref<1x4x196x25xbf16, #tpu.memory_space<vmem>>, vector<1x1x196x25xbf16>
    %2 = vector.shape_cast %1 : vector<1x1x196x25xbf16> to vector<196x25xbf16>
    %cst = arith.constant dense<0.000000e+00> : vector<196x16xf32>
    %3 = tpu.matmul %2, %0, %cst {dimension_numbers = #tpu.dot_dimension_numbers<[1], [0], [0], [1], [0, 0, 1, 1], [], []>} : vector<196x25xbf16>, vector<25x16xbf16>, vector<196x16xf32> -> vector<196x16xf32>
    %c0_5 = arith.constant 0 : index
    %c1 = arith.constant 1 : index
    %c0_6 = arith.constant 0 : index
    %c0_7 = arith.constant 0 : index
    %4 = vector.load %arg1[%c0_5, %c1, %c0_6, %c0_7] : memref<1x4x196x25xbf16, #tpu.memory_space<vmem>>, vector<1x1x196x25xbf16>
    %5 = vector.shape_cast %4 : vector<1x1x196x25xbf16> to vector<196x25xbf16>
    %cst_8 = arith.constant dense<0.000000e+00> : vector<196x16xf32>
    %6 = tpu.matmul %5, %0, %cst_8 {dimension_numbers = #tpu.dot_dimension_numbers<[1], [0], [0], [1], [0, 0, 1, 1], [], []>} : vector<196x25xbf16>, vector<25x16xbf16>, vector<196x16xf32> -> vector<196x16xf32>
    %7 = arith.maximumf %3, %6 : vector<196x16xf32>
    %c0_9 = arith.constant 0 : index
    %c2 = arith.constant 2 : index
    %c0_10 = arith.constant 0 : index
    %c0_11 = arith.constant 0 : index
    %8 = vector.load %arg1[%c0_9, %c2, %c0_10, %c0_11] : memref<1x4x196x25xbf16, #tpu.memory_space<vmem>>, vector<1x1x196x25xbf16>
    %9 = vector.shape_cast %8 : vector<1x1x196x25xbf16> to vector<196x25xbf16>
    %cst_12 = arith.constant dense<0.000000e+00> : vector<196x16xf32>
    %10 = tpu.matmul %9, %0, %cst_12 {dimension_numbers = #tpu.dot_dimension_numbers<[1], [0], [0], [1], [0, 0, 1, 1], [], []>} : vector<196x25xbf16>, vector<25x16xbf16>, vector<196x16xf32> -> vector<196x16xf32>
    %11 = arith.maximumf %7, %10 : vector<196x16xf32>
    %c0_13 = arith.constant 0 : index
    %c3 = arith.constant 3 : index
    %c0_14 = arith.constant 0 : index
    %c0_15 = arith.constant 0 : index
    %12 = vector.load %arg1[%c0_13, %c3, %c0_14, %c0_15] : memref<1x4x196x25xbf16, #tpu.memory_space<vmem>>, vector<1x1x196x25xbf16>
    %13 = vector.shape_cast %12 : vector<1x1x196x25xbf16> to vector<196x25xbf16>
    %cst_16 = arith.constant dense<0.000000e+00> : vector<196x16xf32>
    %14 = tpu.matmul %13, %0, %cst_16 {dimension_numbers = #tpu.dot_dimension_numbers<[1], [0], [0], [1], [0, 0, 1, 1], [], []>} : vector<196x25xbf16>, vector<25x16xbf16>, vector<196x16xf32> -> vector<196x16xf32>
    %15 = arith.maximumf %11, %14 : vector<196x16xf32>
    %c0_17 = arith.constant 0 : index
    %c0_18 = arith.constant 0 : index
    %16 = vector.load %arg3[%c0_17, %c0_18] : memref<1x16xf32, #tpu.memory_space<vmem>>, vector<1x16xf32>
    %17 = vector.broadcast %16 : vector<1x16xf32> to vector<196x16xf32>
    %18 = arith.addf %15, %17 : vector<196x16xf32>
    %cst_19 = arith.constant 0.000000e+00 : f32
    %19 = vector.broadcast %cst_19 : f32 to vector<196x16xf32>
    %20 = arith.maximumf %18, %19 : vector<196x16xf32>
    %21 = arith.truncf %20 : vector<196x16xf32> to vector<196x16xbf16>
    %c0_20 = arith.constant 0 : index
    %c0_21 = arith.constant 0 : index
    %c0_22 = arith.constant 0 : index
    %22 = vector.load %arg4[%c0_20, %c0_21, %c0_22] : memref<1x196x16xbf16, #tpu.memory_space<vmem>>, vector<1x196x16xbf16>
    %23 = vector.shape_cast %22 : vector<1x196x16xbf16> to vector<196x16xbf16>
    %24 = vector.shape_cast %21 : vector<196x16xbf16> to vector<1x196x16xbf16>
    tpu.vector_store %arg4[%c0_20, %c0_21, %c0_22], %24 {strides = array<i32>} : memref<1x196x16xbf16, #tpu.memory_space<vmem>>, vector<1x196x16xbf16>,
    return
  }
  func.func @transform_0(%arg0: i32) -> (i32, i32, i32, i32) {
    %c0_i32 = arith.constant 0 : i32
    %c0_i32_0 = arith.constant 0 : i32
    %c0_i32_1 = arith.constant 0 : i32
    %c0_i32_2 = arith.constant 0 : i32
    return %arg0, %c0_i32, %c0_i32_0, %c0_i32_1 : i32, i32, i32, i32
  }
  func.func @transform_1(%arg0: i32) -> (i32, i32) {
    %c0_i32 = arith.constant 0 : i32
    %c0_i32_0 = arith.constant 0 : i32
    %c0_i32_1 = arith.constant 0 : i32
    return %c0_i32, %c0_i32_0 : i32, i32
  }
  func.func @transform_2(%arg0: i32) -> (i32, i32) {
    %c0_i32 = arith.constant 0 : i32
    %c0_i32_0 = arith.constant 0 : i32
    %c0_i32_1 = arith.constant 0 : i32
    return %c0_i32, %c0_i32_0 : i32, i32
  }
  func.func @transform_3(%arg0: i32) -> (i32, i32, i32) {
    %c0_i32 = arith.constant 0 : i32
    %c0_i32_0 = arith.constant 0 : i32
    %c0_i32_1 = arith.constant 0 : i32
    return %arg0, %c0_i32, %c0_i32_0 : i32, i32, i32
  }
}

module attributes {stable_mosaic.version = 11 : i64} {
  func.func @_conv_relu_pool_kernel(%arg0: i32, %arg1: memref<1x4x64x144xbf16, #tpu.memory_space<vmem>>, %arg2: memref<144x32xbf16, #tpu.memory_space<vmem>>, %arg3: memref<1x32xf32, #tpu.memory_space<vmem>>, %arg4: memref<1x64x32xbf16, #tpu.memory_space<vmem>>) attributes {dimension_semantics = [#tpu.dimension_semantics<parallel>], iteration_bounds = array<i64: 2>, scalar_prefetch = 0 : i64, scratch_operands = 0 : i64, tpu.core_type = #tpu.core_type<tc>, window_params = [{transform_indices = @transform_0, window_bounds = array<i64: 1, 4, 64, 144>}, {pipeline_mode = #tpu.pipeline_mode<synchronous>, transform_indices = @transform_1, window_bounds = array<i64: 144, 32>}, {pipeline_mode = #tpu.pipeline_mode<synchronous>, transform_indices = @transform_2, window_bounds = array<i64: 1, 32>}, {transform_indices = @transform_3, window_bounds = array<i64: 1, 64, 32>}]} {
    %c0 = arith.constant 0 : index
    %c0_0 = arith.constant 0 : index
    %0 = vector.load %arg2[%c0, %c0_0] : memref<144x32xbf16, #tpu.memory_space<vmem>>, vector<144x32xbf16>
    %c0_1 = arith.constant 0 : index
    %c0_2 = arith.constant 0 : index
    %c0_3 = arith.constant 0 : index
    %c0_4 = arith.constant 0 : index
    %1 = vector.load %arg1[%c0_1, %c0_2, %c0_3, %c0_4] : memref<1x4x64x144xbf16, #tpu.memory_space<vmem>>, vector<1x1x64x144xbf16>
    %2 = vector.shape_cast %1 : vector<1x1x64x144xbf16> to vector<64x144xbf16>
    %cst = arith.constant dense<0.000000e+00> : vector<64x32xf32>
    %3 = tpu.matmul %2, %0, %cst {dimension_numbers = #tpu.dot_dimension_numbers<[1], [0], [0], [1], [0, 0, 1, 1], [], []>} : vector<64x144xbf16>, vector<144x32xbf16>, vector<64x32xf32> -> vector<64x32xf32>
    %c0_5 = arith.constant 0 : index
    %c1 = arith.constant 1 : index
    %c0_6 = arith.constant 0 : index
    %c0_7 = arith.constant 0 : index
    %4 = vector.load %arg1[%c0_5, %c1, %c0_6, %c0_7] : memref<1x4x64x144xbf16, #tpu.memory_space<vmem>>, vector<1x1x64x144xbf16>
    %5 = vector.shape_cast %4 : vector<1x1x64x144xbf16> to vector<64x144xbf16>
    %cst_8 = arith.constant dense<0.000000e+00> : vector<64x32xf32>
    %6 = tpu.matmul %5, %0, %cst_8 {dimension_numbers = #tpu.dot_dimension_numbers<[1], [0], [0], [1], [0, 0, 1, 1], [], []>} : vector<64x144xbf16>, vector<144x32xbf16>, vector<64x32xf32> -> vector<64x32xf32>
    %7 = arith.maximumf %3, %6 : vector<64x32xf32>
    %c0_9 = arith.constant 0 : index
    %c2 = arith.constant 2 : index
    %c0_10 = arith.constant 0 : index
    %c0_11 = arith.constant 0 : index
    %8 = vector.load %arg1[%c0_9, %c2, %c0_10, %c0_11] : memref<1x4x64x144xbf16, #tpu.memory_space<vmem>>, vector<1x1x64x144xbf16>
    %9 = vector.shape_cast %8 : vector<1x1x64x144xbf16> to vector<64x144xbf16>
    %cst_12 = arith.constant dense<0.000000e+00> : vector<64x32xf32>
    %10 = tpu.matmul %9, %0, %cst_12 {dimension_numbers = #tpu.dot_dimension_numbers<[1], [0], [0], [1], [0, 0, 1, 1], [], []>} : vector<64x144xbf16>, vector<144x32xbf16>, vector<64x32xf32> -> vector<64x32xf32>
    %11 = arith.maximumf %7, %10 : vector<64x32xf32>
    %c0_13 = arith.constant 0 : index
    %c3 = arith.constant 3 : index
    %c0_14 = arith.constant 0 : index
    %c0_15 = arith.constant 0 : index
    %12 = vector.load %arg1[%c0_13, %c3, %c0_14, %c0_15] : memref<1x4x64x144xbf16, #tpu.memory_space<vmem>>, vector<1x1x64x144xbf16>
    %13 = vector.shape_cast %12 : vector<1x1x64x144xbf16> to vector<64x144xbf16>
    %cst_16 = arith.constant dense<0.000000e+00> : vector<64x32xf32>
    %14 = tpu.matmul %13, %0, %cst_16 {dimension_numbers = #tpu.dot_dimension_numbers<[1], [0], [0], [1], [0, 0, 1, 1], [], []>} : vector<64x144xbf16>, vector<144x32xbf16>, vector<64x32xf32> -> vector<64x32xf32>
    %15 = arith.maximumf %11, %14 : vector<64x32xf32>
    %c0_17 = arith.constant 0 : index
    %c0_18 = arith.constant 0 : index
    %16 = vector.load %arg3[%c0_17, %c0_18] : memref<1x32xf32, #tpu.memory_space<vmem>>, vector<1x32xf32>
    %17 = vector.broadcast %16 : vector<1x32xf32> to vector<64x32xf32>
    %18 = arith.addf %15, %17 : vector<64x32xf32>
    %cst_19 = arith.constant 0.000000e+00 : f32
    %19 = vector.broadcast %cst_19 : f32 to vector<64x32xf32>
    %20 = arith.maximumf %18, %19 : vector<64x32xf32>
    %21 = arith.truncf %20 : vector<64x32xf32> to vector<64x32xbf16>
    %c0_20 = arith.constant 0 : index
    %c0_21 = arith.constant 0 : index
    %c0_22 = arith.constant 0 : index
    %22 = vector.load %arg4[%c0_20, %c0_21, %c0_22] : memref<1x64x32xbf16, #tpu.memory_space<vmem>>, vector<1x64x32xbf16>
    %23 = vector.shape_cast %22 : vector<1x64x32xbf16> to vector<64x32xbf16>
    %24 = vector.shape_cast %21 : vector<64x32xbf16> to vector<1x64x32xbf16>
    tpu.vector_store %arg4[%c0_20, %c0_21, %c0_22], %24 {strides = array<i32>} : memref<1x64x32xbf16, #tpu.memory_space<vmem>>, vector<1x64x32xbf16>,
    return
  }
  func.func @transform_0(%arg0: i32) -> (i32, i32, i32, i32) {
    %c0_i32 = arith.constant 0 : i32
    %c0_i32_0 = arith.constant 0 : i32
    %c0_i32_1 = arith.constant 0 : i32
    %c0_i32_2 = arith.constant 0 : i32
    return %arg0, %c0_i32, %c0_i32_0, %c0_i32_1 : i32, i32, i32, i32
  }
  func.func @transform_1(%arg0: i32) -> (i32, i32) {
    %c0_i32 = arith.constant 0 : i32
    %c0_i32_0 = arith.constant 0 : i32
    %c0_i32_1 = arith.constant 0 : i32
    return %c0_i32, %c0_i32_0 : i32, i32
  }
  func.func @transform_2(%arg0: i32) -> (i32, i32) {
    %c0_i32 = arith.constant 0 : i32
    %c0_i32_0 = arith.constant 0 : i32
    %c0_i32_1 = arith.constant 0 : i32
    return %c0_i32, %c0_i32_0 : i32, i32
  }
  func.func @transform_3(%arg0: i32) -> (i32, i32, i32) {
    %c0_i32 = arith.constant 0 : i32
    %c0_i32_0 = arith.constant 0 : i32
    %c0_i32_1 = arith.constant 0 : i32
    return %arg0, %c0_i32, %c0_i32_0 : i32, i32, i32
  }
}

module attributes {stable_mosaic.version = 11 : i64} {
  func.func @_conv_relu_pool_kernel(%arg0: i32, %arg1: memref<1x4x25x288xbf16, #tpu.memory_space<vmem>>, %arg2: memref<288x64xbf16, #tpu.memory_space<vmem>>, %arg3: memref<1x64xf32, #tpu.memory_space<vmem>>, %arg4: memref<1x25x64xbf16, #tpu.memory_space<vmem>>) attributes {dimension_semantics = [#tpu.dimension_semantics<parallel>], iteration_bounds = array<i64: 2>, scalar_prefetch = 0 : i64, scratch_operands = 0 : i64, tpu.core_type = #tpu.core_type<tc>, window_params = [{transform_indices = @transform_0, window_bounds = array<i64: 1, 4, 25, 288>}, {pipeline_mode = #tpu.pipeline_mode<synchronous>, transform_indices = @transform_1, window_bounds = array<i64: 288, 64>}, {pipeline_mode = #tpu.pipeline_mode<synchronous>, transform_indices = @transform_2, window_bounds = array<i64: 1, 64>}, {transform_indices = @transform_3, window_bounds = array<i64: 1, 25, 64>}]} {
    %c0 = arith.constant 0 : index
    %c0_0 = arith.constant 0 : index
    %0 = vector.load %arg2[%c0, %c0_0] : memref<288x64xbf16, #tpu.memory_space<vmem>>, vector<288x64xbf16>
    %c0_1 = arith.constant 0 : index
    %c0_2 = arith.constant 0 : index
    %c0_3 = arith.constant 0 : index
    %c0_4 = arith.constant 0 : index
    %1 = vector.load %arg1[%c0_1, %c0_2, %c0_3, %c0_4] : memref<1x4x25x288xbf16, #tpu.memory_space<vmem>>, vector<1x1x25x288xbf16>
    %2 = vector.shape_cast %1 : vector<1x1x25x288xbf16> to vector<25x288xbf16>
    %cst = arith.constant dense<0.000000e+00> : vector<25x64xf32>
    %3 = tpu.matmul %2, %0, %cst {dimension_numbers = #tpu.dot_dimension_numbers<[1], [0], [0], [1], [0, 0, 1, 1], [], []>} : vector<25x288xbf16>, vector<288x64xbf16>, vector<25x64xf32> -> vector<25x64xf32>
    %c0_5 = arith.constant 0 : index
    %c1 = arith.constant 1 : index
    %c0_6 = arith.constant 0 : index
    %c0_7 = arith.constant 0 : index
    %4 = vector.load %arg1[%c0_5, %c1, %c0_6, %c0_7] : memref<1x4x25x288xbf16, #tpu.memory_space<vmem>>, vector<1x1x25x288xbf16>
    %5 = vector.shape_cast %4 : vector<1x1x25x288xbf16> to vector<25x288xbf16>
    %cst_8 = arith.constant dense<0.000000e+00> : vector<25x64xf32>
    %6 = tpu.matmul %5, %0, %cst_8 {dimension_numbers = #tpu.dot_dimension_numbers<[1], [0], [0], [1], [0, 0, 1, 1], [], []>} : vector<25x288xbf16>, vector<288x64xbf16>, vector<25x64xf32> -> vector<25x64xf32>
    %7 = arith.maximumf %3, %6 : vector<25x64xf32>
    %c0_9 = arith.constant 0 : index
    %c2 = arith.constant 2 : index
    %c0_10 = arith.constant 0 : index
    %c0_11 = arith.constant 0 : index
    %8 = vector.load %arg1[%c0_9, %c2, %c0_10, %c0_11] : memref<1x4x25x288xbf16, #tpu.memory_space<vmem>>, vector<1x1x25x288xbf16>
    %9 = vector.shape_cast %8 : vector<1x1x25x288xbf16> to vector<25x288xbf16>
    %cst_12 = arith.constant dense<0.000000e+00> : vector<25x64xf32>
    %10 = tpu.matmul %9, %0, %cst_12 {dimension_numbers = #tpu.dot_dimension_numbers<[1], [0], [0], [1], [0, 0, 1, 1], [], []>} : vector<25x288xbf16>, vector<288x64xbf16>, vector<25x64xf32> -> vector<25x64xf32>
    %11 = arith.maximumf %7, %10 : vector<25x64xf32>
    %c0_13 = arith.constant 0 : index
    %c3 = arith.constant 3 : index
    %c0_14 = arith.constant 0 : index
    %c0_15 = arith.constant 0 : index
    %12 = vector.load %arg1[%c0_13, %c3, %c0_14, %c0_15] : memref<1x4x25x288xbf16, #tpu.memory_space<vmem>>, vector<1x1x25x288xbf16>
    %13 = vector.shape_cast %12 : vector<1x1x25x288xbf16> to vector<25x288xbf16>
    %cst_16 = arith.constant dense<0.000000e+00> : vector<25x64xf32>
    %14 = tpu.matmul %13, %0, %cst_16 {dimension_numbers = #tpu.dot_dimension_numbers<[1], [0], [0], [1], [0, 0, 1, 1], [], []>} : vector<25x288xbf16>, vector<288x64xbf16>, vector<25x64xf32> -> vector<25x64xf32>
    %15 = arith.maximumf %11, %14 : vector<25x64xf32>
    %c0_17 = arith.constant 0 : index
    %c0_18 = arith.constant 0 : index
    %16 = vector.load %arg3[%c0_17, %c0_18] : memref<1x64xf32, #tpu.memory_space<vmem>>, vector<1x64xf32>
    %17 = vector.broadcast %16 : vector<1x64xf32> to vector<25x64xf32>
    %18 = arith.addf %15, %17 : vector<25x64xf32>
    %cst_19 = arith.constant 0.000000e+00 : f32
    %19 = vector.broadcast %cst_19 : f32 to vector<25x64xf32>
    %20 = arith.maximumf %18, %19 : vector<25x64xf32>
    %21 = arith.truncf %20 : vector<25x64xf32> to vector<25x64xbf16>
    %c0_20 = arith.constant 0 : index
    %c0_21 = arith.constant 0 : index
    %c0_22 = arith.constant 0 : index
    %22 = vector.load %arg4[%c0_20, %c0_21, %c0_22] : memref<1x25x64xbf16, #tpu.memory_space<vmem>>, vector<1x25x64xbf16>
    %23 = vector.shape_cast %22 : vector<1x25x64xbf16> to vector<25x64xbf16>
    %24 = vector.shape_cast %21 : vector<25x64xbf16> to vector<1x25x64xbf16>
    tpu.vector_store %arg4[%c0_20, %c0_21, %c0_22], %24 {strides = array<i32>} : memref<1x25x64xbf16, #tpu.memory_space<vmem>>, vector<1x25x64xbf16>,
    return
  }
  func.func @transform_0(%arg0: i32) -> (i32, i32, i32, i32) {
    %c0_i32 = arith.constant 0 : i32
    %c0_i32_0 = arith.constant 0 : i32
    %c0_i32_1 = arith.constant 0 : i32
    %c0_i32_2 = arith.constant 0 : i32
    return %arg0, %c0_i32, %c0_i32_0, %c0_i32_1 : i32, i32, i32, i32
  }
  func.func @transform_1(%arg0: i32) -> (i32, i32) {
    %c0_i32 = arith.constant 0 : i32
    %c0_i32_0 = arith.constant 0 : i32
    %c0_i32_1 = arith.constant 0 : i32
    return %c0_i32, %c0_i32_0 : i32, i32
  }
  func.func @transform_2(%arg0: i32) -> (i32, i32) {
    %c0_i32 = arith.constant 0 : i32
    %c0_i32_0 = arith.constant 0 : i32
    %c0_i32_1 = arith.constant 0 : i32
    return %c0_i32, %c0_i32_0 : i32, i32
  }
  func.func @transform_3(%arg0: i32) -> (i32, i32, i32) {
    %c0_i32 = arith.constant 0 : i32
    %c0_i32_0 = arith.constant 0 : i32
    %c0_i32_1 = arith.constant 0 : i32
    return %arg0, %c0_i32, %c0_i32_0 : i32, i32, i32
  }
}

module attributes {stable_mosaic.version = 11 : i64} {
  func.func @_linear_kernel(%arg0: i32, %arg1: memref<2x1600xbf16, #tpu.memory_space<vmem>>, %arg2: memref<1600x10xbf16, #tpu.memory_space<vmem>>, %arg3: memref<1x10xf32, #tpu.memory_space<vmem>>, %arg4: memref<2x10xf32, #tpu.memory_space<vmem>>) attributes {dimension_semantics = [#tpu.dimension_semantics<parallel>], iteration_bounds = array<i64: 1>, scalar_prefetch = 0 : i64, scratch_operands = 0 : i64, tpu.core_type = #tpu.core_type<tc>, window_params = [{transform_indices = @transform_0, window_bounds = array<i64: 2, 1600>}, {pipeline_mode = #tpu.pipeline_mode<synchronous>, transform_indices = @transform_1, window_bounds = array<i64: 1600, 10>}, {pipeline_mode = #tpu.pipeline_mode<synchronous>, transform_indices = @transform_2, window_bounds = array<i64: 1, 10>}, {transform_indices = @transform_3, window_bounds = array<i64: 2, 10>}]} {
    %c0 = arith.constant 0 : index
    %c0_0 = arith.constant 0 : index
    %0 = vector.load %arg1[%c0, %c0_0] : memref<2x1600xbf16, #tpu.memory_space<vmem>>, vector<2x1600xbf16>
    %c0_1 = arith.constant 0 : index
    %c0_2 = arith.constant 0 : index
    %1 = vector.load %arg2[%c0_1, %c0_2] : memref<1600x10xbf16, #tpu.memory_space<vmem>>, vector<1600x10xbf16>
    %cst = arith.constant dense<0.000000e+00> : vector<2x10xf32>
    %2 = tpu.matmul %0, %1, %cst {dimension_numbers = #tpu.dot_dimension_numbers<[1], [0], [0], [1], [0, 0, 1, 1], [], []>} : vector<2x1600xbf16>, vector<1600x10xbf16>, vector<2x10xf32> -> vector<2x10xf32>
    %c0_3 = arith.constant 0 : index
    %c0_4 = arith.constant 0 : index
    %3 = vector.load %arg3[%c0_3, %c0_4] : memref<1x10xf32, #tpu.memory_space<vmem>>, vector<1x10xf32>
    %4 = vector.broadcast %3 : vector<1x10xf32> to vector<2x10xf32>
    %5 = arith.addf %2, %4 : vector<2x10xf32>
    %c0_5 = arith.constant 0 : index
    %c0_6 = arith.constant 0 : index
    %6 = vector.load %arg4[%c0_5, %c0_6] : memref<2x10xf32, #tpu.memory_space<vmem>>, vector<2x10xf32>
    tpu.vector_store %arg4[%c0_5, %c0_6], %5 {strides = array<i32>} : memref<2x10xf32, #tpu.memory_space<vmem>>, vector<2x10xf32>,
    return
  }
  func.func @transform_0(%arg0: i32) -> (i32, i32) {
    %c0_i32 = arith.constant 0 : i32
    %c0_i32_0 = arith.constant 0 : i32
    return %arg0, %c0_i32 : i32, i32
  }
  func.func @transform_1(%arg0: i32) -> (i32, i32) {
    %c0_i32 = arith.constant 0 : i32
    %c0_i32_0 = arith.constant 0 : i32
    %c0_i32_1 = arith.constant 0 : i32
    return %c0_i32, %c0_i32_0 : i32, i32
  }
  func.func @transform_2(%arg0: i32) -> (i32, i32) {
    %c0_i32 = arith.constant 0 : i32
    %c0_i32_0 = arith.constant 0 : i32
    %c0_i32_1 = arith.constant 0 : i32
    return %c0_i32, %c0_i32_0 : i32, i32
  }
  func.func @transform_3(%arg0: i32) -> (i32, i32) {
    %c0_i32 = arith.constant 0 : i32
    %c0_i32_0 = arith.constant 0 : i32
    return %arg0, %c0_i32 : i32, i32
  }
}

</mosaic_0001>

<llo_original>
// kernel: classifier_forward.4
$region0: #{classifier_forward.4}
  #allocation0 [shape = 'u32[]', space=smem, size = 0x4, offset = 0x4, fixed_abs, tag = 'smem constant byte address 0x4 - core index']
  #allocation1 [shape = 'u32[144,128]{1,0:T(1,128)}', space=vmem, size = 0x12000, scoped, tag = 'internal scratch']
  %s0 = inlined_call_operand.vmem [shape: bf16[2,4,196,25], index: 0, kind: input, shape index: {}]
  %s1 = inlined_call_operand.vmem [shape: bf16[25,16], index: 1, kind: input, shape index: {}]
  %s2 = inlined_call_operand.vmem [shape: f32[1,16], index: 2, kind: input, shape index: {}]
  %s3 = inlined_call_operand.vmem [shape: bf16[2,196,16], index: 3, kind: output, shape index: {}]
  %s4 = sld [smem:[#allocation0]]
  $region45: #{classifier_forward.4} parent=0
    _
  %s6 = ssub.s32 1, %s4
  %s7 = scalar_select 0, %s6, %s4
  loop: start=0, step=1, limit=4
  $region2: #{classifier_forward.4} parent=0 // loop_pre_header
    _
  $region3: #{classifier_forward.4} parent=0 // loop_header
    %s9 = sphi 0, %s13
    %p10 = scmp.ge.s32.totalorder %s9, 4
    %s19 = sphi 0, %s21
    %s22 = sphi 0, %s19
    %s23 = sphi 0, %s22
    %s39 = sphi 0, %s23
    %s43 = sphi 0, %s43
    %s45 = sphi 0, %s43
    %s46 = sphi 0, %s45
    %s60 = sphi 0, %s46
    %s64 = sphi 0, %s64
    %s66 = sphi 0, %s64
    %s67 = sphi 0, %s66
    %s81 = sphi 0, %s67
    %s87 = sphi 0, %s89
    %s90 = sphi 0, %s87
    %s91 = sphi 0, %s90
    %s107 = sphi 0, %s91
  $region4: #{classifier_forward.4} parent=0 // loop_header_branch
    %12 = sbr.rel (%p10) target = $region8
  $region5: #{classifier_forward.4} parent=0 // loop_body
    %s14 = ssub.s32 %s9, 1
    %s15 = ssub.s32 %s9, 2
    %s16 = sadd.s32 %s9, 1
    %s17 = ssub.s32 %s9, %s16
    %p18 = scmp.eq.s32.totalorder %s17, 0
    %s20 = sadd.s32 %s19, 1
    %s21 = scalar_select %p18, %s19, %s20
    %p24 = pneg %p18
    %p25 = scmp.eq.s32.totalorder %s9, 1
    %p26 = por %p24, %p25
    %p27 = scmp.ne.s32.totalorder %s19, %s22
    %p28 = scmp.eq.s32.totalorder %s9, 0
    %p29 = por %p27, %p28
    %p30 = scmp.ne.s32.totalorder %s19, %s22
    %p31 = scmp.eq.s32.totalorder %s14, 1
    %p32 = por %p30, %p31
    %p33 = scmp.ne.s32.totalorder %s22, %s23
    %p34 = scmp.eq.s32.totalorder %s14, 0
    %p35 = por %p33, %p34
    %p36 = scmp.ne.s32.totalorder %s22, %s23
    %p37 = scmp.eq.s32.totalorder %s15, 1
    %p38 = por %p36, %p37
    %p40 = scmp.ne.s32.totalorder %s23, %s39
    %p41 = scmp.eq.s32.totalorder %s15, 0
    %p42 = por %p40, %p41
    %s44 = sadd.s32 %s43, 1
    %p47 = scmp.eq.s32.totalorder %s9, 1
    %p48 = scmp.ne.s32.totalorder %s43, %s45
    %p49 = scmp.eq.s32.totalorder %s9, 0
    %p50 = por %p48, %p49
    %p51 = scmp.ne.s32.totalorder %s43, %s45
    %p52 = scmp.eq.s32.totalorder %s14, 1
    %p53 = por %p51, %p52
    %p54 = scmp.ne.s32.totalorder %s45, %s46
    %p55 = scmp.eq.s32.totalorder %s14, 0
    %p56 = por %p54, %p55
    %p57 = scmp.ne.s32.totalorder %s45, %s46
    %p58 = scmp.eq.s32.totalorder %s15, 1
    %p59 = por %p57, %p58
    %p61 = scmp.ne.s32.totalorder %s46, %s60
    %p62 = scmp.eq.s32.totalorder %s15, 0
    %p63 = por %p61, %p62
    %s65 = sadd.s32 %s64, 1
    %p68 = scmp.eq.s32.totalorder %s9, 1
    %p69 = scmp.ne.s32.totalorder %s64, %s66
    %p70 = scmp.eq.s32.totalorder %s9, 0
    %p71 = por %p69, %p70
    %p72 = scmp.ne.s32.totalorder %s64, %s66
    %p73 = scmp.eq.s32.totalorder %s14, 1
    %p74 = por %p72, %p73
    %p75 = scmp.ne.s32.totalorder %s66, %s67
    %p76 = scmp.eq.s32.totalorder %s14, 0
    %p77 = por %p75, %p76
    %p78 = scmp.ne.s32.totalorder %s66, %s67
    %p79 = scmp.eq.s32.totalorder %s15, 1
    %p80 = por %p78, %p79
    %p82 = scmp.ne.s32.totalorder %s67, %s81
    %p83 = scmp.eq.s32.totalorder %s15, 0
    %p84 = por %p82, %p83
    %s85 = ssub.s32 %s9, %s16
    %p86 = scmp.eq.s32.totalorder %s85, 0
    %s88 = sadd.s32 %s87, 1
    %s89 = scalar_select %p86, %s87, %s88
    %p92 = pneg %p86
    %p93 = scmp.eq.s32.totalorder %s9, 1
    %p94 = por %p92, %p93
    %p95 = scmp.ne.s32.totalorder %s87, %s90
    %p96 = scmp.eq.s32.totalorder %s9, 0
    %p97 = por %p95, %p96
    %p98 = scmp.ne.s32.totalorder %s87, %s90
    %p99 = scmp.eq.s32.totalorder %s14, 1
    %p100 = por %p98, %p99
    %p101 = scmp.ne.s32.totalorder %s90, %s91
    %p102 = scmp.eq.s32.totalorder %s14, 0
    %p103 = por %p101, %p102
    %p104 = scmp.ne.s32.totalorder %s90, %s91
    %p105 = scmp.eq.s32.totalorder %s15, 1
    %p106 = por %p104, %p105
    %p108 = scmp.ne.s32.totalorder %s91, %s107
    %p109 = scmp.eq.s32.totalorder %s15, 0
    %p110 = por %p108, %p109
    %p111 = scmp.le.s32.totalorder 1, %s9
    %p112 = scmp.lt.s32.totalorder %s9, 3
    %p113 = pnand %p111, %p112
    %p114 = pneg %p113
    // Predicated region
    $region9: #{classifier_forward.4} parent=5 // pred_check
      _
    $region10: #{classifier_forward.4} parent=5 // pred_check_branch
      %116 = sbr.rel (%p113) target = $region12
    $region11: #{classifier_forward.4} parent=5 // pred_region
      %s117 = ssub.s32 %s9, 1
      // Predicated region
      $region13: #{classifier_forward.4} parent=11 // pred_check
        %p118 = pneg %p56
      $region14: #{classifier_forward.4} parent=11 // pred_check_branch
        %120 = sbr.rel (%p118) target = $region16
      $region15: #{classifier_forward.4} parent=11 // pred_region
        _
      $region16: #{classifier_forward.4} parent=11 // pred_fallthru
        _
      // Predicated region
      $region17: #{classifier_forward.4} parent=11 // pred_check
        %p121 = pneg %p77
      $region18: #{classifier_forward.4} parent=11 // pred_check_branch
        %123 = sbr.rel (%p121) target = $region20
      $region19: #{classifier_forward.4} parent=11 // pred_region
        _
      $region20: #{classifier_forward.4} parent=11 // pred_fallthru
        _
    $region12: #{classifier_forward.4} parent=5 // pred_fallthru
      _
    %p124 = scmp.lt.s32.totalorder %s9, 2
    // Predicated region
    $region21: #{classifier_forward.4} parent=5 // pred_check
      %p125 = pneg %p124
    $region22: #{classifier_forward.4} parent=5 // pred_check_branch
      %127 = sbr.rel (%p125) target = $region24
    $region23: #{classifier_forward.4} parent=5 // pred_region
      // Predicated region
      $region25: #{classifier_forward.4} parent=23 // pred_check
        %p128 = pneg %p29
      $region26: #{classifier_forward.4} parent=23 // pred_check_branch
        %130 = sbr.rel (%p128) target = $region28
      $region27: #{classifier_forward.4} parent=23 // pred_region
        %p131 = scmp.lt.s32.totalorder %s9, 1
        %s132 = scalar_select %p131, %s9, 1
        %s133 = smul.addr %s132, 100
        %s134 = smul.addr %s133, 4
        %s135 = scalar_lea.vmem %s0, %s134
      $region28: #{classifier_forward.4} parent=23 // pred_fallthru
        _
    $region24: #{classifier_forward.4} parent=5 // pred_fallthru
      _
    %p136 = scmp.le.s32.totalorder 1, %s9
    %p137 = scmp.lt.s32.totalorder %s9, 3
    %p138 = pnand %p136, %p137
    %p139 = pneg %p138
    // Predicated region
    $region29: #{classifier_forward.4} parent=5 // pred_check
      _
    $region30: #{classifier_forward.4} parent=5 // pred_check_branch
      %141 = sbr.rel (%p138) target = $region32
    $region31: #{classifier_forward.4} parent=5 // pred_region
      %s142 = ssub.s32 %s9, 1
      %p143 = scmp.lt.s32.totalorder %s14, 1
      %s144 = scalar_select %p143, %s14, 1
      %s145 = smul.addr %s144, 100
      %s146 = smul.addr %s145, 4
      %s147 = scalar_lea.vmem %s0, %s146
      %p148 = pneg %p35
      %p149 = pneg %p32
      %p150 = pneg %p56
      %p151 = pneg %p53
      %p152 = pneg %p77
      %p153 = pneg %p74
      %p154 = pneg %p103
      %p155 = pneg %p100
      %p156 = scmp.lt.s32.totalorder %s14, 1
      %s157 = scalar_select %p156, %s14, 1
      %s158 = smul.addr %s157, 25
      %s159 = smul.addr %s158, 4
      %s160 = scalar_lea.vmem %s3, %s159
      %p161 = scmp.lt.s32.totalorder %s14, 1
      %s162 = scalar_select %p161, %s14, 1
      %s163 = smul.addr %s162, 100
      %s164 = smul.addr %s163, 4
      %s165 = scalar_lea.vmem %s0, %s164
      %p166 = scmp.lt.s32.totalorder %s14, 1
      %s167 = scalar_select %p166, %s14, 1
      %s168 = smul.addr %s167, 25
      %s169 = smul.addr %s168, 4
      %s170 = scalar_lea.vmem %s3, %s169
      %v172 = vld [vmem:[%s1] sm:$0xf]
      %v173 = vld [vmem:[%s1 + $0x4] sm:$0xf]
      %v174 = vld [vmem:[%s1 + $0x8] sm:$0xf]
      %v175 = vld [vmem:[%s1 + $0xc] sm:$0x1]
      %v176 = vld [vmem:[%s165] sm:$0xf]
      %v177 = vld [vmem:[%s165 + $0x4] sm:$0xf]
      %v178 = vld [vmem:[%s165 + $0x8] sm:$0xf]
      %v179 = vld [vmem:[%s165 + $0xc] sm:$0xf]
      %v180 = vld [vmem:[%s165 + $0x10] sm:$0xf]
      %v181 = vld [vmem:[%s165 + $0x14] sm:$0xf]
      %v182 = vld [vmem:[%s165 + $0x18] sm:$0xf]
      %v183 = vld [vmem:[%s165 + $0x1c] sm:$0xf]
      %v184 = vld [vmem:[%s165 + $0x20] sm:$0xf]
      %v185 = vld [vmem:[%s165 + $0x24] sm:$0xf]
      %v186 = vld [vmem:[%s165 + $0x28] sm:$0xf]
      %v187 = vld [vmem:[%s165 + $0x2c] sm:$0xf]
      %v188 = vld [vmem:[%s165 + $0x30] sm:$0xf]
      %v189 = vld [vmem:[%s165 + $0x34] sm:$0xf]
      %v190 = vld [vmem:[%s165 + $0x38] sm:$0xf]
      %v191 = vld [vmem:[%s165 + $0x3c] sm:$0xf]
      %v192 = vld [vmem:[%s165 + $0x40] sm:$0xf]
      %v193 = vld [vmem:[%s165 + $0x44] sm:$0xf]
      %v194 = vld [vmem:[%s165 + $0x48] sm:$0xf]
      %v195 = vld [vmem:[%s165 + $0x4c] sm:$0xf]
      %v196 = vld [vmem:[%s165 + $0x50] sm:$0xf]
      %v197 = vld [vmem:[%s165 + $0x54] sm:$0xf]
      %v198 = vld [vmem:[%s165 + $0x58] sm:$0xf]
      %v199 = vld [vmem:[%s165 + $0x5c] sm:$0xf]
      %v200 = vld [vmem:[%s165 + $0x60] sm:$0x3]
      %v226 = vunpack.c.l.b16 %v176
      %v227 = vunpack.c.l.b16 %v177
      %v228 = vunpack.c.l.b16 %v178
      %v229 = vunpack.c.l.b16 %v179
      %v230 = vunpack.c.l.b16 %v180
      %v231 = vunpack.c.l.b16 %v181
      %v232 = vunpack.c.l.b16 %v182
      %v233 = vunpack.c.l.b16 %v183
      %v234 = vunpack.c.l.b16 %v184
      %v235 = vunpack.c.l.b16 %v185
      %v236 = vunpack.c.l.b16 %v186
      %v237 = vunpack.c.l.b16 %v187
      %v238 = vunpack.c.l.b16 %v188
      %v239 = vunpack.c.l.b16 %v189
      %v240 = vunpack.c.l.b16 %v190
      %v241 = vunpack.c.l.b16 %v191
      %v242 = vunpack.c.l.b16 %v192
      %v243 = vunpack.c.l.b16 %v193
      %v244 = vunpack.c.l.b16 %v194
      %v245 = vunpack.c.l.b16 %v195
      %v246 = vunpack.c.l.b16 %v196
      %v247 = vunpack.c.l.b16 %v197
      %v248 = vunpack.c.l.b16 %v198
      %v249 = vunpack.c.l.b16 %v199
      %v250 = vunpack.c.l.b16 %v200
      %v251 = vpack.c.b16 %v227, %v226
      %v252 = vpack.c.b16 %v229, %v228
      %v253 = vpack.c.b16 %v231, %v230
      %v254 = vpack.c.b16 %v233, %v232
      %v255 = vpack.c.b16 %v235, %v234
      %v256 = vpack.c.b16 %v237, %v236
      %v257 = vpack.c.b16 %v239, %v238
      %v258 = vpack.c.b16 %v241, %v240
      %v259 = vpack.c.b16 %v243, %v242
      %v260 = vpack.c.b16 %v245, %v244
      %v261 = vpack.c.b16 %v247, %v246
      %v262 = vpack.c.b16 %v249, %v248
      %v263 = vpack.c.b16 %v250, %v250
      %v268 = vunpack.c.l.b16 %v172
      %v269 = vunpack.c.l.b16 %v173
      %v270 = vunpack.c.l.b16 %v174
      %v271 = vunpack.c.l.b16 %v175
      %v272 = vpack.c.b16 %v269, %v268
      %v273 = vpack.c.b16 %v271, %v270
      %vm275 = vcmask 203776
      %v277 = vsel %vm275, %v251, 0
      %v280 = vsel %vm275, %v252, 0
      %v283 = vsel %vm275, %v253, 0
      %v286 = vsel %vm275, %v254, 0
      %v289 = vsel %vm275, %v255, 0
      %v292 = vsel %vm275, %v256, 0
      %v295 = vsel %vm275, %v257, 0
      %v298 = vsel %vm275, %v258, 0
      %v301 = vsel %vm275, %v259, 0
      %v304 = vsel %vm275, %v260, 0
      %v307 = vsel %vm275, %v261, 0
      %v310 = vsel %vm275, %v262, 0
      %v313 = vsel %vm275, %v263, 0
      %vm315 = vcmask 1043456
      %vm316 = vcmask 1044480
      %v317 = vsel %vm315, 4294967295, 65535
      %v318 = vsel %vm316, %v317, 0
      %v320 = vand.u32 %v273, %v318
      %322 = vmatprep.subr.bf16.mxu0 0
      %323 = vmatpush1.bf16.msra.mxu0 %v272
      %324 = vmatprep.subr.bf16.mxu0 0
      %325 = vmatpush1.bf16.msra.mxu0 %v320
      %326 = vmatprep.subr.bf16.mxu0 0
      %327 = vmatpush1.bf16.msra.mxu0 0
      %328 = vmatprep.subr.bf16.mxu0 0
      %329 = vmatpush1.bf16.msra.mxu0 0
      %330 = vmatprep.subr.bf16.mxu0 0
      %331 = vmatpush1.bf16.msra.mxu0 0
      %332 = vmatprep.subr.bf16.mxu0 0
      %333 = vmatpush1.bf16.msra.mxu0 0
      %334 = vmatprep.subr.bf16.mxu0 0
      %335 = vmatpush1.bf16.msra.mxu0 0
      %336 = vmatprep.subr.bf16.mxu0 0
      %337 = vmatpush1.bf16.msra.mxu0 0
      %338 = vmatprep.subr.bf16.mxu0 0
      %339 = vmatpush1.bf16.msra.mxu0 0
      %340 = vmatprep.subr.bf16.mxu0 0
      %341 = vmatpush1.bf16.msra.mxu0 0
      %342 = vmatprep.subr.bf16.mxu0 0
      %343 = vmatpush1.bf16.msra.mxu0 0
      %344 = vmatprep.subr.bf16.mxu0 0
      %345 = vmatpush1.bf16.msra.mxu0 0
      %346 = vmatprep.subr.bf16.mxu0 0
      %347 = vmatpush1.bf16.msra.mxu0 0
      %348 = vmatprep.subr.bf16.mxu0 0
      %349 = vmatpush1.bf16.msra.mxu0 0
      %350 = vmatprep.subr.bf16.mxu0 0
      %351 = vmatpush1.bf16.msra.mxu0 0
      %352 = vmatprep.subr.bf16.mxu0 0
      %353 = vmatpush1.bf16.msra.mxu0 0
      %354 = vmatprep.mubr.bf16.mxu0 0
      %355 = vmatmul.mubr.bf16.gmra.mrb[0].mxu0 %v277
      %v356 = vpop.f32.mrb[0].mxu0
      %v357 = vadd.f32 0.0, %v356
      %v358 = vpop.f32.mrb[0].mxu0
      %v359 = vpop.f32.mrb[0].mxu0
      %v360 = vadd.f32 0.0, %v359
      %v361 = vpop.f32.mrb[0].mxu0
      %362 = vmatprep.mubr.bf16.mxu0 0
      %363 = vmatmul.mubr.bf16.gmra.mrb[0].mxu0 %v280
      %v364 = vpop.f32.mrb[0].mxu0
      %v365 = vadd.f32 0.0, %v364
      %v366 = vpop.f32.mrb[0].mxu0
      %v367 = vpop.f32.mrb[0].mxu0
      %v368 = vadd.f32 0.0, %v367
      %v369 = vpop.f32.mrb[0].mxu0
      %370 = vmatprep.mubr.bf16.mxu0 0
      %371 = vmatmul.mubr.bf16.gmra.mrb[0].mxu0 %v283
      %v372 = vpop.f32.mrb[0].mxu0
      %v373 = vadd.f32 0.0, %v372
      %v374 = vpop.f32.mrb[0].mxu0
      %v375 = vpop.f32.mrb[0].mxu0
      %v376 = vadd.f32 0.0, %v375
      %v377 = vpop.f32.mrb[0].mxu0
      %378 = vmatprep.mubr.bf16.mxu0 0
      %379 = vmatmul.mubr.bf16.gmra.mrb[0].mxu0 %v286
      %v380 = vpop.f32.mrb[0].mxu0
      %v381 = vadd.f32 0.0, %v380
      %v382 = vpop.f32.mrb[0].mxu0
      %v383 = vpop.f32.mrb[0].mxu0
      %v384 = vadd.f32 0.0, %v383
      %v385 = vpop.f32.mrb[0].mxu0
      %386 = vmatprep.mubr.bf16.mxu0 0
      %387 = vmatmul.mubr.bf16.gmra.mrb[0].mxu0 %v289
      %v388 = vpop.f32.mrb[0].mxu0
      %v389 = vadd.f32 0.0, %v388
      %v390 = vpop.f32.mrb[0].mxu0
      %v391 = vpop.f32.mrb[0].mxu0
      %v392 = vadd.f32 0.0, %v391
      %v393 = vpop.f32.mrb[0].mxu0
      %394 = vmatprep.mubr.bf16.mxu0 0
      %395 = vmatmul.mubr.bf16.gmra.mrb[0].mxu0 %v292
      %v396 = vpop.f32.mrb[0].mxu0
      %v397 = vadd.f32 0.0, %v396
      %v398 = vpop.f32.mrb[0].mxu0
      %v399 = vpop.f32.mrb[0].mxu0
      %v400 = vadd.f32 0.0, %v399
      %v401 = vpop.f32.mrb[0].mxu0
      %402 = vmatprep.mubr.bf16.mxu0 0
      %403 = vmatmul.mubr.bf16.gmra.mrb[0].mxu0 %v295
      %v404 = vpop.f32.mrb[0].mxu0
      %v405 = vadd.f32 0.0, %v404
      %v406 = vpop.f32.mrb[0].mxu0
      %v407 = vpop.f32.mrb[0].mxu0
      %v408 = vadd.f32 0.0, %v407
      %v409 = vpop.f32.mrb[0].mxu0
      %410 = vmatprep.mubr.bf16.mxu0 0
      %411 = vmatmul.mubr.bf16.gmra.mrb[0].mxu0 %v298
      %v412 = vpop.f32.mrb[0].mxu0
      %v413 = vadd.f32 0.0, %v412
      %v414 = vpop.f32.mrb[0].mxu0
      %v415 = vpop.f32.mrb[0].mxu0
      %v416 = vadd.f32 0.0, %v415
      %v417 = vpop.f32.mrb[0].mxu0
      %418 = vmatprep.mubr.bf16.mxu0 0
      %419 = vmatmul.mubr.bf16.gmra.mrb[0].mxu0 %v301
      %v420 = vpop.f32.mrb[0].mxu0
      %v421 = vadd.f32 0.0, %v420
      %v422 = vpop.f32.mrb[0].mxu0
      %v423 = vpop.f32.mrb[0].mxu0
      %v424 = vadd.f32 0.0, %v423
      %v425 = vpop.f32.mrb[0].mxu0
      %426 = vmatprep.mubr.bf16.mxu0 0
      %427 = vmatmul.mubr.bf16.gmra.mrb[0].mxu0 %v304
      %v428 = vpop.f32.mrb[0].mxu0
      %v429 = vadd.f32 0.0, %v428
      %v430 = vpop.f32.mrb[0].mxu0
      %v431 = vpop.f32.mrb[0].mxu0
      %v432 = vadd.f32 0.0, %v431
      %v433 = vpop.f32.mrb[0].mxu0
      %434 = vmatprep.mubr.bf16.mxu0 0
      %435 = vmatmul.mubr.bf16.gmra.mrb[0].mxu0 %v307
      %v436 = vpop.f32.mrb[0].mxu0
      %v437 = vadd.f32 0.0, %v436
      %v438 = vpop.f32.mrb[0].mxu0
      %v439 = vpop.f32.mrb[0].mxu0
      %v440 = vadd.f32 0.0, %v439
      %v441 = vpop.f32.mrb[0].mxu0
      %442 = vmatprep.mubr.bf16.mxu0 0
      %443 = vmatmul.mubr.bf16.gmra.mrb[0].mxu0 %v310
      %v444 = vpop.f32.mrb[0].mxu0
      %v445 = vadd.f32 0.0, %v444
      %v446 = vpop.f32.mrb[0].mxu0
      %v447 = vpop.f32.mrb[0].mxu0
      %v448 = vadd.f32 0.0, %v447
      %v449 = vpop.f32.mrb[0].mxu0
      %450 = vmatprep.mubr.bf16.mxu0 0
      %451 = vmatmul.mubr.bf16.gmra.mrb[0].mxu0 %v313
      %v452 = vpop.f32.mrb[0].mxu0
      %v453 = vadd.f32 0.0, %v452
      %v454 = vpop.f32.mrb[0].mxu0
      %v455 = vpop.f32.mrb[0].mxu0
      %v456 = vpop.f32.mrb[0].mxu0
      %457 = vdwg.mxu0
      %s458 = scalar_lea.vmem %s165, 100
      %v459 = vld [vmem:[%s458] sm:$0xf]
      %v460 = vld [vmem:[%s458 + $0x4] sm:$0xf]
      %v461 = vld [vmem:[%s458 + $0x8] sm:$0xf]
      %v462 = vld [vmem:[%s458 + $0xc] sm:$0xf]
      %v463 = vld [vmem:[%s458 + $0x10] sm:$0xf]
      %v464 = vld [vmem:[%s458 + $0x14] sm:$0xf]
      %v465 = vld [vmem:[%s458 + $0x18] sm:$0xf]
      %v466 = vld [vmem:[%s458 + $0x1c] sm:$0xf]
      %v467 = vld [vmem:[%s458 + $0x20] sm:$0xf]
      %v468 = vld [vmem:[%s458 + $0x24] sm:$0xf]
      %v469 = vld [vmem:[%s458 + $0x28] sm:$0xf]
      %v470 = vld [vmem:[%s458 + $0x2c] sm:$0xf]
      %v471 = vld [vmem:[%s458 + $0x30] sm:$0xf]
      %v472 = vld [vmem:[%s458 + $0x34] sm:$0xf]
      %v473 = vld [vmem:[%s458 + $0x38] sm:$0xf]
      %v474 = vld [vmem:[%s458 + $0x3c] sm:$0xf]
      %v475 = vld [vmem:[%s458 + $0x40] sm:$0xf]
      %v476 = vld [vmem:[%s458 + $0x44] sm:$0xf]
      %v477 = vld [vmem:[%s458 + $0x48] sm:$0xf]
      %v478 = vld [vmem:[%s458 + $0x4c] sm:$0xf]
      %v479 = vld [vmem:[%s458 + $0x50] sm:$0xf]
      %v480 = vld [vmem:[%s458 + $0x54] sm:$0xf]
      %v481 = vld [vmem:[%s458 + $0x58] sm:$0xf]
      %v482 = vld [vmem:[%s458 + $0x5c] sm:$0xf]
      %v483 = vld [vmem:[%s458 + $0x60] sm:$0x3]
      %v509 = vunpack.c.l.b16 %v459
      %v510 = vunpack.c.l.b16 %v460
      %v511 = vunpack.c.l.b16 %v461
      %v512 = vunpack.c.l.b16 %v462
      %v513 = vunpack.c.l.b16 %v463
      %v514 = vunpack.c.l.b16 %v464
      %v515 = vunpack.c.l.b16 %v465
      %v516 = vunpack.c.l.b16 %v466
      %v517 = vunpack.c.l.b16 %v467
      %v518 = vunpack.c.l.b16 %v468
      %v519 = vunpack.c.l.b16 %v469
      %v520 = vunpack.c.l.b16 %v470
      %v521 = vunpack.c.l.b16 %v471
      %v522 = vunpack.c.l.b16 %v472
      %v523 = vunpack.c.l.b16 %v473
      %v524 = vunpack.c.l.b16 %v474
      %v525 = vunpack.c.l.b16 %v475
      %v526 = vunpack.c.l.b16 %v476
      %v527 = vunpack.c.l.b16 %v477
      %v528 = vunpack.c.l.b16 %v478
      %v529 = vunpack.c.l.b16 %v479
      %v530 = vunpack.c.l.b16 %v480
      %v531 = vunpack.c.l.b16 %v481
      %v532 = vunpack.c.l.b16 %v482
      %v533 = vunpack.c.l.b16 %v483
      %v534 = vpack.c.b16 %v510, %v509
      %v535 = vpack.c.b16 %v512, %v511
      %v536 = vpack.c.b16 %v514, %v513
      %v537 = vpack.c.b16 %v516, %v515
      %v538 = vpack.c.b16 %v518, %v517
      %v539 = vpack.c.b16 %v520, %v519
      %v540 = vpack.c.b16 %v522, %v521
      %v541 = vpack.c.b16 %v524, %v523
      %v542 = vpack.c.b16 %v526, %v525
      %v543 = vpack.c.b16 %v528, %v527
      %v544 = vpack.c.b16 %v530, %v529
      %v545 = vpack.c.b16 %v532, %v531
      %v546 = vpack.c.b16 %v533, %v533
      %v548 = vsel %vm275, %v534, 0
      %v551 = vsel %vm275, %v535, 0
      %v554 = vsel %vm275, %v536, 0
      %v557 = vsel %vm275, %v537, 0
      %v560 = vsel %vm275, %v538, 0
      %v563 = vsel %vm275, %v539, 0
      %v566 = vsel %vm275, %v540, 0
      %v569 = vsel %vm275, %v541, 0
      %v572 = vsel %vm275, %v542, 0
      %v575 = vsel %vm275, %v543, 0
      %v578 = vsel %vm275, %v544, 0
      %v581 = vsel %vm275, %v545, 0
      %v584 = vsel %vm275, %v546, 0
      %586 = vmatprep.subr.bf16.mxu0 0
      %587 = vmatpush1.bf16.msra.mxu0 %v272
      %588 = vmatprep.subr.bf16.mxu0 0
      %589 = vmatpush1.bf16.msra.mxu0 %v320
      %590 = vmatprep.subr.bf16.mxu0 0
      %591 = vmatpush1.bf16.msra.mxu0 0
      %592 = vmatprep.subr.bf16.mxu0 0
      %593 = vmatpush1.bf16.msra.mxu0 0
      %594 = vmatprep.subr.bf16.mxu0 0
      %595 = vmatpush1.bf16.msra.mxu0 0
      %596 = vmatprep.subr.bf16.mxu0 0
      %597 = vmatpush1.bf16.msra.mxu0 0
      %598 = vmatprep.subr.bf16.mxu0 0
      %599 = vmatpush1.bf16.msra.mxu0 0
      %600 = vmatprep.subr.bf16.mxu0 0
      %601 = vmatpush1.bf16.msra.mxu0 0
      %602 = vmatprep.subr.bf16.mxu0 0
      %603 = vmatpush1.bf16.msra.mxu0 0
      %604 = vmatprep.subr.bf16.mxu0 0
      %605 = vmatpush1.bf16.msra.mxu0 0
      %606 = vmatprep.subr.bf16.mxu0 0
      %607 = vmatpush1.bf16.msra.mxu0 0
      %608 = vmatprep.subr.bf16.mxu0 0
      %609 = vmatpush1.bf16.msra.mxu0 0
      %610 = vmatprep.subr.bf16.mxu0 0
      %611 = vmatpush1.bf16.msra.mxu0 0
      %612 = vmatprep.subr.bf16.mxu0 0
      %613 = vmatpush1.bf16.msra.mxu0 0
      %614 = vmatprep.subr.bf16.mxu0 0
      %615 = vmatpush1.bf16.msra.mxu0 0
      %616 = vmatprep.subr.bf16.mxu0 0
      %617 = vmatpush1.bf16.msra.mxu0 0
      %618 = vmatprep.mubr.bf16.mxu0 0
      %619 = vmatmul.mubr.bf16.gmra.mrb[0].mxu0 %v548
      %v620 = vpop.f32.mrb[0].mxu0
      %v621 = vadd.f32 0.0, %v620
      %v622 = vpop.f32.mrb[0].mxu0
      %v623 = vpop.f32.mrb[0].mxu0
      %v624 = vadd.f32 0.0, %v623
      %v625 = vpop.f32.mrb[0].mxu0
      %626 = vmatprep.mubr.bf16.mxu0 0
      %627 = vmatmul.mubr.bf16.gmra.mrb[0].mxu0 %v551
      %v628 = vpop.f32.mrb[0].mxu0
      %v629 = vadd.f32 0.0, %v628
      %v630 = vpop.f32.mrb[0].mxu0
      %v631 = vpop.f32.mrb[0].mxu0
      %v632 = vadd.f32 0.0, %v631
      %v633 = vpop.f32.mrb[0].mxu0
      %634 = vmatprep.mubr.bf16.mxu0 0
      %635 = vmatmul.mubr.bf16.gmra.mrb[0].mxu0 %v554
      %v636 = vpop.f32.mrb[0].mxu0
      %v637 = vadd.f32 0.0, %v636
      %v638 = vpop.f32.mrb[0].mxu0
      %v639 = vpop.f32.mrb[0].mxu0
      %v640 = vadd.f32 0.0, %v639
      %v641 = vpop.f32.mrb[0].mxu0
      %642 = vmatprep.mubr.bf16.mxu0 0
      %643 = vmatmul.mubr.bf16.gmra.mrb[0].mxu0 %v557
      %v644 = vpop.f32.mrb[0].mxu0
      %v645 = vadd.f32 0.0, %v644
      %v646 = vpop.f32.mrb[0].mxu0
      %v647 = vpop.f32.mrb[0].mxu0
      %v648 = vadd.f32 0.0, %v647
      %v649 = vpop.f32.mrb[0].mxu0
      %650 = vmatprep.mubr.bf16.mxu0 0
      %651 = vmatmul.mubr.bf16.gmra.mrb[0].mxu0 %v560
      %v652 = vpop.f32.mrb[0].mxu0
      %v653 = vadd.f32 0.0, %v652
      %v654 = vpop.f32.mrb[0].mxu0
      %v655 = vpop.f32.mrb[0].mxu0
      %v656 = vadd.f32 0.0, %v655
      %v657 = vpop.f32.mrb[0].mxu0
      %658 = vmatprep.mubr.bf16.mxu0 0
      %659 = vmatmul.mubr.bf16.gmra.mrb[0].mxu0 %v563
      %v660 = vpop.f32.mrb[0].mxu0
      %v661 = vadd.f32 0.0, %v660
      %v662 = vpop.f32.mrb[0].mxu0
      %v663 = vpop.f32.mrb[0].mxu0
      %v664 = vadd.f32 0.0, %v663
      %v665 = vpop.f32.mrb[0].mxu0
      %666 = vmatprep.mubr.bf16.mxu0 0
      %667 = vmatmul.mubr.bf16.gmra.mrb[0].mxu0 %v566
      %v668 = vpop.f32.mrb[0].mxu0
      %v669 = vadd.f32 0.0, %v668
      %v670 = vpop.f32.mrb[0].mxu0
      %v671 = vpop.f32.mrb[0].mxu0
      %v672 = vadd.f32 0.0, %v671
      %v673 = vpop.f32.mrb[0].mxu0
      %674 = vmatprep.mubr.bf16.mxu0 0
      %675 = vmatmul.mubr.bf16.gmra.mrb[0].mxu0 %v569
      %v676 = vpop.f32.mrb[0].mxu0
      %v677 = vadd.f32 0.0, %v676
      %v678 = vpop.f32.mrb[0].mxu0
      %v679 = vpop.f32.mrb[0].mxu0
      %v680 = vadd.f32 0.0, %v679
      %v681 = vpop.f32.mrb[0].mxu0
      %682 = vmatprep.mubr.bf16.mxu0 0
      %683 = vmatmul.mubr.bf16.gmra.mrb[0].mxu0 %v572
      %v684 = vpop.f32.mrb[0].mxu0
      %v685 = vadd.f32 0.0, %v684
      %v686 = vpop.f32.mrb[0].mxu0
      %v687 = vpop.f32.mrb[0].mxu0
      %v688 = vadd.f32 0.0, %v687
      %v689 = vpop.f32.mrb[0].mxu0
      %690 = vmatprep.mubr.bf16.mxu0 0
      %691 = vmatmul.mubr.bf16.gmra.mrb[0].mxu0 %v575
      %v692 = vpop.f32.mrb[0].mxu0
      %v693 = vadd.f32 0.0, %v692
      %v694 = vpop.f32.mrb[0].mxu0
      %v695 = vpop.f32.mrb[0].mxu0
      %v696 = vadd.f32 0.0, %v695
      %v697 = vpop.f32.mrb[0].mxu0
      %698 = vmatprep.mubr.bf16.mxu0 0
      %699 = vmatmul.mubr.bf16.gmra.mrb[0].mxu0 %v578
      %v700 = vpop.f32.mrb[0].mxu0
      %v701 = vadd.f32 0.0, %v700
      %v702 = vpop.f32.mrb[0].mxu0
      %v703 = vpop.f32.mrb[0].mxu0
      %v704 = vadd.f32 0.0, %v703
      %v705 = vpop.f32.mrb[0].mxu0
      %706 = vmatprep.mubr.bf16.mxu0 0
      %707 = vmatmul.mubr.bf16.gmra.mrb[0].mxu0 %v581
      %v708 = vpop.f32.mrb[0].mxu0
      %v709 = vadd.f32 0.0, %v708
      %v710 = vpop.f32.mrb[0].mxu0
      %v711 = vpop.f32.mrb[0].mxu0
      %v712 = vadd.f32 0.0, %v711
      %v713 = vpop.f32.mrb[0].mxu0
      %714 = vmatprep.mubr.bf16.mxu0 0
      %715 = vmatmul.mubr.bf16.gmra.mrb[0].mxu0 %v584
      %v716 = vpop.f32.mrb[0].mxu0
      %v717 = vadd.f32 0.0, %v716
      %v718 = vpop.f32.mrb[0].mxu0
      %v719 = vpop.f32.mrb[0].mxu0
      %v720 = vpop.f32.mrb[0].mxu0
      %721 = vdwg.mxu0
      %v722 = vmax.f32 %v357, %v621
      %v723 = vmax.f32 %v360, %v624
      %v724 = vmax.f32 %v365, %v629
      %v725 = vmax.f32 %v368, %v632
      %v726 = vmax.f32 %v373, %v637
      %v727 = vmax.f32 %v376, %v640
      %v728 = vmax.f32 %v381, %v645
      %v729 = vmax.f32 %v384, %v648
      %v730 = vmax.f32 %v389, %v653
      %v731 = vmax.f32 %v392, %v656
      %v732 = vmax.f32 %v397, %v661
      %v733 = vmax.f32 %v400, %v664
      %v734 = vmax.f32 %v405, %v669
      %v735 = vmax.f32 %v408, %v672
      %v736 = vmax.f32 %v413, %v677
      %v737 = vmax.f32 %v416, %v680
      %v738 = vmax.f32 %v421, %v685
      %v739 = vmax.f32 %v424, %v688
      %v740 = vmax.f32 %v429, %v693
      %v741 = vmax.f32 %v432, %v696
      %v742 = vmax.f32 %v437, %v701
      %v743 = vmax.f32 %v440, %v704
      %v744 = vmax.f32 %v445, %v709
      %v745 = vmax.f32 %v448, %v712
      %v746 = vmax.f32 %v453, %v717
      %s747 = scalar_lea.vmem %s165, 200
      %v748 = vld [vmem:[%s747] sm:$0xf]
      %v749 = vld [vmem:[%s747 + $0x4] sm:$0xf]
      %v750 = vld [vmem:[%s747 + $0x8] sm:$0xf]
      %v751 = vld [vmem:[%s747 + $0xc] sm:$0xf]
      %v752 = vld [vmem:[%s747 + $0x10] sm:$0xf]
      %v753 = vld [vmem:[%s747 + $0x14] sm:$0xf]
      %v754 = vld [vmem:[%s747 + $0x18] sm:$0xf]
      %v755 = vld [vmem:[%s747 + $0x1c] sm:$0xf]
      %v756 = vld [vmem:[%s747 + $0x20] sm:$0xf]
      %v757 = vld [vmem:[%s747 + $0x24] sm:$0xf]
      %v758 = vld [vmem:[%s747 + $0x28] sm:$0xf]
      %v759 = vld [vmem:[%s747 + $0x2c] sm:$0xf]
      %v760 = vld [vmem:[%s747 + $0x30] sm:$0xf]
      %v761 = vld [vmem:[%s747 + $0x34] sm:$0xf]
      %v762 = vld [vmem:[%s747 + $0x38] sm:$0xf]
      %v763 = vld [vmem:[%s747 + $0x3c] sm:$0xf]
      %v764 = vld [vmem:[%s747 + $0x40] sm:$0xf]
      %v765 = vld [vmem:[%s747 + $0x44] sm:$0xf]
      %v766 = vld [vmem:[%s747 + $0x48] sm:$0xf]
      %v767 = vld [vmem:[%s747 + $0x4c] sm:$0xf]
      %v768 = vld [vmem:[%s747 + $0x50] sm:$0xf]
      %v769 = vld [vmem:[%s747 + $0x54] sm:$0xf]
      %v770 = vld [vmem:[%s747 + $0x58] sm:$0xf]
      %v771 = vld [vmem:[%s747 + $0x5c] sm:$0xf]
      %v772 = vld [vmem:[%s747 + $0x60] sm:$0x3]
      %v798 = vunpack.c.l.b16 %v748
      %v799 = vunpack.c.l.b16 %v749
      %v800 = vunpack.c.l.b16 %v750
      %v801 = vunpack.c.l.b16 %v751
      %v802 = vunpack.c.l.b16 %v752
      %v803 = vunpack.c.l.b16 %v753
      %v804 = vunpack.c.l.b16 %v754
      %v805 = vunpack.c.l.b16 %v755
      %v806 = vunpack.c.l.b16 %v756
      %v807 = vunpack.c.l.b16 %v757
      %v808 = vunpack.c.l.b16 %v758
      %v809 = vunpack.c.l.b16 %v759
      %v810 = vunpack.c.l.b16 %v760
      %v811 = vunpack.c.l.b16 %v761
      %v812 = vunpack.c.l.b16 %v762
      %v813 = vunpack.c.l.b16 %v763
      %v814 = vunpack.c.l.b16 %v764
      %v815 = vunpack.c.l.b16 %v765
      %v816 = vunpack.c.l.b16 %v766
      %v817 = vunpack.c.l.b16 %v767
      %v818 = vunpack.c.l.b16 %v768
      %v819 = vunpack.c.l.b16 %v769
      %v820 = vunpack.c.l.b16 %v770
      %v821 = vunpack.c.l.b16 %v771
      %v822 = vunpack.c.l.b16 %v772
      %v823 = vpack.c.b16 %v799, %v798
      %v824 = vpack.c.b16 %v801, %v800
      %v825 = vpack.c.b16 %v803, %v802
      %v826 = vpack.c.b16 %v805, %v804
      %v827 = vpack.c.b16 %v807, %v806
      %v828 = vpack.c.b16 %v809, %v808
      %v829 = vpack.c.b16 %v811, %v810
      %v830 = vpack.c.b16 %v813, %v812
      %v831 = vpack.c.b16 %v815, %v814
      %v832 = vpack.c.b16 %v817, %v816
      %v833 = vpack.c.b16 %v819, %v818
      %v834 = vpack.c.b16 %v821, %v820
      %v835 = vpack.c.b16 %v822, %v822
      %v837 = vsel %vm275, %v823, 0
      %v840 = vsel %vm275, %v824, 0
      %v843 = vsel %vm275, %v825, 0
      %v846 = vsel %vm275, %v826, 0
      %v849 = vsel %vm275, %v827, 0
      %v852 = vsel %vm275, %v828, 0
      %v855 = vsel %vm275, %v829, 0
      %v858 = vsel %vm275, %v830, 0
      %v861 = vsel %vm275, %v831, 0
      %v864 = vsel %vm275, %v832, 0
      %v867 = vsel %vm275, %v833, 0
      %v870 = vsel %vm275, %v834, 0
      %v873 = vsel %vm275, %v835, 0
      %875 = vmatprep.subr.bf16.mxu0 0
      %876 = vmatpush1.bf16.msra.mxu0 %v272
      %877 = vmatprep.subr.bf16.mxu0 0
      %878 = vmatpush1.bf16.msra.mxu0 %v320
      %879 = vmatprep.subr.bf16.mxu0 0
      %880 = vmatpush1.bf16.msra.mxu0 0
      %881 = vmatprep.subr.bf16.mxu0 0
      %882 = vmatpush1.bf16.msra.mxu0 0
      %883 = vmatprep.subr.bf16.mxu0 0
      %884 = vmatpush1.bf16.msra.mxu0 0
      %885 = vmatprep.subr.bf16.mxu0 0
      %886 = vmatpush1.bf16.msra.mxu0 0
      %887 = vmatprep.subr.bf16.mxu0 0
      %888 = vmatpush1.bf16.msra.mxu0 0
      %889 = vmatprep.subr.bf16.mxu0 0
      %890 = vmatpush1.bf16.msra.mxu0 0
      %891 = vmatprep.subr.bf16.mxu0 0
      %892 = vmatpush1.bf16.msra.mxu0 0
      %893 = vmatprep.subr.bf16.mxu0 0
      %894 = vmatpush1.bf16.msra.mxu0 0
      %895 = vmatprep.subr.bf16.mxu0 0
      %896 = vmatpush1.bf16.msra.mxu0 0
      %897 = vmatprep.subr.bf16.mxu0 0
      %898 = vmatpush1.bf16.msra.mxu0 0
      %899 = vmatprep.subr.bf16.mxu0 0
      %900 = vmatpush1.bf16.msra.mxu0 0
      %901 = vmatprep.subr.bf16.mxu0 0
      %902 = vmatpush1.bf16.msra.mxu0 0
      %903 = vmatprep.subr.bf16.mxu0 0
      %904 = vmatpush1.bf16.msra.mxu0 0
      %905 = vmatprep.subr.bf16.mxu0 0
      %906 = vmatpush1.bf16.msra.mxu0 0
      %907 = vmatprep.mubr.bf16.mxu0 0
      %908 = vmatmul.mubr.bf16.gmra.mrb[0].mxu0 %v837
      %v909 = vpop.f32.mrb[0].mxu0
      %v910 = vadd.f32 0.0, %v909
      %v911 = vpop.f32.mrb[0].mxu0
      %v912 = vpop.f32.mrb[0].mxu0
      %v913 = vadd.f32 0.0, %v912
      %v914 = vpop.f32.mrb[0].mxu0
      %915 = vmatprep.mubr.bf16.mxu0 0
      %916 = vmatmul.mubr.bf16.gmra.mrb[0].mxu0 %v840
      %v917 = vpop.f32.mrb[0].mxu0
      %v918 = vadd.f32 0.0, %v917
      %v919 = vpop.f32.mrb[0].mxu0
      %v920 = vpop.f32.mrb[0].mxu0
      %v921 = vadd.f32 0.0, %v920
      %v922 = vpop.f32.mrb[0].mxu0
      %923 = vmatprep.mubr.bf16.mxu0 0
      %924 = vmatmul.mubr.bf16.gmra.mrb[0].mxu0 %v843
      %v925 = vpop.f32.mrb[0].mxu0
      %v926 = vadd.f32 0.0, %v925
      %v927 = vpop.f32.mrb[0].mxu0
      %v928 = vpop.f32.mrb[0].mxu0
      %v929 = vadd.f32 0.0, %v928
      %v930 = vpop.f32.mrb[0].mxu0
      %931 = vmatprep.mubr.bf16.mxu0 0
      %932 = vmatmul.mubr.bf16.gmra.mrb[0].mxu0 %v846
      %v933 = vpop.f32.mrb[0].mxu0
      %v934 = vadd.f32 0.0, %v933
      %v935 = vpop.f32.mrb[0].mxu0
      %v936 = vpop.f32.mrb[0].mxu0
      %v937 = vadd.f32 0.0, %v936
      %v938 = vpop.f32.mrb[0].mxu0
      %939 = vmatprep.mubr.bf16.mxu0 0
      %940 = vmatmul.mubr.bf16.gmra.mrb[0].mxu0 %v849
      %v941 = vpop.f32.mrb[0].mxu0
      %v942 = vadd.f32 0.0, %v941
      %v943 = vpop.f32.mrb[0].mxu0
      %v944 = vpop.f32.mrb[0].mxu0
      %v945 = vadd.f32 0.0, %v944
      %v946 = vpop.f32.mrb[0].mxu0
      %947 = vmatprep.mubr.bf16.mxu0 0
      %948 = vmatmul.mubr.bf16.gmra.mrb[0].mxu0 %v852
      %v949 = vpop.f32.mrb[0].mxu0
      %v950 = vadd.f32 0.0, %v949
      %v951 = vpop.f32.mrb[0].mxu0
      %v952 = vpop.f32.mrb[0].mxu0
      %v953 = vadd.f32 0.0, %v952
      %v954 = vpop.f32.mrb[0].mxu0
      %955 = vmatprep.mubr.bf16.mxu0 0
      %956 = vmatmul.mubr.bf16.gmra.mrb[0].mxu0 %v855
      %v957 = vpop.f32.mrb[0].mxu0
      %v958 = vadd.f32 0.0, %v957
      %v959 = vpop.f32.mrb[0].mxu0
      %v960 = vpop.f32.mrb[0].mxu0
      %v961 = vadd.f32 0.0, %v960
      %v962 = vpop.f32.mrb[0].mxu0
      %963 = vmatprep.mubr.bf16.mxu0 0
      %964 = vmatmul.mubr.bf16.gmra.mrb[0].mxu0 %v858
      %v965 = vpop.f32.mrb[0].mxu0
      %v966 = vadd.f32 0.0, %v965
      %v967 = vpop.f32.mrb[0].mxu0
      %v968 = vpop.f32.mrb[0].mxu0
      %v969 = vadd.f32 0.0, %v968
      %v970 = vpop.f32.mrb[0].mxu0
      %971 = vmatprep.mubr.bf16.mxu0 0
      %972 = vmatmul.mubr.bf16.gmra.mrb[0].mxu0 %v861
      %v973 = vpop.f32.mrb[0].mxu0
      %v974 = vadd.f32 0.0, %v973
      %v975 = vpop.f32.mrb[0].mxu0
      %v976 = vpop.f32.mrb[0].mxu0
      %v977 = vadd.f32 0.0, %v976
      %v978 = vpop.f32.mrb[0].mxu0
      %979 = vmatprep.mubr.bf16.mxu0 0
      %980 = vmatmul.mubr.bf16.gmra.mrb[0].mxu0 %v864
      %v981 = vpop.f32.mrb[0].mxu0
      %v982 = vadd.f32 0.0, %v981
      %v983 = vpop.f32.mrb[0].mxu0
      %v984 = vpop.f32.mrb[0].mxu0
      %v985 = vadd.f32 0.0, %v984
      %v986 = vpop.f32.mrb[0].mxu0
      %987 = vmatprep.mubr.bf16.mxu0 0
      %988 = vmatmul.mubr.bf16.gmra.mrb[0].mxu0 %v867
      %v989 = vpop.f32.mrb[0].mxu0
      %v990 = vadd.f32 0.0, %v989
      %v991 = vpop.f32.mrb[0].mxu0
      %v992 = vpop.f32.mrb[0].mxu0
      %v993 = vadd.f32 0.0, %v992
      %v994 = vpop.f32.mrb[0].mxu0
      %995 = vmatprep.mubr.bf16.mxu0 0
      %996 = vmatmul.mubr.bf16.gmra.mrb[0].mxu0 %v870
      %v997 = vpop.f32.mrb[0].mxu0
      %v998 = vadd.f32 0.0, %v997
      %v999 = vpop.f32.mrb[0].mxu0
      %v1000 = vpop.f32.mrb[0].mxu0
      %v1001 = vadd.f32 0.0, %v1000
      %v1002 = vpop.f32.mrb[0].mxu0
      %1003 = vmatprep.mubr.bf16.mxu0 0
      %1004 = vmatmul.mubr.bf16.gmra.mrb[0].mxu0 %v873
      %v1005 = vpop.f32.mrb[0].mxu0
      %v1006 = vadd.f32 0.0, %v1005
      %v1007 = vpop.f32.mrb[0].mxu0
      %v1008 = vpop.f32.mrb[0].mxu0
      %v1009 = vpop.f32.mrb[0].mxu0
      %1010 = vdwg.mxu0
      %v1011 = vmax.f32 %v722, %v910
      %v1012 = vmax.f32 %v723, %v913
      %v1013 = vmax.f32 %v724, %v918
      %v1014 = vmax.f32 %v725, %v921
      %v1015 = vmax.f32 %v726, %v926
      %v1016 = vmax.f32 %v727, %v929
      %v1017 = vmax.f32 %v728, %v934
      %v1018 = vmax.f32 %v729, %v937
      %v1019 = vmax.f32 %v730, %v942
      %v1020 = vmax.f32 %v731, %v945
      %v1021 = vmax.f32 %v732, %v950
      %v1022 = vmax.f32 %v733, %v953
      %v1023 = vmax.f32 %v734, %v958
      %v1024 = vmax.f32 %v735, %v961
      %v1025 = vmax.f32 %v736, %v966
      %v1026 = vmax.f32 %v737, %v969
      %v1027 = vmax.f32 %v738, %v974
      %v1028 = vmax.f32 %v739, %v977
      %v1029 = vmax.f32 %v740, %v982
      %v1030 = vmax.f32 %v741, %v985
      %v1031 = vmax.f32 %v742, %v990
      %v1032 = vmax.f32 %v743, %v993
      %v1033 = vmax.f32 %v744, %v998
      %v1034 = vmax.f32 %v745, %v1001
      %v1035 = vmax.f32 %v746, %v1006
      %s1036 = scalar_lea.vmem %s165, 300
      %v1037 = vld [vmem:[%s1036] sm:$0xf]
      %v1038 = vld [vmem:[%s1036 + $0x4] sm:$0xf]
      %v1039 = vld [vmem:[%s1036 + $0x8] sm:$0xf]
      %v1040 = vld [vmem:[%s1036 + $0xc] sm:$0xf]
      %v1041 = vld [vmem:[%s1036 + $0x10] sm:$0xf]
      %v1042 = vld [vmem:[%s1036 + $0x14] sm:$0xf]
      %v1043 = vld [vmem:[%s1036 + $0x18] sm:$0xf]
      %v1044 = vld [vmem:[%s1036 + $0x1c] sm:$0xf]
      %v1045 = vld [vmem:[%s1036 + $0x20] sm:$0xf]
      %v1046 = vld [vmem:[%s1036 + $0x24] sm:$0xf]
      %v1047 = vld [vmem:[%s1036 + $0x28] sm:$0xf]
      %v1048 = vld [vmem:[%s1036 + $0x2c] sm:$0xf]
      %v1049 = vld [vmem:[%s1036 + $0x30] sm:$0xf]
      %v1050 = vld [vmem:[%s1036 + $0x34] sm:$0xf]
      %v1051 = vld [vmem:[%s1036 + $0x38] sm:$0xf]
      %v1052 = vld [vmem:[%s1036 + $0x3c] sm:$0xf]
      %v1053 = vld [vmem:[%s1036 + $0x40] sm:$0xf]
      %v1054 = vld [vmem:[%s1036 + $0x44] sm:$0xf]
      %v1055 = vld [vmem:[%s1036 + $0x48] sm:$0xf]
      %v1056 = vld [vmem:[%s1036 + $0x4c] sm:$0xf]
      %v1057 = vld [vmem:[%s1036 + $0x50] sm:$0xf]
      %v1058 = vld [vmem:[%s1036 + $0x54] sm:$0xf]
      %v1059 = vld [vmem:[%s1036 + $0x58] sm:$0xf]
      %v1060 = vld [vmem:[%s1036 + $0x5c] sm:$0xf]
      %v1061 = vld [vmem:[%s1036 + $0x60] sm:$0x3]
      %v1087 = vunpack.c.l.b16 %v1037
      %v1088 = vunpack.c.l.b16 %v1038
      %v1089 = vunpack.c.l.b16 %v1039
      %v1090 = vunpack.c.l.b16 %v1040
      %v1091 = vunpack.c.l.b16 %v1041
      %v1092 = vunpack.c.l.b16 %v1042
      %v1093 = vunpack.c.l.b16 %v1043
      %v1094 = vunpack.c.l.b16 %v1044
      %v1095 = vunpack.c.l.b16 %v1045
      %v1096 = vunpack.c.l.b16 %v1046
      %v1097 = vunpack.c.l.b16 %v1047
      %v1098 = vunpack.c.l.b16 %v1048
      %v1099 = vunpack.c.l.b16 %v1049
      %v1100 = vunpack.c.l.b16 %v1050
      %v1101 = vunpack.c.l.b16 %v1051
      %v1102 = vunpack.c.l.b16 %v1052
      %v1103 = vunpack.c.l.b16 %v1053
      %v1104 = vunpack.c.l.b16 %v1054
      %v1105 = vunpack.c.l.b16 %v1055
      %v1106 = vunpack.c.l.b16 %v1056
      %v1107 = vunpack.c.l.b16 %v1057
      %v1108 = vunpack.c.l.b16 %v1058
      %v1109 = vunpack.c.l.b16 %v1059
      %v1110 = vunpack.c.l.b16 %v1060
      %v1111 = vunpack.c.l.b16 %v1061
      %v1112 = vpack.c.b16 %v1088, %v1087
      %v1113 = vpack.c.b16 %v1090, %v1089
      %v1114 = vpack.c.b16 %v1092, %v1091
      %v1115 = vpack.c.b16 %v1094, %v1093
      %v1116 = vpack.c.b16 %v1096, %v1095
      %v1117 = vpack.c.b16 %v1098, %v1097
      %v1118 = vpack.c.b16 %v1100, %v1099
      %v1119 = vpack.c.b16 %v1102, %v1101
      %v1120 = vpack.c.b16 %v1104, %v1103
      %v1121 = vpack.c.b16 %v1106, %v1105
      %v1122 = vpack.c.b16 %v1108, %v1107
      %v1123 = vpack.c.b16 %v1110, %v1109
      %v1124 = vpack.c.b16 %v1111, %v1111
      %v1126 = vsel %vm275, %v1112, 0
      %v1129 = vsel %vm275, %v1113, 0
      %v1132 = vsel %vm275, %v1114, 0
      %v1135 = vsel %vm275, %v1115, 0
      %v1138 = vsel %vm275, %v1116, 0
      %v1141 = vsel %vm275, %v1117, 0
      %v1144 = vsel %vm275, %v1118, 0
      %v1147 = vsel %vm275, %v1119, 0
      %v1150 = vsel %vm275, %v1120, 0
      %v1153 = vsel %vm275, %v1121, 0
      %v1156 = vsel %vm275, %v1122, 0
      %v1159 = vsel %vm275, %v1123, 0
      %v1162 = vsel %vm275, %v1124, 0
      %1164 = vmatprep.subr.bf16.mxu0 0
      %1165 = vmatpush1.bf16.msra.mxu0 %v272
      %1166 = vmatprep.subr.bf16.mxu0 0
      %1167 = vmatpush1.bf16.msra.mxu0 %v320
      %1168 = vmatprep.subr.bf16.mxu0 0
      %1169 = vmatpush1.bf16.msra.mxu0 0
      %1170 = vmatprep.subr.bf16.mxu0 0
      %1171 = vmatpush1.bf16.msra.mxu0 0
      %1172 = vmatprep.subr.bf16.mxu0 0
      %1173 = vmatpush1.bf16.msra.mxu0 0
      %1174 = vmatprep.subr.bf16.mxu0 0
      %1175 = vmatpush1.bf16.msra.mxu0 0
      %1176 = vmatprep.subr.bf16.mxu0 0
      %1177 = vmatpush1.bf16.msra.mxu0 0
      %1178 = vmatprep.subr.bf16.mxu0 0
      %1179 = vmatpush1.bf16.msra.mxu0 0
      %1180 = vmatprep.subr.bf16.mxu0 0
      %1181 = vmatpush1.bf16.msra.mxu0 0
      %1182 = vmatprep.subr.bf16.mxu0 0
      %1183 = vmatpush1.bf16.msra.mxu0 0
      %1184 = vmatprep.subr.bf16.mxu0 0
      %1185 = vmatpush1.bf16.msra.mxu0 0
      %1186 = vmatprep.subr.bf16.mxu0 0
      %1187 = vmatpush1.bf16.msra.mxu0 0
      %1188 = vmatprep.subr.bf16.mxu0 0
      %1189 = vmatpush1.bf16.msra.mxu0 0
      %1190 = vmatprep.subr.bf16.mxu0 0
      %1191 = vmatpush1.bf16.msra.mxu0 0
      %1192 = vmatprep.subr.bf16.mxu0 0
      %1193 = vmatpush1.bf16.msra.mxu0 0
      %1194 = vmatprep.subr.bf16.mxu0 0
      %1195 = vmatpush1.bf16.msra.mxu0 0
      %1196 = vmatprep.mubr.bf16.mxu0 0
      %1197 = vmatmul.mubr.bf16.gmra.mrb[0].mxu0 %v1126
      %v1198 = vpop.f32.mrb[0].mxu0
      %v1199 = vadd.f32 0.0, %v1198
      %v1200 = vpop.f32.mrb[0].mxu0
      %v1201 = vpop.f32.mrb[0].mxu0
      %v1202 = vadd.f32 0.0, %v1201
      %v1203 = vpop.f32.mrb[0].mxu0
      %1204 = vmatprep.mubr.bf16.mxu0 0
      %1205 = vmatmul.mubr.bf16.gmra.mrb[0].mxu0 %v1129
      %v1206 = vpop.f32.mrb[0].mxu0
      %v1207 = vadd.f32 0.0, %v1206
      %v1208 = vpop.f32.mrb[0].mxu0
      %v1209 = vpop.f32.mrb[0].mxu0
      %v1210 = vadd.f32 0.0, %v1209
      %v1211 = vpop.f32.mrb[0].mxu0
      %1212 = vmatprep.mubr.bf16.mxu0 0
      %1213 = vmatmul.mubr.bf16.gmra.mrb[0].mxu0 %v1132
      %v1214 = vpop.f32.mrb[0].mxu0
      %v1215 = vadd.f32 0.0, %v1214
      %v1216 = vpop.f32.mrb[0].mxu0
      %v1217 = vpop.f32.mrb[0].mxu0
      %v1218 = vadd.f32 0.0, %v1217
      %v1219 = vpop.f32.mrb[0].mxu0
      %1220 = vmatprep.mubr.bf16.mxu0 0
      %1221 = vmatmul.mubr.bf16.gmra.mrb[0].mxu0 %v1135
      %v1222 = vpop.f32.mrb[0].mxu0
      %v1223 = vadd.f32 0.0, %v1222
      %v1224 = vpop.f32.mrb[0].mxu0
      %v1225 = vpop.f32.mrb[0].mxu0
      %v1226 = vadd.f32 0.0, %v1225
      %v1227 = vpop.f32.mrb[0].mxu0
      %1228 = vmatprep.mubr.bf16.mxu0 0
      %1229 = vmatmul.mubr.bf16.gmra.mrb[0].mxu0 %v1138
      %v1230 = vpop.f32.mrb[0].mxu0
      %v1231 = vadd.f32 0.0, %v1230
      %v1232 = vpop.f32.mrb[0].mxu0
      %v1233 = vpop.f32.mrb[0].mxu0
      %v1234 = vadd.f32 0.0, %v1233
      %v1235 = vpop.f32.mrb[0].mxu0
      %1236 = vmatprep.mubr.bf16.mxu0 0
      %1237 = vmatmul.mubr.bf16.gmra.mrb[0].mxu0 %v1141
      %v1238 = vpop.f32.mrb[0].mxu0
      %v1239 = vadd.f32 0.0, %v1238
      %v1240 = vpop.f32.mrb[0].mxu0
      %v1241 = vpop.f32.mrb[0].mxu0
      %v1242 = vadd.f32 0.0, %v1241
      %v1243 = vpop.f32.mrb[0].mxu0
      %1244 = vmatprep.mubr.bf16.mxu0 0
      %1245 = vmatmul.mubr.bf16.gmra.mrb[0].mxu0 %v1144
      %v1246 = vpop.f32.mrb[0].mxu0
      %v1247 = vadd.f32 0.0, %v1246
      %v1248 = vpop.f32.mrb[0].mxu0
      %v1249 = vpop.f32.mrb[0].mxu0
      %v1250 = vadd.f32 0.0, %v1249
      %v1251 = vpop.f32.mrb[0].mxu0
      %1252 = vmatprep.mubr.bf16.mxu0 0
      %1253 = vmatmul.mubr.bf16.gmra.mrb[0].mxu0 %v1147
      %v1254 = vpop.f32.mrb[0].mxu0
      %v1255 = vadd.f32 0.0, %v1254
      %v1256 = vpop.f32.mrb[0].mxu0
      %v1257 = vpop.f32.mrb[0].mxu0
      %v1258 = vadd.f32 0.0, %v1257
      %v1259 = vpop.f32.mrb[0].mxu0
      %1260 = vmatprep.mubr.bf16.mxu0 0
      %1261 = vmatmul.mubr.bf16.gmra.mrb[0].mxu0 %v1150
      %v1262 = vpop.f32.mrb[0].mxu0
      %v1263 = vadd.f32 0.0, %v1262
      %v1264 = vpop.f32.mrb[0].mxu0
      %v1265 = vpop.f32.mrb[0].mxu0
      %v1266 = vadd.f32 0.0, %v1265
      %v1267 = vpop.f32.mrb[0].mxu0
      %1268 = vmatprep.mubr.bf16.mxu0 0
      %1269 = vmatmul.mubr.bf16.gmra.mrb[0].mxu0 %v1153
      %v1270 = vpop.f32.mrb[0].mxu0
      %v1271 = vadd.f32 0.0, %v1270
      %v1272 = vpop.f32.mrb[0].mxu0
      %v1273 = vpop.f32.mrb[0].mxu0
      %v1274 = vadd.f32 0.0, %v1273
      %v1275 = vpop.f32.mrb[0].mxu0
      %1276 = vmatprep.mubr.bf16.mxu0 0
      %1277 = vmatmul.mubr.bf16.gmra.mrb[0].mxu0 %v1156
      %v1278 = vpop.f32.mrb[0].mxu0
      %v1279 = vadd.f32 0.0, %v1278
      %v1280 = vpop.f32.mrb[0].mxu0
      %v1281 = vpop.f32.mrb[0].mxu0
      %v1282 = vadd.f32 0.0, %v1281
      %v1283 = vpop.f32.mrb[0].mxu0
      %1284 = vmatprep.mubr.bf16.mxu0 0
      %1285 = vmatmul.mubr.bf16.gmra.mrb[0].mxu0 %v1159
      %v1286 = vpop.f32.mrb[0].mxu0
      %v1287 = vadd.f32 0.0, %v1286
      %v1288 = vpop.f32.mrb[0].mxu0
      %v1289 = vpop.f32.mrb[0].mxu0
      %v1290 = vadd.f32 0.0, %v1289
      %v1291 = vpop.f32.mrb[0].mxu0
      %1292 = vmatprep.mubr.bf16.mxu0 0
      %1293 = vmatmul.mubr.bf16.gmra.mrb[0].mxu0 %v1162
      %v1294 = vpop.f32.mrb[0].mxu0
      %v1295 = vadd.f32 0.0, %v1294
      %v1296 = vpop.f32.mrb[0].mxu0
      %v1297 = vpop.f32.mrb[0].mxu0
      %v1298 = vpop.f32.mrb[0].mxu0
      %1299 = vdwg.mxu0
      %v1300 = vmax.f32 %v1011, %v1199
      %v1301 = vmax.f32 %v1012, %v1202
      %v1302 = vmax.f32 %v1013, %v1207
      %v1303 = vmax.f32 %v1014, %v1210
      %v1304 = vmax.f32 %v1015, %v1215
      %v1305 = vmax.f32 %v1016, %v1218
      %v1306 = vmax.f32 %v1017, %v1223
      %v1307 = vmax.f32 %v1018, %v1226
      %v1308 = vmax.f32 %v1019, %v1231
      %v1309 = vmax.f32 %v1020, %v1234
      %v1310 = vmax.f32 %v1021, %v1239
      %v1311 = vmax.f32 %v1022, %v1242
      %v1312 = vmax.f32 %v1023, %v1247
      %v1313 = vmax.f32 %v1024, %v1250
      %v1314 = vmax.f32 %v1025, %v1255
      %v1315 = vmax.f32 %v1026, %v1258
      %v1316 = vmax.f32 %v1027, %v1263
      %v1317 = vmax.f32 %v1028, %v1266
      %v1318 = vmax.f32 %v1029, %v1271
      %v1319 = vmax.f32 %v1030, %v1274
      %v1320 = vmax.f32 %v1031, %v1279
      %v1321 = vmax.f32 %v1032, %v1282
      %v1322 = vmax.f32 %v1033, %v1287
      %v1323 = vmax.f32 %v1034, %v1290
      %v1324 = vmax.f32 %v1035, %v1295
      %v1325 = vld [vmem:[%s2] sm:$0x1]
      %v1327 = vlaneseq
      %v1328 = vshrl.u32 %v1327, 7
      %v1329 = vsub.s32 0, %v1328
      %v1330 = vrot.slane %v1325, %v1329
      %v1332 = vadd.f32 %v1300, %v1330
      %v1333 = vadd.f32 %v1301, %v1330
      %v1334 = vadd.f32 %v1302, %v1330
      %v1335 = vadd.f32 %v1303, %v1330
      %v1336 = vadd.f32 %v1304, %v1330
      %v1337 = vadd.f32 %v1305, %v1330
      %v1338 = vadd.f32 %v1306, %v1330
      %v1339 = vadd.f32 %v1307, %v1330
      %v1340 = vadd.f32 %v1308, %v1330
      %v1341 = vadd.f32 %v1309, %v1330
      %v1342 = vadd.f32 %v1310, %v1330
      %v1343 = vadd.f32 %v1311, %v1330
      %v1344 = vadd.f32 %v1312, %v1330
      %v1345 = vadd.f32 %v1313, %v1330
      %v1346 = vadd.f32 %v1314, %v1330
      %v1347 = vadd.f32 %v1315, %v1330
      %v1348 = vadd.f32 %v1316, %v1330
      %v1349 = vadd.f32 %v1317, %v1330
      %v1350 = vadd.f32 %v1318, %v1330
      %v1351 = vadd.f32 %v1319, %v1330
      %v1352 = vadd.f32 %v1320, %v1330
      %v1353 = vadd.f32 %v1321, %v1330
      %v1354 = vadd.f32 %v1322, %v1330
      %v1355 = vadd.f32 %v1323, %v1330
      %v1356 = vadd.f32 %v1324, %v1330
      %v1357 = vmax.f32 %v1332, 0.0
      %v1358 = vmax.f32 %v1333, 0.0
      %v1359 = vmax.f32 %v1334, 0.0
      %v1360 = vmax.f32 %v1335, 0.0
      %v1361 = vmax.f32 %v1336, 0.0
      %v1362 = vmax.f32 %v1337, 0.0
      %v1363 = vmax.f32 %v1338, 0.0
      %v1364 = vmax.f32 %v1339, 0.0
      %v1365 = vmax.f32 %v1340, 0.0
      %v1366 = vmax.f32 %v1341, 0.0
      %v1367 = vmax.f32 %v1342, 0.0
      %v1368 = vmax.f32 %v1343, 0.0
      %v1369 = vmax.f32 %v1344, 0.0
      %v1370 = vmax.f32 %v1345, 0.0
      %v1371 = vmax.f32 %v1346, 0.0
      %v1372 = vmax.f32 %v1347, 0.0
      %v1373 = vmax.f32 %v1348, 0.0
      %v1374 = vmax.f32 %v1349, 0.0
      %v1375 = vmax.f32 %v1350, 0.0
      %v1376 = vmax.f32 %v1351, 0.0
      %v1377 = vmax.f32 %v1352, 0.0
      %v1378 = vmax.f32 %v1353, 0.0
      %v1379 = vmax.f32 %v1354, 0.0
      %v1380 = vmax.f32 %v1355, 0.0
      %v1381 = vmax.f32 %v1356, 0.0
      %v1382 = vpack.c.bf16 %v1358, %v1357
      %v1383 = vpack.c.bf16 %v1360, %v1359
      %v1384 = vpack.c.bf16 %v1362, %v1361
      %v1385 = vpack.c.bf16 %v1364, %v1363
      %v1386 = vpack.c.bf16 %v1366, %v1365
      %v1387 = vpack.c.bf16 %v1368, %v1367
      %v1388 = vpack.c.bf16 %v1370, %v1369
      %v1389 = vpack.c.bf16 %v1372, %v1371
      %v1390 = vpack.c.bf16 %v1374, %v1373
      %v1391 = vpack.c.bf16 %v1376, %v1375
      %v1392 = vpack.c.bf16 %v1378, %v1377
      %v1393 = vpack.c.bf16 %v1380, %v1379
      %v1394 = vpack.c.bf16 %v1381, %v1381
      %v1408 = vunpack.c.l.b16 %v1382
      %v1409 = vunpack.c.h.b16 %v1382
      %v1410 = vunpack.c.l.b16 %v1383
      %v1411 = vunpack.c.h.b16 %v1383
      %v1412 = vunpack.c.l.b16 %v1384
      %v1413 = vunpack.c.h.b16 %v1384
      %v1414 = vunpack.c.l.b16 %v1385
      %v1415 = vunpack.c.h.b16 %v1385
      %v1416 = vunpack.c.l.b16 %v1386
      %v1417 = vunpack.c.h.b16 %v1386
      %v1418 = vunpack.c.l.b16 %v1387
      %v1419 = vunpack.c.h.b16 %v1387
      %v1420 = vunpack.c.l.b16 %v1388
      %v1421 = vunpack.c.h.b16 %v1388
      %v1422 = vunpack.c.l.b16 %v1389
      %v1423 = vunpack.c.h.b16 %v1389
      %v1424 = vunpack.c.l.b16 %v1390
      %v1425 = vunpack.c.h.b16 %v1390
      %v1426 = vunpack.c.l.b16 %v1391
      %v1427 = vunpack.c.h.b16 %v1391
      %v1428 = vunpack.c.l.b16 %v1392
      %v1429 = vunpack.c.h.b16 %v1392
      %v1430 = vunpack.c.l.b16 %v1393
      %v1431 = vunpack.c.h.b16 %v1393
      %v1432 = vunpack.c.l.b16 %v1394
      %v1433 = vpack.c.b16 %v1408, %v1408
      %v1434 = vpack.c.b16 %v1409, %v1409
      %v1435 = vpack.c.b16 %v1410, %v1410
      %v1436 = vpack.c.b16 %v1411, %v1411
      %v1437 = vpack.c.b16 %v1412, %v1412
      %v1438 = vpack.c.b16 %v1413, %v1413
      %v1439 = vpack.c.b16 %v1414, %v1414
      %v1440 = vpack.c.b16 %v1415, %v1415
      %v1441 = vpack.c.b16 %v1416, %v1416
      %v1442 = vpack.c.b16 %v1417, %v1417
      %v1443 = vpack.c.b16 %v1418, %v1418
      %v1444 = vpack.c.b16 %v1419, %v1419
      %v1445 = vpack.c.b16 %v1420, %v1420
      %v1446 = vpack.c.b16 %v1421, %v1421
      %v1447 = vpack.c.b16 %v1422, %v1422
      %v1448 = vpack.c.b16 %v1423, %v1423
      %v1449 = vpack.c.b16 %v1424, %v1424
      %v1450 = vpack.c.b16 %v1425, %v1425
      %v1451 = vpack.c.b16 %v1426, %v1426
      %v1452 = vpack.c.b16 %v1427, %v1427
      %v1453 = vpack.c.b16 %v1428, %v1428
      %v1454 = vpack.c.b16 %v1429, %v1429
      %v1455 = vpack.c.b16 %v1430, %v1430
      %v1456 = vpack.c.b16 %v1431, %v1431
      %v1457 = vpack.c.b16 %v1432, %v1432
      %vm1483 = vcmask 125952
      %1484 = vst.msk [vmem:[%s170] sm:$0xf] %vm1483, %v1433
      %1485 = vst.msk [vmem:[%s170 + $0x4] sm:$0xf] %vm1483, %v1434
      %1486 = vst.msk [vmem:[%s170 + $0x8] sm:$0xf] %vm1483, %v1435
      %1487 = vst.msk [vmem:[%s170 + $0xc] sm:$0xf] %vm1483, %v1436
      %1488 = vst.msk [vmem:[%s170 + $0x10] sm:$0xf] %vm1483, %v1437
      %1489 = vst.msk [vmem:[%s170 + $0x14] sm:$0xf] %vm1483, %v1438
      %1490 = vst.msk [vmem:[%s170 + $0x18] sm:$0xf] %vm1483, %v1439
      %1491 = vst.msk [vmem:[%s170 + $0x1c] sm:$0xf] %vm1483, %v1440
      %1492 = vst.msk [vmem:[%s170 + $0x20] sm:$0xf] %vm1483, %v1441
      %1493 = vst.msk [vmem:[%s170 + $0x24] sm:$0xf] %vm1483, %v1442
      %1494 = vst.msk [vmem:[%s170 + $0x28] sm:$0xf] %vm1483, %v1443
      %1495 = vst.msk [vmem:[%s170 + $0x2c] sm:$0xf] %vm1483, %v1444
      %1496 = vst.msk [vmem:[%s170 + $0x30] sm:$0xf] %vm1483, %v1445
      %1497 = vst.msk [vmem:[%s170 + $0x34] sm:$0xf] %vm1483, %v1446
      %1498 = vst.msk [vmem:[%s170 + $0x38] sm:$0xf] %vm1483, %v1447
      %1499 = vst.msk [vmem:[%s170 + $0x3c] sm:$0xf] %vm1483, %v1448
      %1500 = vst.msk [vmem:[%s170 + $0x40] sm:$0xf] %vm1483, %v1449
      %1501 = vst.msk [vmem:[%s170 + $0x44] sm:$0xf] %vm1483, %v1450
      %1502 = vst.msk [vmem:[%s170 + $0x48] sm:$0xf] %vm1483, %v1451
      %1503 = vst.msk [vmem:[%s170 + $0x4c] sm:$0xf] %vm1483, %v1452
      %1504 = vst.msk [vmem:[%s170 + $0x50] sm:$0xf] %vm1483, %v1453
      %1505 = vst.msk [vmem:[%s170 + $0x54] sm:$0xf] %vm1483, %v1454
      %1506 = vst.msk [vmem:[%s170 + $0x58] sm:$0xf] %vm1483, %v1455
      %1507 = vst.msk [vmem:[%s170 + $0x5c] sm:$0xf] %vm1483, %v1456
      %vm1508 = vcmask 123904
      %1509 = vst.msk [vmem:[%s170 + $0x60] sm:$0x3] %vm1508, %v1457
      %p1510 = scmp.lt.s32.totalorder %s14, 1
      %s1511 = scalar_select %p1510, %s14, 1
      %s1512 = smul.addr %s1511, 25
      %s1513 = smul.addr %s1512, 4
      %s1514 = scalar_lea.vmem %s3, %s1513
      // Predicated region
      $region33: #{classifier_forward.4} parent=31 // pred_check
        %p1515 = pneg %p100
      $region34: #{classifier_forward.4} parent=31 // pred_check_branch
        %1517 = sbr.rel (%p1515) target = $region36
      $region35: #{classifier_forward.4} parent=31 // pred_region
        _
      $region36: #{classifier_forward.4} parent=31 // pred_fallthru
        _
    $region32: #{classifier_forward.4} parent=5 // pred_fallthru
      _
    %p1518 = scmp.le.s32.totalorder 2, %s9
    // Predicated region
    $region37: #{classifier_forward.4} parent=5 // pred_check
      %p1519 = pneg %p1518
    $region38: #{classifier_forward.4} parent=5 // pred_check_branch
      %1521 = sbr.rel (%p1519) target = $region40
    $region39: #{classifier_forward.4} parent=5 // pred_region
      %s1522 = ssub.s32 %s9, 2
      // Predicated region
      $region41: #{classifier_forward.4} parent=39 // pred_check
        %p1523 = pneg %p106
      $region42: #{classifier_forward.4} parent=39 // pred_check_branch
        %1525 = sbr.rel (%p1523) target = $region44
      $region43: #{classifier_forward.4} parent=39 // pred_region
        %p1526 = scmp.lt.s32.totalorder %s15, 1
        %s1527 = scalar_select %p1526, %s15, 1
        %s1528 = smul.addr %s1527, 25
        %s1529 = smul.addr %s1528, 4
        %s1530 = scalar_lea.vmem %s3, %s1529
      $region44: #{classifier_forward.4} parent=39 // pred_fallthru
        _
    $region40: #{classifier_forward.4} parent=5 // pred_fallthru
      _
  $region6: #{classifier_forward.4} parent=0 // loop_footer
    %s13 = sadd.s32 1, %s9
  $region7: #{classifier_forward.4} parent=0 // loop_footer_branch
    %8 = sbr.rel target = $region3
  $region8: #{classifier_forward.4} parent=0 // loop_exit
    _

// kernel: classifier_forward.5
$region0: #{classifier_forward.5}
  #allocation0 [shape = 'u32[]', space=smem, size = 0x4, offset = 0x4, fixed_abs, tag = 'smem constant byte address 0x4 - core index']
  #allocation1 [shape = 'u32[144,128]{1,0:T(1,128)}', space=vmem, size = 0x12000, scoped, tag = 'internal scratch']
  %s0 = inlined_call_operand.vmem [shape: bf16[2,4,64,144], index: 0, kind: input, shape index: {}]
  %s1 = inlined_call_operand.vmem [shape: bf16[144,32], index: 1, kind: input, shape index: {}]
  %s2 = inlined_call_operand.vmem [shape: f32[1,32], index: 2, kind: input, shape index: {}]
  %s3 = inlined_call_operand.vmem [shape: bf16[2,64,32], index: 3, kind: output, shape index: {}]
  %s4 = sld [smem:[#allocation0]]
  $region45: #{classifier_forward.5} parent=0
    _
  %s6 = ssub.s32 1, %s4
  %s7 = scalar_select 0, %s6, %s4
  loop: start=0, step=1, limit=4
  $region2: #{classifier_forward.5} parent=0 // loop_pre_header
    _
  $region3: #{classifier_forward.5} parent=0 // loop_header
    %s9 = sphi 0, %s13
    %p10 = scmp.ge.s32.totalorder %s9, 4
    %s19 = sphi 0, %s21
    %s22 = sphi 0, %s19
    %s23 = sphi 0, %s22
    %s39 = sphi 0, %s23
    %s43 = sphi 0, %s43
    %s45 = sphi 0, %s43
    %s46 = sphi 0, %s45
    %s60 = sphi 0, %s46
    %s64 = sphi 0, %s64
    %s66 = sphi 0, %s64
    %s67 = sphi 0, %s66
    %s81 = sphi 0, %s67
    %s87 = sphi 0, %s89
    %s90 = sphi 0, %s87
    %s91 = sphi 0, %s90
    %s107 = sphi 0, %s91
  $region4: #{classifier_forward.5} parent=0 // loop_header_branch
    %12 = sbr.rel (%p10) target = $region8
  $region5: #{classifier_forward.5} parent=0 // loop_body
    %s14 = ssub.s32 %s9, 1
    %s15 = ssub.s32 %s9, 2
    %s16 = sadd.s32 %s9, 1
    %s17 = ssub.s32 %s9, %s16
    %p18 = scmp.eq.s32.totalorder %s17, 0
    %s20 = sadd.s32 %s19, 1
    %s21 = scalar_select %p18, %s19, %s20
    %p24 = pneg %p18
    %p25 = scmp.eq.s32.totalorder %s9, 1
    %p26 = por %p24, %p25
    %p27 = scmp.ne.s32.totalorder %s19, %s22
    %p28 = scmp.eq.s32.totalorder %s9, 0
    %p29 = por %p27, %p28
    %p30 = scmp.ne.s32.totalorder %s19, %s22
    %p31 = scmp.eq.s32.totalorder %s14, 1
    %p32 = por %p30, %p31
    %p33 = scmp.ne.s32.totalorder %s22, %s23
    %p34 = scmp.eq.s32.totalorder %s14, 0
    %p35 = por %p33, %p34
    %p36 = scmp.ne.s32.totalorder %s22, %s23
    %p37 = scmp.eq.s32.totalorder %s15, 1
    %p38 = por %p36, %p37
    %p40 = scmp.ne.s32.totalorder %s23, %s39
    %p41 = scmp.eq.s32.totalorder %s15, 0
    %p42 = por %p40, %p41
    %s44 = sadd.s32 %s43, 1
    %p47 = scmp.eq.s32.totalorder %s9, 1
    %p48 = scmp.ne.s32.totalorder %s43, %s45
    %p49 = scmp.eq.s32.totalorder %s9, 0
    %p50 = por %p48, %p49
    %p51 = scmp.ne.s32.totalorder %s43, %s45
    %p52 = scmp.eq.s32.totalorder %s14, 1
    %p53 = por %p51, %p52
    %p54 = scmp.ne.s32.totalorder %s45, %s46
    %p55 = scmp.eq.s32.totalorder %s14, 0
    %p56 = por %p54, %p55
    %p57 = scmp.ne.s32.totalorder %s45, %s46
    %p58 = scmp.eq.s32.totalorder %s15, 1
    %p59 = por %p57, %p58
    %p61 = scmp.ne.s32.totalorder %s46, %s60
    %p62 = scmp.eq.s32.totalorder %s15, 0
    %p63 = por %p61, %p62
    %s65 = sadd.s32 %s64, 1
    %p68 = scmp.eq.s32.totalorder %s9, 1
    %p69 = scmp.ne.s32.totalorder %s64, %s66
    %p70 = scmp.eq.s32.totalorder %s9, 0
    %p71 = por %p69, %p70
    %p72 = scmp.ne.s32.totalorder %s64, %s66
    %p73 = scmp.eq.s32.totalorder %s14, 1
    %p74 = por %p72, %p73
    %p75 = scmp.ne.s32.totalorder %s66, %s67
    %p76 = scmp.eq.s32.totalorder %s14, 0
    %p77 = por %p75, %p76
    %p78 = scmp.ne.s32.totalorder %s66, %s67
    %p79 = scmp.eq.s32.totalorder %s15, 1
    %p80 = por %p78, %p79
    %p82 = scmp.ne.s32.totalorder %s67, %s81
    %p83 = scmp.eq.s32.totalorder %s15, 0
    %p84 = por %p82, %p83
    %s85 = ssub.s32 %s9, %s16
    %p86 = scmp.eq.s32.totalorder %s85, 0
    %s88 = sadd.s32 %s87, 1
    %s89 = scalar_select %p86, %s87, %s88
    %p92 = pneg %p86
    %p93 = scmp.eq.s32.totalorder %s9, 1
    %p94 = por %p92, %p93
    %p95 = scmp.ne.s32.totalorder %s87, %s90
    %p96 = scmp.eq.s32.totalorder %s9, 0
    %p97 = por %p95, %p96
    %p98 = scmp.ne.s32.totalorder %s87, %s90
    %p99 = scmp.eq.s32.totalorder %s14, 1
    %p100 = por %p98, %p99
    %p101 = scmp.ne.s32.totalorder %s90, %s91
    %p102 = scmp.eq.s32.totalorder %s14, 0
    %p103 = por %p101, %p102
    %p104 = scmp.ne.s32.totalorder %s90, %s91
    %p105 = scmp.eq.s32.totalorder %s15, 1
    %p106 = por %p104, %p105
    %p108 = scmp.ne.s32.totalorder %s91, %s107
    %p109 = scmp.eq.s32.totalorder %s15, 0
    %p110 = por %p108, %p109
    %p111 = scmp.le.s32.totalorder 1, %s9
    %p112 = scmp.lt.s32.totalorder %s9, 3
    %p113 = pnand %p111, %p112
    %p114 = pneg %p113
    // Predicated region
    $region9: #{classifier_forward.5} parent=5 // pred_check
      _
    $region10: #{classifier_forward.5} parent=5 // pred_check_branch
      %116 = sbr.rel (%p113) target = $region12
    $region11: #{classifier_forward.5} parent=5 // pred_region
      %s117 = ssub.s32 %s9, 1
      // Predicated region
      $region13: #{classifier_forward.5} parent=11 // pred_check
        %p118 = pneg %p56
      $region14: #{classifier_forward.5} parent=11 // pred_check_branch
        %120 = sbr.rel (%p118) target = $region16
      $region15: #{classifier_forward.5} parent=11 // pred_region
        _
      $region16: #{classifier_forward.5} parent=11 // pred_fallthru
        _
      // Predicated region
      $region17: #{classifier_forward.5} parent=11 // pred_check
        %p121 = pneg %p77
      $region18: #{classifier_forward.5} parent=11 // pred_check_branch
        %123 = sbr.rel (%p121) target = $region20
      $region19: #{classifier_forward.5} parent=11 // pred_region
        _
      $region20: #{classifier_forward.5} parent=11 // pred_fallthru
        _
    $region12: #{classifier_forward.5} parent=5 // pred_fallthru
      _
    %p124 = scmp.lt.s32.totalorder %s9, 2
    // Predicated region
    $region21: #{classifier_forward.5} parent=5 // pred_check
      %p125 = pneg %p124
    $region22: #{classifier_forward.5} parent=5 // pred_check_branch
      %127 = sbr.rel (%p125) target = $region24
    $region23: #{classifier_forward.5} parent=5 // pred_region
      // Predicated region
      $region25: #{classifier_forward.5} parent=23 // pred_check
        %p128 = pneg %p29
      $region26: #{classifier_forward.5} parent=23 // pred_check_branch
        %130 = sbr.rel (%p128) target = $region28
      $region27: #{classifier_forward.5} parent=23 // pred_region
        %p131 = scmp.lt.s32.totalorder %s9, 1
        %s132 = scalar_select %p131, %s9, 1
        %s133 = smul.addr %s132, 64
        %s134 = smul.addr %s133, 4
        %s135 = scalar_lea.vmem %s0, %s134
      $region28: #{classifier_forward.5} parent=23 // pred_fallthru
        _
    $region24: #{classifier_forward.5} parent=5 // pred_fallthru
      _
    %p136 = scmp.le.s32.totalorder 1, %s9
    %p137 = scmp.lt.s32.totalorder %s9, 3
    %p138 = pnand %p136, %p137
    %p139 = pneg %p138
    // Predicated region
    $region29: #{classifier_forward.5} parent=5 // pred_check
      _
    $region30: #{classifier_forward.5} parent=5 // pred_check_branch
      %141 = sbr.rel (%p138) target = $region32
    $region31: #{classifier_forward.5} parent=5 // pred_region
      %s142 = ssub.s32 %s9, 1
      %p143 = scmp.lt.s32.totalorder %s14, 1
      %s144 = scalar_select %p143, %s14, 1
      %s145 = smul.addr %s144, 64
      %s146 = smul.addr %s145, 4
      %s147 = scalar_lea.vmem %s0, %s146
      %p148 = pneg %p35
      %p149 = pneg %p32
      %p150 = pneg %p56
      %p151 = pneg %p53
      %p152 = pneg %p77
      %p153 = pneg %p74
      %p154 = pneg %p103
      %p155 = pneg %p100
      %p156 = scmp.lt.s32.totalorder %s14, 1
      %s157 = scalar_select %p156, %s14, 1
      %s158 = smul.addr %s157, 8
      %s159 = smul.addr %s158, 4
      %s160 = scalar_lea.vmem %s3, %s159
      %p161 = scmp.lt.s32.totalorder %s14, 1
      %s162 = scalar_select %p161, %s14, 1
      %s163 = smul.addr %s162, 64
      %s164 = smul.addr %s163, 4
      %s165 = scalar_lea.vmem %s0, %s164
      %p166 = scmp.lt.s32.totalorder %s14, 1
      %s167 = scalar_select %p166, %s14, 1
      %s168 = smul.addr %s167, 8
      %s169 = smul.addr %s168, 4
      %s170 = scalar_lea.vmem %s3, %s169
      %v172 = vld [vmem:[%s1] sm:$0xf]
      %v173 = vld [vmem:[%s1 + $0x4] sm:$0xf]
      %v174 = vld [vmem:[%s1 + $0x8] sm:$0xf]
      %v175 = vld [vmem:[%s1 + $0xc] sm:$0xf]
      %v176 = vld [vmem:[%s1 + $0x10] sm:$0xf]
      %v177 = vld [vmem:[%s1 + $0x14] sm:$0xf]
      %v178 = vld [vmem:[%s1 + $0x18] sm:$0xf]
      %v179 = vld [vmem:[%s1 + $0x1c] sm:$0xf]
      %v180 = vld [vmem:[%s1 + $0x20] sm:$0xf]
      %v181 = vld [vmem:[%s1 + $0x24] sm:$0xf]
      %v182 = vld [vmem:[%s1 + $0x28] sm:$0xf]
      %v183 = vld [vmem:[%s1 + $0x2c] sm:$0xf]
      %v184 = vld [vmem:[%s1 + $0x30] sm:$0xf]
      %v185 = vld [vmem:[%s1 + $0x34] sm:$0xf]
      %v186 = vld [vmem:[%s1 + $0x38] sm:$0xf]
      %v187 = vld [vmem:[%s1 + $0x3c] sm:$0xf]
      %v188 = vld [vmem:[%s1 + $0x40] sm:$0xf]
      %v189 = vld [vmem:[%s1 + $0x44] sm:$0xf]
      %v190 = vld [vmem:[%s165] sm:$0xff]
      %v191 = vld [vmem:[%s165 + $0x8] sm:$0xff]
      %v192 = vld [vmem:[%s165 + $0x10] sm:$0xff]
      %v193 = vld [vmem:[%s165 + $0x18] sm:$0xff]
      %v194 = vld [vmem:[%s165 + $0x20] sm:$0xff]
      %v195 = vld [vmem:[%s165 + $0x28] sm:$0xff]
      %v196 = vld [vmem:[%s165 + $0x30] sm:$0xff]
      %v197 = vld [vmem:[%s165 + $0x38] sm:$0xff]
      %v206 = vunpack.c.l.b16 %v190
      %v207 = vunpack.c.h.b16 %v190
      %v208 = vunpack.c.l.b16 %v191
      %v209 = vunpack.c.h.b16 %v191
      %v210 = vunpack.c.l.b16 %v192
      %v211 = vunpack.c.h.b16 %v192
      %v212 = vunpack.c.l.b16 %v193
      %v213 = vunpack.c.h.b16 %v193
      %v214 = vunpack.c.l.b16 %v194
      %v215 = vunpack.c.h.b16 %v194
      %v216 = vunpack.c.l.b16 %v195
      %v217 = vunpack.c.h.b16 %v195
      %v218 = vunpack.c.l.b16 %v196
      %v219 = vunpack.c.h.b16 %v196
      %v220 = vunpack.c.l.b16 %v197
      %v221 = vunpack.c.h.b16 %v197
      %v222 = vpack.c.b16 %v208, %v206
      %v223 = vpack.c.b16 %v209, %v207
      %v224 = vpack.c.b16 %v212, %v210
      %v225 = vpack.c.b16 %v213, %v211
      %v226 = vpack.c.b16 %v216, %v214
      %v227 = vpack.c.b16 %v217, %v215
      %v228 = vpack.c.b16 %v220, %v218
      %v229 = vpack.c.b16 %v221, %v219
      %v252 = vunpack.c.l.b16 %v172
      %v253 = vunpack.c.l.b16 %v173
      %v254 = vunpack.c.l.b16 %v174
      %v255 = vunpack.c.l.b16 %v175
      %v256 = vunpack.c.l.b16 %v176
      %v257 = vunpack.c.l.b16 %v177
      %v258 = vunpack.c.l.b16 %v178
      %v259 = vunpack.c.l.b16 %v179
      %v260 = vunpack.c.l.b16 %v180
      %v261 = vunpack.c.l.b16 %v181
      %v262 = vunpack.c.l.b16 %v182
      %v263 = vunpack.c.l.b16 %v183
      %v264 = vunpack.c.l.b16 %v184
      %v265 = vunpack.c.l.b16 %v185
      %v266 = vunpack.c.l.b16 %v186
      %v267 = vunpack.c.l.b16 %v187
      %v268 = vunpack.c.l.b16 %v188
      %v269 = vunpack.c.l.b16 %v189
      %v270 = vpack.c.b16 %v253, %v252
      %v271 = vpack.c.b16 %v255, %v254
      %v272 = vpack.c.b16 %v257, %v256
      %v273 = vpack.c.b16 %v259, %v258
      %v274 = vpack.c.b16 %v261, %v260
      %v275 = vpack.c.b16 %v263, %v262
      %v276 = vpack.c.b16 %v265, %v264
      %v277 = vpack.c.b16 %v267, %v266
      %v278 = vpack.c.b16 %v269, %v268
      %vm288 = vcmask 130048
      %v290 = vsel %vm288, %v223, 0
      %v293 = vsel %vm288, %v225, 0
      %v296 = vsel %vm288, %v227, 0
      %v299 = vsel %vm288, %v229, 0
      %301 = vmatprep.subr.bf16.mxu0 0
      %302 = vmatpush1.bf16.msra.mxu0 %v270
      %303 = vmatprep.subr.bf16.mxu0 0
      %304 = vmatpush1.bf16.msra.mxu0 %v271
      %305 = vmatprep.subr.bf16.mxu0 0
      %306 = vmatpush1.bf16.msra.mxu0 %v272
      %307 = vmatprep.subr.bf16.mxu0 0
      %308 = vmatpush1.bf16.msra.mxu0 %v273
      %309 = vmatprep.subr.bf16.mxu0 0
      %310 = vmatpush1.bf16.msra.mxu0 %v274
      %311 = vmatprep.subr.bf16.mxu0 0
      %312 = vmatpush1.bf16.msra.mxu0 %v275
      %313 = vmatprep.subr.bf16.mxu0 0
      %314 = vmatpush1.bf16.msra.mxu0 %v276
      %315 = vmatprep.subr.bf16.mxu0 0
      %316 = vmatpush1.bf16.msra.mxu0 %v277
      %317 = vmatprep.subr.bf16.mxu0 0
      %318 = vmatpush1.bf16.msra.mxu0 %v278
      %319 = vmatprep.subr.bf16.mxu0 0
      %320 = vmatpush1.bf16.msra.mxu0 0
      %321 = vmatprep.subr.bf16.mxu0 0
      %322 = vmatpush1.bf16.msra.mxu0 0
      %323 = vmatprep.subr.bf16.mxu0 0
      %324 = vmatpush1.bf16.msra.mxu0 0
      %325 = vmatprep.subr.bf16.mxu0 0
      %326 = vmatpush1.bf16.msra.mxu0 0
      %327 = vmatprep.subr.bf16.mxu0 0
      %328 = vmatpush1.bf16.msra.mxu0 0
      %329 = vmatprep.subr.bf16.mxu0 0
      %330 = vmatpush1.bf16.msra.mxu0 0
      %331 = vmatprep.subr.bf16.mxu0 0
      %332 = vmatpush1.bf16.msra.mxu0 0
      %333 = vmatprep.mubr.bf16.mxu0 %v290
      %334 = vmatmul.mubr.bf16.gmra.mrb[0].mxu0 %v222
      %v335 = vpop.f32.mrb[0].mxu0
      %v336 = vadd.f32 0.0, %v335
      %v337 = vpop.f32.mrb[0].mxu0
      %v338 = vpop.f32.mrb[0].mxu0
      %v339 = vadd.f32 0.0, %v338
      %v340 = vpop.f32.mrb[0].mxu0
      %341 = vmatprep.mubr.bf16.mxu0 %v293
      %342 = vmatmul.mubr.bf16.gmra.mrb[0].mxu0 %v224
      %v343 = vpop.f32.mrb[0].mxu0
      %v344 = vadd.f32 0.0, %v343
      %v345 = vpop.f32.mrb[0].mxu0
      %v346 = vpop.f32.mrb[0].mxu0
      %v347 = vadd.f32 0.0, %v346
      %v348 = vpop.f32.mrb[0].mxu0
      %349 = vmatprep.mubr.bf16.mxu0 %v296
      %350 = vmatmul.mubr.bf16.gmra.mrb[0].mxu0 %v226
      %v351 = vpop.f32.mrb[0].mxu0
      %v352 = vadd.f32 0.0, %v351
      %v353 = vpop.f32.mrb[0].mxu0
      %v354 = vpop.f32.mrb[0].mxu0
      %v355 = vadd.f32 0.0, %v354
      %v356 = vpop.f32.mrb[0].mxu0
      %357 = vmatprep.mubr.bf16.mxu0 %v299
      %358 = vmatmul.mubr.bf16.gmra.mrb[0].mxu0 %v228
      %v359 = vpop.f32.mrb[0].mxu0
      %v360 = vadd.f32 0.0, %v359
      %v361 = vpop.f32.mrb[0].mxu0
      %v362 = vpop.f32.mrb[0].mxu0
      %v363 = vadd.f32 0.0, %v362
      %v364 = vpop.f32.mrb[0].mxu0
      %365 = vdwg.mxu0
      %s366 = scalar_lea.vmem %s165, 64
      %v367 = vld [vmem:[%s366] sm:$0xff]
      %v368 = vld [vmem:[%s366 + $0x8] sm:$0xff]
      %v369 = vld [vmem:[%s366 + $0x10] sm:$0xff]
      %v370 = vld [vmem:[%s366 + $0x18] sm:$0xff]
      %v371 = vld [vmem:[%s366 + $0x20] sm:$0xff]
      %v372 = vld [vmem:[%s366 + $0x28] sm:$0xff]
      %v373 = vld [vmem:[%s366 + $0x30] sm:$0xff]
      %v374 = vld [vmem:[%s366 + $0x38] sm:$0xff]
      %v383 = vunpack.c.l.b16 %v367
      %v384 = vunpack.c.h.b16 %v367
      %v385 = vunpack.c.l.b16 %v368
      %v386 = vunpack.c.h.b16 %v368
      %v387 = vunpack.c.l.b16 %v369
      %v388 = vunpack.c.h.b16 %v369
      %v389 = vunpack.c.l.b16 %v370
      %v390 = vunpack.c.h.b16 %v370
      %v391 = vunpack.c.l.b16 %v371
      %v392 = vunpack.c.h.b16 %v371
      %v393 = vunpack.c.l.b16 %v372
      %v394 = vunpack.c.h.b16 %v372
      %v395 = vunpack.c.l.b16 %v373
      %v396 = vunpack.c.h.b16 %v373
      %v397 = vunpack.c.l.b16 %v374
      %v398 = vunpack.c.h.b16 %v374
      %v399 = vpack.c.b16 %v385, %v383
      %v400 = vpack.c.b16 %v386, %v384
      %v401 = vpack.c.b16 %v389, %v387
      %v402 = vpack.c.b16 %v390, %v388
      %v403 = vpack.c.b16 %v393, %v391
      %v404 = vpack.c.b16 %v394, %v392
      %v405 = vpack.c.b16 %v397, %v395
      %v406 = vpack.c.b16 %v398, %v396
      %v412 = vsel %vm288, %v400, 0
      %v415 = vsel %vm288, %v402, 0
      %v418 = vsel %vm288, %v404, 0
      %v421 = vsel %vm288, %v406, 0
      %423 = vmatprep.subr.bf16.mxu0 0
      %424 = vmatpush1.bf16.msra.mxu0 %v270
      %425 = vmatprep.subr.bf16.mxu0 0
      %426 = vmatpush1.bf16.msra.mxu0 %v271
      %427 = vmatprep.subr.bf16.mxu0 0
      %428 = vmatpush1.bf16.msra.mxu0 %v272
      %429 = vmatprep.subr.bf16.mxu0 0
      %430 = vmatpush1.bf16.msra.mxu0 %v273
      %431 = vmatprep.subr.bf16.mxu0 0
      %432 = vmatpush1.bf16.msra.mxu0 %v274
      %433 = vmatprep.subr.bf16.mxu0 0
      %434 = vmatpush1.bf16.msra.mxu0 %v275
      %435 = vmatprep.subr.bf16.mxu0 0
      %436 = vmatpush1.bf16.msra.mxu0 %v276
      %437 = vmatprep.subr.bf16.mxu0 0
      %438 = vmatpush1.bf16.msra.mxu0 %v277
      %439 = vmatprep.subr.bf16.mxu0 0
      %440 = vmatpush1.bf16.msra.mxu0 %v278
      %441 = vmatprep.subr.bf16.mxu0 0
      %442 = vmatpush1.bf16.msra.mxu0 0
      %443 = vmatprep.subr.bf16.mxu0 0
      %444 = vmatpush1.bf16.msra.mxu0 0
      %445 = vmatprep.subr.bf16.mxu0 0
      %446 = vmatpush1.bf16.msra.mxu0 0
      %447 = vmatprep.subr.bf16.mxu0 0
      %448 = vmatpush1.bf16.msra.mxu0 0
      %449 = vmatprep.subr.bf16.mxu0 0
      %450 = vmatpush1.bf16.msra.mxu0 0
      %451 = vmatprep.subr.bf16.mxu0 0
      %452 = vmatpush1.bf16.msra.mxu0 0
      %453 = vmatprep.subr.bf16.mxu0 0
      %454 = vmatpush1.bf16.msra.mxu0 0
      %455 = vmatprep.mubr.bf16.mxu0 %v412
      %456 = vmatmul.mubr.bf16.gmra.mrb[0].mxu0 %v399
      %v457 = vpop.f32.mrb[0].mxu0
      %v458 = vadd.f32 0.0, %v457
      %v459 = vpop.f32.mrb[0].mxu0
      %v460 = vpop.f32.mrb[0].mxu0
      %v461 = vadd.f32 0.0, %v460
      %v462 = vpop.f32.mrb[0].mxu0
      %463 = vmatprep.mubr.bf16.mxu0 %v415
      %464 = vmatmul.mubr.bf16.gmra.mrb[0].mxu0 %v401
      %v465 = vpop.f32.mrb[0].mxu0
      %v466 = vadd.f32 0.0, %v465
      %v467 = vpop.f32.mrb[0].mxu0
      %v468 = vpop.f32.mrb[0].mxu0
      %v469 = vadd.f32 0.0, %v468
      %v470 = vpop.f32.mrb[0].mxu0
      %471 = vmatprep.mubr.bf16.mxu0 %v418
      %472 = vmatmul.mubr.bf16.gmra.mrb[0].mxu0 %v403
      %v473 = vpop.f32.mrb[0].mxu0
      %v474 = vadd.f32 0.0, %v473
      %v475 = vpop.f32.mrb[0].mxu0
      %v476 = vpop.f32.mrb[0].mxu0
      %v477 = vadd.f32 0.0, %v476
      %v478 = vpop.f32.mrb[0].mxu0
      %479 = vmatprep.mubr.bf16.mxu0 %v421
      %480 = vmatmul.mubr.bf16.gmra.mrb[0].mxu0 %v405
      %v481 = vpop.f32.mrb[0].mxu0
      %v482 = vadd.f32 0.0, %v481
      %v483 = vpop.f32.mrb[0].mxu0
      %v484 = vpop.f32.mrb[0].mxu0
      %v485 = vadd.f32 0.0, %v484
      %v486 = vpop.f32.mrb[0].mxu0
      %487 = vdwg.mxu0
      %v488 = vmax.f32 %v336, %v458
      %v489 = vmax.f32 %v339, %v461
      %v490 = vmax.f32 %v344, %v466
      %v491 = vmax.f32 %v347, %v469
      %v492 = vmax.f32 %v352, %v474
      %v493 = vmax.f32 %v355, %v477
      %v494 = vmax.f32 %v360, %v482
      %v495 = vmax.f32 %v363, %v485
      %s496 = scalar_lea.vmem %s165, 128
      %v497 = vld [vmem:[%s496] sm:$0xff]
      %v498 = vld [vmem:[%s496 + $0x8] sm:$0xff]
      %v499 = vld [vmem:[%s496 + $0x10] sm:$0xff]
      %v500 = vld [vmem:[%s496 + $0x18] sm:$0xff]
      %v501 = vld [vmem:[%s496 + $0x20] sm:$0xff]
      %v502 = vld [vmem:[%s496 + $0x28] sm:$0xff]
      %v503 = vld [vmem:[%s496 + $0x30] sm:$0xff]
      %v504 = vld [vmem:[%s496 + $0x38] sm:$0xff]
      %v513 = vunpack.c.l.b16 %v497
      %v514 = vunpack.c.h.b16 %v497
      %v515 = vunpack.c.l.b16 %v498
      %v516 = vunpack.c.h.b16 %v498
      %v517 = vunpack.c.l.b16 %v499
      %v518 = vunpack.c.h.b16 %v499
      %v519 = vunpack.c.l.b16 %v500
      %v520 = vunpack.c.h.b16 %v500
      %v521 = vunpack.c.l.b16 %v501
      %v522 = vunpack.c.h.b16 %v501
      %v523 = vunpack.c.l.b16 %v502
      %v524 = vunpack.c.h.b16 %v502
      %v525 = vunpack.c.l.b16 %v503
      %v526 = vunpack.c.h.b16 %v503
      %v527 = vunpack.c.l.b16 %v504
      %v528 = vunpack.c.h.b16 %v504
      %v529 = vpack.c.b16 %v515, %v513
      %v530 = vpack.c.b16 %v516, %v514
      %v531 = vpack.c.b16 %v519, %v517
      %v532 = vpack.c.b16 %v520, %v518
      %v533 = vpack.c.b16 %v523, %v521
      %v534 = vpack.c.b16 %v524, %v522
      %v535 = vpack.c.b16 %v527, %v525
      %v536 = vpack.c.b16 %v528, %v526
      %v542 = vsel %vm288, %v530, 0
      %v545 = vsel %vm288, %v532, 0
      %v548 = vsel %vm288, %v534, 0
      %v551 = vsel %vm288, %v536, 0
      %553 = vmatprep.subr.bf16.mxu0 0
      %554 = vmatpush1.bf16.msra.mxu0 %v270
      %555 = vmatprep.subr.bf16.mxu0 0
      %556 = vmatpush1.bf16.msra.mxu0 %v271
      %557 = vmatprep.subr.bf16.mxu0 0
      %558 = vmatpush1.bf16.msra.mxu0 %v272
      %559 = vmatprep.subr.bf16.mxu0 0
      %560 = vmatpush1.bf16.msra.mxu0 %v273
      %561 = vmatprep.subr.bf16.mxu0 0
      %562 = vmatpush1.bf16.msra.mxu0 %v274
      %563 = vmatprep.subr.bf16.mxu0 0
      %564 = vmatpush1.bf16.msra.mxu0 %v275
      %565 = vmatprep.subr.bf16.mxu0 0
      %566 = vmatpush1.bf16.msra.mxu0 %v276
      %567 = vmatprep.subr.bf16.mxu0 0
      %568 = vmatpush1.bf16.msra.mxu0 %v277
      %569 = vmatprep.subr.bf16.mxu0 0
      %570 = vmatpush1.bf16.msra.mxu0 %v278
      %571 = vmatprep.subr.bf16.mxu0 0
      %572 = vmatpush1.bf16.msra.mxu0 0
      %573 = vmatprep.subr.bf16.mxu0 0
      %574 = vmatpush1.bf16.msra.mxu0 0
      %575 = vmatprep.subr.bf16.mxu0 0
      %576 = vmatpush1.bf16.msra.mxu0 0
      %577 = vmatprep.subr.bf16.mxu0 0
      %578 = vmatpush1.bf16.msra.mxu0 0
      %579 = vmatprep.subr.bf16.mxu0 0
      %580 = vmatpush1.bf16.msra.mxu0 0
      %581 = vmatprep.subr.bf16.mxu0 0
      %582 = vmatpush1.bf16.msra.mxu0 0
      %583 = vmatprep.subr.bf16.mxu0 0
      %584 = vmatpush1.bf16.msra.mxu0 0
      %585 = vmatprep.mubr.bf16.mxu0 %v542
      %586 = vmatmul.mubr.bf16.gmra.mrb[0].mxu0 %v529
      %v587 = vpop.f32.mrb[0].mxu0
      %v588 = vadd.f32 0.0, %v587
      %v589 = vpop.f32.mrb[0].mxu0
      %v590 = vpop.f32.mrb[0].mxu0
      %v591 = vadd.f32 0.0, %v590
      %v592 = vpop.f32.mrb[0].mxu0
      %593 = vmatprep.mubr.bf16.mxu0 %v545
      %594 = vmatmul.mubr.bf16.gmra.mrb[0].mxu0 %v531
      %v595 = vpop.f32.mrb[0].mxu0
      %v596 = vadd.f32 0.0, %v595
      %v597 = vpop.f32.mrb[0].mxu0
      %v598 = vpop.f32.mrb[0].mxu0
      %v599 = vadd.f32 0.0, %v598
      %v600 = vpop.f32.mrb[0].mxu0
      %601 = vmatprep.mubr.bf16.mxu0 %v548
      %602 = vmatmul.mubr.bf16.gmra.mrb[0].mxu0 %v533
      %v603 = vpop.f32.mrb[0].mxu0
      %v604 = vadd.f32 0.0, %v603
      %v605 = vpop.f32.mrb[0].mxu0
      %v606 = vpop.f32.mrb[0].mxu0
      %v607 = vadd.f32 0.0, %v606
      %v608 = vpop.f32.mrb[0].mxu0
      %609 = vmatprep.mubr.bf16.mxu0 %v551
      %610 = vmatmul.mubr.bf16.gmra.mrb[0].mxu0 %v535
      %v611 = vpop.f32.mrb[0].mxu0
      %v612 = vadd.f32 0.0, %v611
      %v613 = vpop.f32.mrb[0].mxu0
      %v614 = vpop.f32.mrb[0].mxu0
      %v615 = vadd.f32 0.0, %v614
      %v616 = vpop.f32.mrb[0].mxu0
      %617 = vdwg.mxu0
      %v618 = vmax.f32 %v488, %v588
      %v619 = vmax.f32 %v489, %v591
      %v620 = vmax.f32 %v490, %v596
      %v621 = vmax.f32 %v491, %v599
      %v622 = vmax.f32 %v492, %v604
      %v623 = vmax.f32 %v493, %v607
      %v624 = vmax.f32 %v494, %v612
      %v625 = vmax.f32 %v495, %v615
      %s626 = scalar_lea.vmem %s165, 192
      %v627 = vld [vmem:[%s626] sm:$0xff]
      %v628 = vld [vmem:[%s626 + $0x8] sm:$0xff]
      %v629 = vld [vmem:[%s626 + $0x10] sm:$0xff]
      %v630 = vld [vmem:[%s626 + $0x18] sm:$0xff]
      %v631 = vld [vmem:[%s626 + $0x20] sm:$0xff]
      %v632 = vld [vmem:[%s626 + $0x28] sm:$0xff]
      %v633 = vld [vmem:[%s626 + $0x30] sm:$0xff]
      %v634 = vld [vmem:[%s626 + $0x38] sm:$0xff]
      %v643 = vunpack.c.l.b16 %v627
      %v644 = vunpack.c.h.b16 %v627
      %v645 = vunpack.c.l.b16 %v628
      %v646 = vunpack.c.h.b16 %v628
      %v647 = vunpack.c.l.b16 %v629
      %v648 = vunpack.c.h.b16 %v629
      %v649 = vunpack.c.l.b16 %v630
      %v650 = vunpack.c.h.b16 %v630
      %v651 = vunpack.c.l.b16 %v631
      %v652 = vunpack.c.h.b16 %v631
      %v653 = vunpack.c.l.b16 %v632
      %v654 = vunpack.c.h.b16 %v632
      %v655 = vunpack.c.l.b16 %v633
      %v656 = vunpack.c.h.b16 %v633
      %v657 = vunpack.c.l.b16 %v634
      %v658 = vunpack.c.h.b16 %v634
      %v659 = vpack.c.b16 %v645, %v643
      %v660 = vpack.c.b16 %v646, %v644
      %v661 = vpack.c.b16 %v649, %v647
      %v662 = vpack.c.b16 %v650, %v648
      %v663 = vpack.c.b16 %v653, %v651
      %v664 = vpack.c.b16 %v654, %v652
      %v665 = vpack.c.b16 %v657, %v655
      %v666 = vpack.c.b16 %v658, %v656
      %v672 = vsel %vm288, %v660, 0
      %v675 = vsel %vm288, %v662, 0
      %v678 = vsel %vm288, %v664, 0
      %v681 = vsel %vm288, %v666, 0
      %683 = vmatprep.subr.bf16.mxu0 0
      %684 = vmatpush1.bf16.msra.mxu0 %v270
      %685 = vmatprep.subr.bf16.mxu0 0
      %686 = vmatpush1.bf16.msra.mxu0 %v271
      %687 = vmatprep.subr.bf16.mxu0 0
      %688 = vmatpush1.bf16.msra.mxu0 %v272
      %689 = vmatprep.subr.bf16.mxu0 0
      %690 = vmatpush1.bf16.msra.mxu0 %v273
      %691 = vmatprep.subr.bf16.mxu0 0
      %692 = vmatpush1.bf16.msra.mxu0 %v274
      %693 = vmatprep.subr.bf16.mxu0 0
      %694 = vmatpush1.bf16.msra.mxu0 %v275
      %695 = vmatprep.subr.bf16.mxu0 0
      %696 = vmatpush1.bf16.msra.mxu0 %v276
      %697 = vmatprep.subr.bf16.mxu0 0
      %698 = vmatpush1.bf16.msra.mxu0 %v277
      %699 = vmatprep.subr.bf16.mxu0 0
      %700 = vmatpush1.bf16.msra.mxu0 %v278
      %701 = vmatprep.subr.bf16.mxu0 0
      %702 = vmatpush1.bf16.msra.mxu0 0
      %703 = vmatprep.subr.bf16.mxu0 0
      %704 = vmatpush1.bf16.msra.mxu0 0
      %705 = vmatprep.subr.bf16.mxu0 0
      %706 = vmatpush1.bf16.msra.mxu0 0
      %707 = vmatprep.subr.bf16.mxu0 0
      %708 = vmatpush1.bf16.msra.mxu0 0
      %709 = vmatprep.subr.bf16.mxu0 0
      %710 = vmatpush1.bf16.msra.mxu0 0
      %711 = vmatprep.subr.bf16.mxu0 0
      %712 = vmatpush1.bf16.msra.mxu0 0
      %713 = vmatprep.subr.bf16.mxu0 0
      %714 = vmatpush1.bf16.msra.mxu0 0
      %715 = vmatprep.mubr.bf16.mxu0 %v672
      %716 = vmatmul.mubr.bf16.gmra.mrb[0].mxu0 %v659
      %v717 = vpop.f32.mrb[0].mxu0
      %v718 = vadd.f32 0.0, %v717
      %v719 = vpop.f32.mrb[0].mxu0
      %v720 = vpop.f32.mrb[0].mxu0
      %v721 = vadd.f32 0.0, %v720
      %v722 = vpop.f32.mrb[0].mxu0
      %723 = vmatprep.mubr.bf16.mxu0 %v675
      %724 = vmatmul.mubr.bf16.gmra.mrb[0].mxu0 %v661
      %v725 = vpop.f32.mrb[0].mxu0
      %v726 = vadd.f32 0.0, %v725
      %v727 = vpop.f32.mrb[0].mxu0
      %v728 = vpop.f32.mrb[0].mxu0
      %v729 = vadd.f32 0.0, %v728
      %v730 = vpop.f32.mrb[0].mxu0
      %731 = vmatprep.mubr.bf16.mxu0 %v678
      %732 = vmatmul.mubr.bf16.gmra.mrb[0].mxu0 %v663
      %v733 = vpop.f32.mrb[0].mxu0
      %v734 = vadd.f32 0.0, %v733
      %v735 = vpop.f32.mrb[0].mxu0
      %v736 = vpop.f32.mrb[0].mxu0
      %v737 = vadd.f32 0.0, %v736
      %v738 = vpop.f32.mrb[0].mxu0
      %739 = vmatprep.mubr.bf16.mxu0 %v681
      %740 = vmatmul.mubr.bf16.gmra.mrb[0].mxu0 %v665
      %v741 = vpop.f32.mrb[0].mxu0
      %v742 = vadd.f32 0.0, %v741
      %v743 = vpop.f32.mrb[0].mxu0
      %v744 = vpop.f32.mrb[0].mxu0
      %v745 = vadd.f32 0.0, %v744
      %v746 = vpop.f32.mrb[0].mxu0
      %747 = vdwg.mxu0
      %v748 = vmax.f32 %v618, %v718
      %v749 = vmax.f32 %v619, %v721
      %v750 = vmax.f32 %v620, %v726
      %v751 = vmax.f32 %v621, %v729
      %v752 = vmax.f32 %v622, %v734
      %v753 = vmax.f32 %v623, %v737
      %v754 = vmax.f32 %v624, %v742
      %v755 = vmax.f32 %v625, %v745
      %v756 = vld [vmem:[%s2] sm:$0x1]
      %v758 = vlaneseq
      %v759 = vshrl.u32 %v758, 7
      %v760 = vsub.s32 0, %v759
      %v761 = vrot.slane %v756, %v760
      %v763 = vadd.f32 %v748, %v761
      %v764 = vadd.f32 %v749, %v761
      %v765 = vadd.f32 %v750, %v761
      %v766 = vadd.f32 %v751, %v761
      %v767 = vadd.f32 %v752, %v761
      %v768 = vadd.f32 %v753, %v761
      %v769 = vadd.f32 %v754, %v761
      %v770 = vadd.f32 %v755, %v761
      %v771 = vmax.f32 %v763, 0.0
      %v772 = vmax.f32 %v764, 0.0
      %v773 = vmax.f32 %v765, 0.0
      %v774 = vmax.f32 %v766, 0.0
      %v775 = vmax.f32 %v767, 0.0
      %v776 = vmax.f32 %v768, 0.0
      %v777 = vmax.f32 %v769, 0.0
      %v778 = vmax.f32 %v770, 0.0
      %v779 = vpack.c.bf16 %v772, %v771
      %v780 = vpack.c.bf16 %v774, %v773
      %v781 = vpack.c.bf16 %v776, %v775
      %v782 = vpack.c.bf16 %v778, %v777
      %v787 = vunpack.c.l.b16 %v779
      %v788 = vunpack.c.h.b16 %v779
      %v789 = vunpack.c.l.b16 %v780
      %v790 = vunpack.c.h.b16 %v780
      %v791 = vunpack.c.l.b16 %v781
      %v792 = vunpack.c.h.b16 %v781
      %v793 = vunpack.c.l.b16 %v782
      %v794 = vunpack.c.h.b16 %v782
      %v795 = vpack.c.b16 %v787, %v787
      %v796 = vpack.c.b16 %v788, %v788
      %v797 = vpack.c.b16 %v789, %v789
      %v798 = vpack.c.b16 %v790, %v790
      %v799 = vpack.c.b16 %v791, %v791
      %v800 = vpack.c.b16 %v792, %v792
      %v801 = vpack.c.b16 %v793, %v793
      %v802 = vpack.c.b16 %v794, %v794
      %vm811 = vcmask 257024
      %812 = vst.msk [vmem:[%s170] sm:$0xf] %vm811, %v795
      %813 = vst.msk [vmem:[%s170 + $0x4] sm:$0xf] %vm811, %v796
      %814 = vst.msk [vmem:[%s170 + $0x8] sm:$0xf] %vm811, %v797
      %815 = vst.msk [vmem:[%s170 + $0xc] sm:$0xf] %vm811, %v798
      %816 = vst.msk [vmem:[%s170 + $0x10] sm:$0xf] %vm811, %v799
      %817 = vst.msk [vmem:[%s170 + $0x14] sm:$0xf] %vm811, %v800
      %818 = vst.msk [vmem:[%s170 + $0x18] sm:$0xf] %vm811, %v801
      %819 = vst.msk [vmem:[%s170 + $0x1c] sm:$0xf] %vm811, %v802
      %p820 = scmp.lt.s32.totalorder %s14, 1
      %s821 = scalar_select %p820, %s14, 1
      %s822 = smul.addr %s821, 8
      %s823 = smul.addr %s822, 4
      %s824 = scalar_lea.vmem %s3, %s823
      // Predicated region
      $region33: #{classifier_forward.5} parent=31 // pred_check
        %p825 = pneg %p100
      $region34: #{classifier_forward.5} parent=31 // pred_check_branch
        %827 = sbr.rel (%p825) target = $region36
      $region35: #{classifier_forward.5} parent=31 // pred_region
        _
      $region36: #{classifier_forward.5} parent=31 // pred_fallthru
        _
    $region32: #{classifier_forward.5} parent=5 // pred_fallthru
      _
    %p828 = scmp.le.s32.totalorder 2, %s9
    // Predicated region
    $region37: #{classifier_forward.5} parent=5 // pred_check
      %p829 = pneg %p828
    $region38: #{classifier_forward.5} parent=5 // pred_check_branch
      %831 = sbr.rel (%p829) target = $region40
    $region39: #{classifier_forward.5} parent=5 // pred_region
      %s832 = ssub.s32 %s9, 2
      // Predicated region
      $region41: #{classifier_forward.5} parent=39 // pred_check
        %p833 = pneg %p106
      $region42: #{classifier_forward.5} parent=39 // pred_check_branch
        %835 = sbr.rel (%p833) target = $region44
      $region43: #{classifier_forward.5} parent=39 // pred_region
        %p836 = scmp.lt.s32.totalorder %s15, 1
        %s837 = scalar_select %p836, %s15, 1
        %s838 = smul.addr %s837, 8
        %s839 = smul.addr %s838, 4
        %s840 = scalar_lea.vmem %s3, %s839
      $region44: #{classifier_forward.5} parent=39 // pred_fallthru
        _
    $region40: #{classifier_forward.5} parent=5 // pred_fallthru
      _
  $region6: #{classifier_forward.5} parent=0 // loop_footer
    %s13 = sadd.s32 1, %s9
  $region7: #{classifier_forward.5} parent=0 // loop_footer_branch
    %8 = sbr.rel target = $region3
  $region8: #{classifier_forward.5} parent=0 // loop_exit
    _

// kernel: classifier_forward.6
$region0: #{classifier_forward.6}
  #allocation0 [shape = 'u32[]', space=smem, size = 0x4, offset = 0x4, fixed_abs, tag = 'smem constant byte address 0x4 - core index']
  #allocation1 [shape = 'u32[144,128]{1,0:T(1,128)}', space=vmem, size = 0x12000, scoped, tag = 'internal scratch']
  %s0 = inlined_call_operand.vmem [shape: bf16[2,4,25,288], index: 0, kind: input, shape index: {}]
  %s1 = inlined_call_operand.vmem [shape: bf16[288,64], index: 1, kind: input, shape index: {}]
  %s2 = inlined_call_operand.vmem [shape: f32[1,64], index: 2, kind: input, shape index: {}]
  %s3 = inlined_call_operand.vmem [shape: bf16[2,25,64], index: 3, kind: output, shape index: {}]
  %s4 = sld [smem:[#allocation0]]
  $region45: #{classifier_forward.6} parent=0
    _
  %s6 = ssub.s32 1, %s4
  %s7 = scalar_select 0, %s6, %s4
  loop: start=0, step=1, limit=4
  $region2: #{classifier_forward.6} parent=0 // loop_pre_header
    _
  $region3: #{classifier_forward.6} parent=0 // loop_header
    %s9 = sphi 0, %s13
    %p10 = scmp.ge.s32.totalorder %s9, 4
    %s19 = sphi 0, %s21
    %s22 = sphi 0, %s19
    %s23 = sphi 0, %s22
    %s39 = sphi 0, %s23
    %s43 = sphi 0, %s43
    %s45 = sphi 0, %s43
    %s46 = sphi 0, %s45
    %s60 = sphi 0, %s46
    %s64 = sphi 0, %s64
    %s66 = sphi 0, %s64
    %s67 = sphi 0, %s66
    %s81 = sphi 0, %s67
    %s87 = sphi 0, %s89
    %s90 = sphi 0, %s87
    %s91 = sphi 0, %s90
    %s107 = sphi 0, %s91
  $region4: #{classifier_forward.6} parent=0 // loop_header_branch
    %12 = sbr.rel (%p10) target = $region8
  $region5: #{classifier_forward.6} parent=0 // loop_body
    %s14 = ssub.s32 %s9, 1
    %s15 = ssub.s32 %s9, 2
    %s16 = sadd.s32 %s9, 1
    %s17 = ssub.s32 %s9, %s16
    %p18 = scmp.eq.s32.totalorder %s17, 0
    %s20 = sadd.s32 %s19, 1
    %s21 = scalar_select %p18, %s19, %s20
    %p24 = pneg %p18
    %p25 = scmp.eq.s32.totalorder %s9, 1
    %p26 = por %p24, %p25
    %p27 = scmp.ne.s32.totalorder %s19, %s22
    %p28 = scmp.eq.s32.totalorder %s9, 0
    %p29 = por %p27, %p28
    %p30 = scmp.ne.s32.totalorder %s19, %s22
    %p31 = scmp.eq.s32.totalorder %s14, 1
    %p32 = por %p30, %p31
    %p33 = scmp.ne.s32.totalorder %s22, %s23
    %p34 = scmp.eq.s32.totalorder %s14, 0
    %p35 = por %p33, %p34
    %p36 = scmp.ne.s32.totalorder %s22, %s23
    %p37 = scmp.eq.s32.totalorder %s15, 1
    %p38 = por %p36, %p37
    %p40 = scmp.ne.s32.totalorder %s23, %s39
    %p41 = scmp.eq.s32.totalorder %s15, 0
    %p42 = por %p40, %p41
    %s44 = sadd.s32 %s43, 1
    %p47 = scmp.eq.s32.totalorder %s9, 1
    %p48 = scmp.ne.s32.totalorder %s43, %s45
    %p49 = scmp.eq.s32.totalorder %s9, 0
    %p50 = por %p48, %p49
    %p51 = scmp.ne.s32.totalorder %s43, %s45
    %p52 = scmp.eq.s32.totalorder %s14, 1
    %p53 = por %p51, %p52
    %p54 = scmp.ne.s32.totalorder %s45, %s46
    %p55 = scmp.eq.s32.totalorder %s14, 0
    %p56 = por %p54, %p55
    %p57 = scmp.ne.s32.totalorder %s45, %s46
    %p58 = scmp.eq.s32.totalorder %s15, 1
    %p59 = por %p57, %p58
    %p61 = scmp.ne.s32.totalorder %s46, %s60
    %p62 = scmp.eq.s32.totalorder %s15, 0
    %p63 = por %p61, %p62
    %s65 = sadd.s32 %s64, 1
    %p68 = scmp.eq.s32.totalorder %s9, 1
    %p69 = scmp.ne.s32.totalorder %s64, %s66
    %p70 = scmp.eq.s32.totalorder %s9, 0
    %p71 = por %p69, %p70
    %p72 = scmp.ne.s32.totalorder %s64, %s66
    %p73 = scmp.eq.s32.totalorder %s14, 1
    %p74 = por %p72, %p73
    %p75 = scmp.ne.s32.totalorder %s66, %s67
    %p76 = scmp.eq.s32.totalorder %s14, 0
    %p77 = por %p75, %p76
    %p78 = scmp.ne.s32.totalorder %s66, %s67
    %p79 = scmp.eq.s32.totalorder %s15, 1
    %p80 = por %p78, %p79
    %p82 = scmp.ne.s32.totalorder %s67, %s81
    %p83 = scmp.eq.s32.totalorder %s15, 0
    %p84 = por %p82, %p83
    %s85 = ssub.s32 %s9, %s16
    %p86 = scmp.eq.s32.totalorder %s85, 0
    %s88 = sadd.s32 %s87, 1
    %s89 = scalar_select %p86, %s87, %s88
    %p92 = pneg %p86
    %p93 = scmp.eq.s32.totalorder %s9, 1
    %p94 = por %p92, %p93
    %p95 = scmp.ne.s32.totalorder %s87, %s90
    %p96 = scmp.eq.s32.totalorder %s9, 0
    %p97 = por %p95, %p96
    %p98 = scmp.ne.s32.totalorder %s87, %s90
    %p99 = scmp.eq.s32.totalorder %s14, 1
    %p100 = por %p98, %p99
    %p101 = scmp.ne.s32.totalorder %s90, %s91
    %p102 = scmp.eq.s32.totalorder %s14, 0
    %p103 = por %p101, %p102
    %p104 = scmp.ne.s32.totalorder %s90, %s91
    %p105 = scmp.eq.s32.totalorder %s15, 1
    %p106 = por %p104, %p105
    %p108 = scmp.ne.s32.totalorder %s91, %s107
    %p109 = scmp.eq.s32.totalorder %s15, 0
    %p110 = por %p108, %p109
    %p111 = scmp.le.s32.totalorder 1, %s9
    %p112 = scmp.lt.s32.totalorder %s9, 3
    %p113 = pnand %p111, %p112
    %p114 = pneg %p113
    // Predicated region
    $region9: #{classifier_forward.6} parent=5 // pred_check
      _
    $region10: #{classifier_forward.6} parent=5 // pred_check_branch
      %116 = sbr.rel (%p113) target = $region12
    $region11: #{classifier_forward.6} parent=5 // pred_region
      %s117 = ssub.s32 %s9, 1
      // Predicated region
      $region13: #{classifier_forward.6} parent=11 // pred_check
        %p118 = pneg %p56
      $region14: #{classifier_forward.6} parent=11 // pred_check_branch
        %120 = sbr.rel (%p118) target = $region16
      $region15: #{classifier_forward.6} parent=11 // pred_region
        _
      $region16: #{classifier_forward.6} parent=11 // pred_fallthru
        _
      // Predicated region
      $region17: #{classifier_forward.6} parent=11 // pred_check
        %p121 = pneg %p77
      $region18: #{classifier_forward.6} parent=11 // pred_check_branch
        %123 = sbr.rel (%p121) target = $region20
      $region19: #{classifier_forward.6} parent=11 // pred_region
        _
      $region20: #{classifier_forward.6} parent=11 // pred_fallthru
        _
    $region12: #{classifier_forward.6} parent=5 // pred_fallthru
      _
    %p124 = scmp.lt.s32.totalorder %s9, 2
    // Predicated region
    $region21: #{classifier_forward.6} parent=5 // pred_check
      %p125 = pneg %p124
    $region22: #{classifier_forward.6} parent=5 // pred_check_branch
      %127 = sbr.rel (%p125) target = $region24
    $region23: #{classifier_forward.6} parent=5 // pred_region
      // Predicated region
      $region25: #{classifier_forward.6} parent=23 // pred_check
        %p128 = pneg %p29
      $region26: #{classifier_forward.6} parent=23 // pred_check_branch
        %130 = sbr.rel (%p128) target = $region28
      $region27: #{classifier_forward.6} parent=23 // pred_region
        %p131 = scmp.lt.s32.totalorder %s9, 1
        %s132 = scalar_select %p131, %s9, 1
        %s133 = smul.addr %s132, 48
        %s134 = smul.addr %s133, 4
        %s135 = scalar_lea.vmem %s0, %s134
      $region28: #{classifier_forward.6} parent=23 // pred_fallthru
        _
    $region24: #{classifier_forward.6} parent=5 // pred_fallthru
      _
    %p136 = scmp.le.s32.totalorder 1, %s9
    %p137 = scmp.lt.s32.totalorder %s9, 3
    %p138 = pnand %p136, %p137
    %p139 = pneg %p138
    // Predicated region
    $region29: #{classifier_forward.6} parent=5 // pred_check
      _
    $region30: #{classifier_forward.6} parent=5 // pred_check_branch
      %141 = sbr.rel (%p138) target = $region32
    $region31: #{classifier_forward.6} parent=5 // pred_region
      %s142 = ssub.s32 %s9, 1
      %p143 = scmp.lt.s32.totalorder %s14, 1
      %s144 = scalar_select %p143, %s14, 1
      %s145 = smul.addr %s144, 48
      %s146 = smul.addr %s145, 4
      %s147 = scalar_lea.vmem %s0, %s146
      %p148 = pneg %p35
      %p149 = pneg %p32
      %p150 = pneg %p56
      %p151 = pneg %p53
      %p152 = pneg %p77
      %p153 = pneg %p74
      %p154 = pneg %p103
      %p155 = pneg %p100
      %p156 = scmp.lt.s32.totalorder %s14, 1
      %s157 = scalar_select %p156, %s14, 1
      %s158 = smul.addr %s157, 4
      %s159 = smul.addr %s158, 4
      %s160 = scalar_lea.vmem %s3, %s159
      %p161 = scmp.lt.s32.totalorder %s14, 1
      %s162 = scalar_select %p161, %s14, 1
      %s163 = smul.addr %s162, 48
      %s164 = smul.addr %s163, 4
      %s165 = scalar_lea.vmem %s0, %s164
      %p166 = scmp.lt.s32.totalorder %s14, 1
      %s167 = scalar_select %p166, %s14, 1
      %s168 = smul.addr %s167, 4
      %s169 = smul.addr %s168, 4
      %s170 = scalar_lea.vmem %s3, %s169
      %v172 = vld [vmem:[%s1] sm:$0xf]
      %v173 = vld [vmem:[%s1 + $0x4] sm:$0xf]
      %v174 = vld [vmem:[%s1 + $0x8] sm:$0xf]
      %v175 = vld [vmem:[%s1 + $0xc] sm:$0xf]
      %v176 = vld [vmem:[%s1 + $0x10] sm:$0xf]
      %v177 = vld [vmem:[%s1 + $0x14] sm:$0xf]
      %v178 = vld [vmem:[%s1 + $0x18] sm:$0xf]
      %v179 = vld [vmem:[%s1 + $0x1c] sm:$0xf]
      %v180 = vld [vmem:[%s1 + $0x20] sm:$0xf]
      %v181 = vld [vmem:[%s1 + $0x24] sm:$0xf]
      %v182 = vld [vmem:[%s1 + $0x28] sm:$0xf]
      %v183 = vld [vmem:[%s1 + $0x2c] sm:$0xf]
      %v184 = vld [vmem:[%s1 + $0x30] sm:$0xf]
      %v185 = vld [vmem:[%s1 + $0x34] sm:$0xf]
      %v186 = vld [vmem:[%s1 + $0x38] sm:$0xf]
      %v187 = vld [vmem:[%s1 + $0x3c] sm:$0xf]
      %v188 = vld [vmem:[%s1 + $0x40] sm:$0xf]
      %v189 = vld [vmem:[%s1 + $0x44] sm:$0xf]
      %v190 = vld [vmem:[%s1 + $0x48] sm:$0xf]
      %v191 = vld [vmem:[%s1 + $0x4c] sm:$0xf]
      %v192 = vld [vmem:[%s1 + $0x50] sm:$0xf]
      %v193 = vld [vmem:[%s1 + $0x54] sm:$0xf]
      %v194 = vld [vmem:[%s1 + $0x58] sm:$0xf]
      %v195 = vld [vmem:[%s1 + $0x5c] sm:$0xf]
      %v196 = vld [vmem:[%s1 + $0x60] sm:$0xf]
      %v197 = vld [vmem:[%s1 + $0x64] sm:$0xf]
      %v198 = vld [vmem:[%s1 + $0x68] sm:$0xf]
      %v199 = vld [vmem:[%s1 + $0x6c] sm:$0xf]
      %v200 = vld [vmem:[%s1 + $0x70] sm:$0xf]
      %v201 = vld [vmem:[%s1 + $0x74] sm:$0xf]
      %v202 = vld [vmem:[%s1 + $0x78] sm:$0xf]
      %v203 = vld [vmem:[%s1 + $0x7c] sm:$0xf]
      %v204 = vld [vmem:[%s1 + $0x80] sm:$0xf]
      %v205 = vld [vmem:[%s1 + $0x84] sm:$0xf]
      %v206 = vld [vmem:[%s1 + $0x88] sm:$0xf]
      %v207 = vld [vmem:[%s1 + $0x8c] sm:$0xf]
      %v208 = vld [vmem:[%s165] sm:$0xff]
      %v209 = vld [vmem:[%s165 + $0x8] sm:$0xf]
      %v210 = vld [vmem:[%s165 + $0xc] sm:$0xff]
      %v211 = vld [vmem:[%s165 + $0x14] sm:$0xf]
      %v212 = vld [vmem:[%s165 + $0x18] sm:$0xff]
      %v213 = vld [vmem:[%s165 + $0x20] sm:$0xf]
      %v214 = vld [vmem:[%s165 + $0x24] sm:$0x11]
      %v215 = vld [vmem:[%s165 + $0x2c] sm:$0x1]
      %v224 = vunpack.c.l.b16 %v208
      %v225 = vunpack.c.h.b16 %v208
      %v226 = vunpack.c.l.b16 %v209
      %v227 = vunpack.c.l.b16 %v210
      %v228 = vunpack.c.h.b16 %v210
      %v229 = vunpack.c.l.b16 %v211
      %v230 = vunpack.c.l.b16 %v212
      %v231 = vunpack.c.h.b16 %v212
      %v232 = vunpack.c.l.b16 %v213
      %v233 = vunpack.c.l.b16 %v214
      %v234 = vunpack.c.h.b16 %v214
      %v235 = vunpack.c.l.b16 %v215
      %v236 = vpack.c.b16 %v227, %v224
      %v237 = vpack.c.b16 %v228, %v225
      %v238 = vpack.c.b16 %v229, %v226
      %v239 = vpack.c.b16 %v233, %v230
      %v240 = vpack.c.b16 %v234, %v231
      %v241 = vpack.c.b16 %v235, %v232
      %v282 = vunpack.c.l.b16 %v172
      %v283 = vunpack.c.l.b16 %v173
      %v284 = vunpack.c.l.b16 %v174
      %v285 = vunpack.c.l.b16 %v175
      %v286 = vunpack.c.l.b16 %v176
      %v287 = vunpack.c.l.b16 %v177
      %v288 = vunpack.c.l.b16 %v178
      %v289 = vunpack.c.l.b16 %v179
      %v290 = vunpack.c.l.b16 %v180
      %v291 = vunpack.c.l.b16 %v181
      %v292 = vunpack.c.l.b16 %v182
      %v293 = vunpack.c.l.b16 %v183
      %v294 = vunpack.c.l.b16 %v184
      %v295 = vunpack.c.l.b16 %v185
      %v296 = vunpack.c.l.b16 %v186
      %v297 = vunpack.c.l.b16 %v187
      %v298 = vunpack.c.l.b16 %v188
      %v299 = vunpack.c.l.b16 %v189
      %v300 = vunpack.c.l.b16 %v190
      %v301 = vunpack.c.l.b16 %v191
      %v302 = vunpack.c.l.b16 %v192
      %v303 = vunpack.c.l.b16 %v193
      %v304 = vunpack.c.l.b16 %v194
      %v305 = vunpack.c.l.b16 %v195
      %v306 = vunpack.c.l.b16 %v196
      %v307 = vunpack.c.l.b16 %v197
      %v308 = vunpack.c.l.b16 %v198
      %v309 = vunpack.c.l.b16 %v199
      %v310 = vunpack.c.l.b16 %v200
      %v311 = vunpack.c.l.b16 %v201
      %v312 = vunpack.c.l.b16 %v202
      %v313 = vunpack.c.l.b16 %v203
      %v314 = vunpack.c.l.b16 %v204
      %v315 = vunpack.c.l.b16 %v205
      %v316 = vunpack.c.l.b16 %v206
      %v317 = vunpack.c.l.b16 %v207
      %v318 = vpack.c.b16 %v283, %v282
      %v319 = vpack.c.b16 %v285, %v284
      %v320 = vpack.c.b16 %v287, %v286
      %v321 = vpack.c.b16 %v289, %v288
      %v322 = vpack.c.b16 %v291, %v290
      %v323 = vpack.c.b16 %v293, %v292
      %v324 = vpack.c.b16 %v295, %v294
      %v325 = vpack.c.b16 %v297, %v296
      %v326 = vpack.c.b16 %v299, %v298
      %v327 = vpack.c.b16 %v301, %v300
      %v328 = vpack.c.b16 %v303, %v302
      %v329 = vpack.c.b16 %v305, %v304
      %v330 = vpack.c.b16 %v307, %v306
      %v331 = vpack.c.b16 %v309, %v308
      %v332 = vpack.c.b16 %v311, %v310
      %v333 = vpack.c.b16 %v313, %v312
      %v334 = vpack.c.b16 %v315, %v314
      %v335 = vpack.c.b16 %v317, %v316
      %vm354 = vcmask 261120
      %v356 = vsel %vm354, %v238, 0
      %v359 = vsel %vm354, %v241, 0
      %361 = vmatprep.subr.bf16.mxu0 0
      %362 = vmatpush1.bf16.msra.mxu0 %v318
      %363 = vmatprep.subr.bf16.mxu0 0
      %364 = vmatpush1.bf16.msra.mxu0 %v319
      %365 = vmatprep.subr.bf16.mxu0 0
      %366 = vmatpush1.bf16.msra.mxu0 %v320
      %367 = vmatprep.subr.bf16.mxu0 0
      %368 = vmatpush1.bf16.msra.mxu0 %v321
      %369 = vmatprep.subr.bf16.mxu0 0
      %370 = vmatpush1.bf16.msra.mxu0 %v322
      %371 = vmatprep.subr.bf16.mxu0 0
      %372 = vmatpush1.bf16.msra.mxu0 %v323
      %373 = vmatprep.subr.bf16.mxu0 0
      %374 = vmatpush1.bf16.msra.mxu0 %v324
      %375 = vmatprep.subr.bf16.mxu0 0
      %376 = vmatpush1.bf16.msra.mxu0 %v325
      %377 = vmatprep.subr.bf16.mxu0 0
      %378 = vmatpush1.bf16.msra.mxu0 %v326
      %379 = vmatprep.subr.bf16.mxu0 0
      %380 = vmatpush1.bf16.msra.mxu0 %v327
      %381 = vmatprep.subr.bf16.mxu0 0
      %382 = vmatpush1.bf16.msra.mxu0 %v328
      %383 = vmatprep.subr.bf16.mxu0 0
      %384 = vmatpush1.bf16.msra.mxu0 %v329
      %385 = vmatprep.subr.bf16.mxu0 0
      %386 = vmatpush1.bf16.msra.mxu0 %v330
      %387 = vmatprep.subr.bf16.mxu0 0
      %388 = vmatpush1.bf16.msra.mxu0 %v331
      %389 = vmatprep.subr.bf16.mxu0 0
      %390 = vmatpush1.bf16.msra.mxu0 %v332
      %391 = vmatprep.subr.bf16.mxu0 0
      %392 = vmatpush1.bf16.msra.mxu0 %v333
      %393 = vmatprep.mubr.bf16.mxu0 %v237
      %394 = vmatmul.mubr.bf16.gmra.mrb[0].mxu0 %v236
      %v395 = vpop.f32.mrb[0].mxu0
      %v396 = vadd.f32 0.0, %v395
      %v397 = vpop.f32.mrb[0].mxu0
      %v398 = vpop.f32.mrb[0].mxu0
      %v399 = vadd.f32 0.0, %v398
      %v400 = vpop.f32.mrb[0].mxu0
      %401 = vmatprep.mubr.bf16.mxu0 %v240
      %402 = vmatmul.mubr.bf16.gmra.mrb[0].mxu0 %v239
      %v403 = vpop.f32.mrb[0].mxu0
      %v404 = vadd.f32 0.0, %v403
      %v405 = vpop.f32.mrb[0].mxu0
      %v406 = vpop.f32.mrb[0].mxu0
      %v407 = vadd.f32 0.0, %v406
      %v408 = vpop.f32.mrb[0].mxu0
      %409 = vdwg.mxu0
      %410 = vmatprep.subr.bf16.mxu0 0
      %411 = vmatpush1.bf16.msra.mxu0 %v334
      %412 = vmatprep.subr.bf16.mxu0 0
      %413 = vmatpush1.bf16.msra.mxu0 %v335
      %414 = vmatprep.subr.bf16.mxu0 0
      %415 = vmatpush1.bf16.msra.mxu0 0
      %416 = vmatprep.subr.bf16.mxu0 0
      %417 = vmatpush1.bf16.msra.mxu0 0
      %418 = vmatprep.subr.bf16.mxu0 0
      %419 = vmatpush1.bf16.msra.mxu0 0
      %420 = vmatprep.subr.bf16.mxu0 0
      %421 = vmatpush1.bf16.msra.mxu0 0
      %422 = vmatprep.subr.bf16.mxu0 0
      %423 = vmatpush1.bf16.msra.mxu0 0
      %424 = vmatprep.subr.bf16.mxu0 0
      %425 = vmatpush1.bf16.msra.mxu0 0
      %426 = vmatprep.subr.bf16.mxu0 0
      %427 = vmatpush1.bf16.msra.mxu0 0
      %428 = vmatprep.subr.bf16.mxu0 0
      %429 = vmatpush1.bf16.msra.mxu0 0
      %430 = vmatprep.subr.bf16.mxu0 0
      %431 = vmatpush1.bf16.msra.mxu0 0
      %432 = vmatprep.subr.bf16.mxu0 0
      %433 = vmatpush1.bf16.msra.mxu0 0
      %434 = vmatprep.subr.bf16.mxu0 0
      %435 = vmatpush1.bf16.msra.mxu0 0
      %436 = vmatprep.subr.bf16.mxu0 0
      %437 = vmatpush1.bf16.msra.mxu0 0
      %438 = vmatprep.subr.bf16.mxu0 0
      %439 = vmatpush1.bf16.msra.mxu0 0
      %440 = vmatprep.subr.bf16.mxu0 0
      %441 = vmatpush1.bf16.msra.mxu0 0
      %442 = vmatprep.mubr.bf16.mxu0 0
      %443 = vmatmul.mubr.bf16.gmra.mrb[0].mxu0 %v356
      %v444 = vpop.f32.mrb[0].mxu0
      %v445 = vadd.f32 %v396, %v444
      %v446 = vpop.f32.mrb[0].mxu0
      %v447 = vpop.f32.mrb[0].mxu0
      %v448 = vadd.f32 %v399, %v447
      %v449 = vpop.f32.mrb[0].mxu0
      %450 = vmatprep.mubr.bf16.mxu0 0
      %451 = vmatmul.mubr.bf16.gmra.mrb[0].mxu0 %v359
      %v452 = vpop.f32.mrb[0].mxu0
      %v453 = vadd.f32 %v404, %v452
      %v454 = vpop.f32.mrb[0].mxu0
      %v455 = vpop.f32.mrb[0].mxu0
      %v456 = vadd.f32 %v407, %v455
      %v457 = vpop.f32.mrb[0].mxu0
      %458 = vdwg.mxu0
      %s459 = scalar_lea.vmem %s165, 48
      %v460 = vld [vmem:[%s459] sm:$0xff]
      %v461 = vld [vmem:[%s459 + $0x8] sm:$0xf]
      %v462 = vld [vmem:[%s459 + $0xc] sm:$0xff]
      %v463 = vld [vmem:[%s459 + $0x14] sm:$0xf]
      %v464 = vld [vmem:[%s459 + $0x18] sm:$0xff]
      %v465 = vld [vmem:[%s459 + $0x20] sm:$0xf]
      %v466 = vld [vmem:[%s459 + $0x24] sm:$0x11]
      %v467 = vld [vmem:[%s459 + $0x2c] sm:$0x1]
      %v476 = vunpack.c.l.b16 %v460
      %v477 = vunpack.c.h.b16 %v460
      %v478 = vunpack.c.l.b16 %v461
      %v479 = vunpack.c.l.b16 %v462
      %v480 = vunpack.c.h.b16 %v462
      %v481 = vunpack.c.l.b16 %v463
      %v482 = vunpack.c.l.b16 %v464
      %v483 = vunpack.c.h.b16 %v464
      %v484 = vunpack.c.l.b16 %v465
      %v485 = vunpack.c.l.b16 %v466
      %v486 = vunpack.c.h.b16 %v466
      %v487 = vunpack.c.l.b16 %v467
      %v488 = vpack.c.b16 %v479, %v476
      %v489 = vpack.c.b16 %v480, %v477
      %v490 = vpack.c.b16 %v481, %v478
      %v491 = vpack.c.b16 %v485, %v482
      %v492 = vpack.c.b16 %v486, %v483
      %v493 = vpack.c.b16 %v487, %v484
      %v499 = vsel %vm354, %v490, 0
      %v502 = vsel %vm354, %v493, 0
      %504 = vmatprep.subr.bf16.mxu0 0
      %505 = vmatpush1.bf16.msra.mxu0 %v318
      %506 = vmatprep.subr.bf16.mxu0 0
      %507 = vmatpush1.bf16.msra.mxu0 %v319
      %508 = vmatprep.subr.bf16.mxu0 0
      %509 = vmatpush1.bf16.msra.mxu0 %v320
      %510 = vmatprep.subr.bf16.mxu0 0
      %511 = vmatpush1.bf16.msra.mxu0 %v321
      %512 = vmatprep.subr.bf16.mxu0 0
      %513 = vmatpush1.bf16.msra.mxu0 %v322
      %514 = vmatprep.subr.bf16.mxu0 0
      %515 = vmatpush1.bf16.msra.mxu0 %v323
      %516 = vmatprep.subr.bf16.mxu0 0
      %517 = vmatpush1.bf16.msra.mxu0 %v324
      %518 = vmatprep.subr.bf16.mxu0 0
      %519 = vmatpush1.bf16.msra.mxu0 %v325
      %520 = vmatprep.subr.bf16.mxu0 0
      %521 = vmatpush1.bf16.msra.mxu0 %v326
      %522 = vmatprep.subr.bf16.mxu0 0
      %523 = vmatpush1.bf16.msra.mxu0 %v327
      %524 = vmatprep.subr.bf16.mxu0 0
      %525 = vmatpush1.bf16.msra.mxu0 %v328
      %526 = vmatprep.subr.bf16.mxu0 0
      %527 = vmatpush1.bf16.msra.mxu0 %v329
      %528 = vmatprep.subr.bf16.mxu0 0
      %529 = vmatpush1.bf16.msra.mxu0 %v330
      %530 = vmatprep.subr.bf16.mxu0 0
      %531 = vmatpush1.bf16.msra.mxu0 %v331
      %532 = vmatprep.subr.bf16.mxu0 0
      %533 = vmatpush1.bf16.msra.mxu0 %v332
      %534 = vmatprep.subr.bf16.mxu0 0
      %535 = vmatpush1.bf16.msra.mxu0 %v333
      %536 = vmatprep.mubr.bf16.mxu0 %v489
      %537 = vmatmul.mubr.bf16.gmra.mrb[0].mxu0 %v488
      %v538 = vpop.f32.mrb[0].mxu0
      %v539 = vadd.f32 0.0, %v538
      %v540 = vpop.f32.mrb[0].mxu0
      %v541 = vpop.f32.mrb[0].mxu0
      %v542 = vadd.f32 0.0, %v541
      %v543 = vpop.f32.mrb[0].mxu0
      %544 = vmatprep.mubr.bf16.mxu0 %v492
      %545 = vmatmul.mubr.bf16.gmra.mrb[0].mxu0 %v491
      %v546 = vpop.f32.mrb[0].mxu0
      %v547 = vadd.f32 0.0, %v546
      %v548 = vpop.f32.mrb[0].mxu0
      %v549 = vpop.f32.mrb[0].mxu0
      %v550 = vadd.f32 0.0, %v549
      %v551 = vpop.f32.mrb[0].mxu0
      %552 = vdwg.mxu0
      %553 = vmatprep.subr.bf16.mxu0 0
      %554 = vmatpush1.bf16.msra.mxu0 %v334
      %555 = vmatprep.subr.bf16.mxu0 0
      %556 = vmatpush1.bf16.msra.mxu0 %v335
      %557 = vmatprep.subr.bf16.mxu0 0
      %558 = vmatpush1.bf16.msra.mxu0 0
      %559 = vmatprep.subr.bf16.mxu0 0
      %560 = vmatpush1.bf16.msra.mxu0 0
      %561 = vmatprep.subr.bf16.mxu0 0
      %562 = vmatpush1.bf16.msra.mxu0 0
      %563 = vmatprep.subr.bf16.mxu0 0
      %564 = vmatpush1.bf16.msra.mxu0 0
      %565 = vmatprep.subr.bf16.mxu0 0
      %566 = vmatpush1.bf16.msra.mxu0 0
      %567 = vmatprep.subr.bf16.mxu0 0
      %568 = vmatpush1.bf16.msra.mxu0 0
      %569 = vmatprep.subr.bf16.mxu0 0
      %570 = vmatpush1.bf16.msra.mxu0 0
      %571 = vmatprep.subr.bf16.mxu0 0
      %572 = vmatpush1.bf16.msra.mxu0 0
      %573 = vmatprep.subr.bf16.mxu0 0
      %574 = vmatpush1.bf16.msra.mxu0 0
      %575 = vmatprep.subr.bf16.mxu0 0
      %576 = vmatpush1.bf16.msra.mxu0 0
      %577 = vmatprep.subr.bf16.mxu0 0
      %578 = vmatpush1.bf16.msra.mxu0 0
      %579 = vmatprep.subr.bf16.mxu0 0
      %580 = vmatpush1.bf16.msra.mxu0 0
      %581 = vmatprep.subr.bf16.mxu0 0
      %582 = vmatpush1.bf16.msra.mxu0 0
      %583 = vmatprep.subr.bf16.mxu0 0
      %584 = vmatpush1.bf16.msra.mxu0 0
      %585 = vmatprep.mubr.bf16.mxu0 0
      %586 = vmatmul.mubr.bf16.gmra.mrb[0].mxu0 %v499
      %v587 = vpop.f32.mrb[0].mxu0
      %v588 = vadd.f32 %v539, %v587
      %v589 = vpop.f32.mrb[0].mxu0
      %v590 = vpop.f32.mrb[0].mxu0
      %v591 = vadd.f32 %v542, %v590
      %v592 = vpop.f32.mrb[0].mxu0
      %593 = vmatprep.mubr.bf16.mxu0 0
      %594 = vmatmul.mubr.bf16.gmra.mrb[0].mxu0 %v502
      %v595 = vpop.f32.mrb[0].mxu0
      %v596 = vadd.f32 %v547, %v595
      %v597 = vpop.f32.mrb[0].mxu0
      %v598 = vpop.f32.mrb[0].mxu0
      %v599 = vadd.f32 %v550, %v598
      %v600 = vpop.f32.mrb[0].mxu0
      %601 = vdwg.mxu0
      %v602 = vmax.f32 %v445, %v588
      %v603 = vmax.f32 %v448, %v591
      %v604 = vmax.f32 %v453, %v596
      %v605 = vmax.f32 %v456, %v599
      %s606 = scalar_lea.vmem %s165, 96
      %v607 = vld [vmem:[%s606] sm:$0xff]
      %v608 = vld [vmem:[%s606 + $0x8] sm:$0xf]
      %v609 = vld [vmem:[%s606 + $0xc] sm:$0xff]
      %v610 = vld [vmem:[%s606 + $0x14] sm:$0xf]
      %v611 = vld [vmem:[%s606 + $0x18] sm:$0xff]
      %v612 = vld [vmem:[%s606 + $0x20] sm:$0xf]
      %v613 = vld [vmem:[%s606 + $0x24] sm:$0x11]
      %v614 = vld [vmem:[%s606 + $0x2c] sm:$0x1]
      %v623 = vunpack.c.l.b16 %v607
      %v624 = vunpack.c.h.b16 %v607
      %v625 = vunpack.c.l.b16 %v608
      %v626 = vunpack.c.l.b16 %v609
      %v627 = vunpack.c.h.b16 %v609
      %v628 = vunpack.c.l.b16 %v610
      %v629 = vunpack.c.l.b16 %v611
      %v630 = vunpack.c.h.b16 %v611
      %v631 = vunpack.c.l.b16 %v612
      %v632 = vunpack.c.l.b16 %v613
      %v633 = vunpack.c.h.b16 %v613
      %v634 = vunpack.c.l.b16 %v614
      %v635 = vpack.c.b16 %v626, %v623
      %v636 = vpack.c.b16 %v627, %v624
      %v637 = vpack.c.b16 %v628, %v625
      %v638 = vpack.c.b16 %v632, %v629
      %v639 = vpack.c.b16 %v633, %v630
      %v640 = vpack.c.b16 %v634, %v631
      %v646 = vsel %vm354, %v637, 0
      %v649 = vsel %vm354, %v640, 0
      %651 = vmatprep.subr.bf16.mxu0 0
      %652 = vmatpush1.bf16.msra.mxu0 %v318
      %653 = vmatprep.subr.bf16.mxu0 0
      %654 = vmatpush1.bf16.msra.mxu0 %v319
      %655 = vmatprep.subr.bf16.mxu0 0
      %656 = vmatpush1.bf16.msra.mxu0 %v320
      %657 = vmatprep.subr.bf16.mxu0 0
      %658 = vmatpush1.bf16.msra.mxu0 %v321
      %659 = vmatprep.subr.bf16.mxu0 0
      %660 = vmatpush1.bf16.msra.mxu0 %v322
      %661 = vmatprep.subr.bf16.mxu0 0
      %662 = vmatpush1.bf16.msra.mxu0 %v323
      %663 = vmatprep.subr.bf16.mxu0 0
      %664 = vmatpush1.bf16.msra.mxu0 %v324
      %665 = vmatprep.subr.bf16.mxu0 0
      %666 = vmatpush1.bf16.msra.mxu0 %v325
      %667 = vmatprep.subr.bf16.mxu0 0
      %668 = vmatpush1.bf16.msra.mxu0 %v326
      %669 = vmatprep.subr.bf16.mxu0 0
      %670 = vmatpush1.bf16.msra.mxu0 %v327
      %671 = vmatprep.subr.bf16.mxu0 0
      %672 = vmatpush1.bf16.msra.mxu0 %v328
      %673 = vmatprep.subr.bf16.mxu0 0
      %674 = vmatpush1.bf16.msra.mxu0 %v329
      %675 = vmatprep.subr.bf16.mxu0 0
      %676 = vmatpush1.bf16.msra.mxu0 %v330
      %677 = vmatprep.subr.bf16.mxu0 0
      %678 = vmatpush1.bf16.msra.mxu0 %v331
      %679 = vmatprep.subr.bf16.mxu0 0
      %680 = vmatpush1.bf16.msra.mxu0 %v332
      %681 = vmatprep.subr.bf16.mxu0 0
      %682 = vmatpush1.bf16.msra.mxu0 %v333
      %683 = vmatprep.mubr.bf16.mxu0 %v636
      %684 = vmatmul.mubr.bf16.gmra.mrb[0].mxu0 %v635
      %v685 = vpop.f32.mrb[0].mxu0
      %v686 = vadd.f32 0.0, %v685
      %v687 = vpop.f32.mrb[0].mxu0
      %v688 = vpop.f32.mrb[0].mxu0
      %v689 = vadd.f32 0.0, %v688
      %v690 = vpop.f32.mrb[0].mxu0
      %691 = vmatprep.mubr.bf16.mxu0 %v639
      %692 = vmatmul.mubr.bf16.gmra.mrb[0].mxu0 %v638
      %v693 = vpop.f32.mrb[0].mxu0
      %v694 = vadd.f32 0.0, %v693
      %v695 = vpop.f32.mrb[0].mxu0
      %v696 = vpop.f32.mrb[0].mxu0
      %v697 = vadd.f32 0.0, %v696
      %v698 = vpop.f32.mrb[0].mxu0
      %699 = vdwg.mxu0
      %700 = vmatprep.subr.bf16.mxu0 0
      %701 = vmatpush1.bf16.msra.mxu0 %v334
      %702 = vmatprep.subr.bf16.mxu0 0
      %703 = vmatpush1.bf16.msra.mxu0 %v335
      %704 = vmatprep.subr.bf16.mxu0 0
      %705 = vmatpush1.bf16.msra.mxu0 0
      %706 = vmatprep.subr.bf16.mxu0 0
      %707 = vmatpush1.bf16.msra.mxu0 0
      %708 = vmatprep.subr.bf16.mxu0 0
      %709 = vmatpush1.bf16.msra.mxu0 0
      %710 = vmatprep.subr.bf16.mxu0 0
      %711 = vmatpush1.bf16.msra.mxu0 0
      %712 = vmatprep.subr.bf16.mxu0 0
      %713 = vmatpush1.bf16.msra.mxu0 0
      %714 = vmatprep.subr.bf16.mxu0 0
      %715 = vmatpush1.bf16.msra.mxu0 0
      %716 = vmatprep.subr.bf16.mxu0 0
      %717 = vmatpush1.bf16.msra.mxu0 0
      %718 = vmatprep.subr.bf16.mxu0 0
      %719 = vmatpush1.bf16.msra.mxu0 0
      %720 = vmatprep.subr.bf16.mxu0 0
      %721 = vmatpush1.bf16.msra.mxu0 0
      %722 = vmatprep.subr.bf16.mxu0 0
      %723 = vmatpush1.bf16.msra.mxu0 0
      %724 = vmatprep.subr.bf16.mxu0 0
      %725 = vmatpush1.bf16.msra.mxu0 0
      %726 = vmatprep.subr.bf16.mxu0 0
      %727 = vmatpush1.bf16.msra.mxu0 0
      %728 = vmatprep.subr.bf16.mxu0 0
      %729 = vmatpush1.bf16.msra.mxu0 0
      %730 = vmatprep.subr.bf16.mxu0 0
      %731 = vmatpush1.bf16.msra.mxu0 0
      %732 = vmatprep.mubr.bf16.mxu0 0
      %733 = vmatmul.mubr.bf16.gmra.mrb[0].mxu0 %v646
      %v734 = vpop.f32.mrb[0].mxu0
      %v735 = vadd.f32 %v686, %v734
      %v736 = vpop.f32.mrb[0].mxu0
      %v737 = vpop.f32.mrb[0].mxu0
      %v738 = vadd.f32 %v689, %v737
      %v739 = vpop.f32.mrb[0].mxu0
      %740 = vmatprep.mubr.bf16.mxu0 0
      %741 = vmatmul.mubr.bf16.gmra.mrb[0].mxu0 %v649
      %v742 = vpop.f32.mrb[0].mxu0
      %v743 = vadd.f32 %v694, %v742
      %v744 = vpop.f32.mrb[0].mxu0
      %v745 = vpop.f32.mrb[0].mxu0
      %v746 = vadd.f32 %v697, %v745
      %v747 = vpop.f32.mrb[0].mxu0
      %748 = vdwg.mxu0
      %v749 = vmax.f32 %v602, %v735
      %v750 = vmax.f32 %v603, %v738
      %v751 = vmax.f32 %v604, %v743
      %v752 = vmax.f32 %v605, %v746
      %s753 = scalar_lea.vmem %s165, 144
      %v754 = vld [vmem:[%s753] sm:$0xff]
      %v755 = vld [vmem:[%s753 + $0x8] sm:$0xf]
      %v756 = vld [vmem:[%s753 + $0xc] sm:$0xff]
      %v757 = vld [vmem:[%s753 + $0x14] sm:$0xf]
      %v758 = vld [vmem:[%s753 + $0x18] sm:$0xff]
      %v759 = vld [vmem:[%s753 + $0x20] sm:$0xf]
      %v760 = vld [vmem:[%s753 + $0x24] sm:$0x11]
      %v761 = vld [vmem:[%s753 + $0x2c] sm:$0x1]
      %v770 = vunpack.c.l.b16 %v754
      %v771 = vunpack.c.h.b16 %v754
      %v772 = vunpack.c.l.b16 %v755
      %v773 = vunpack.c.l.b16 %v756
      %v774 = vunpack.c.h.b16 %v756
      %v775 = vunpack.c.l.b16 %v757
      %v776 = vunpack.c.l.b16 %v758
      %v777 = vunpack.c.h.b16 %v758
      %v778 = vunpack.c.l.b16 %v759
      %v779 = vunpack.c.l.b16 %v760
      %v780 = vunpack.c.h.b16 %v760
      %v781 = vunpack.c.l.b16 %v761
      %v782 = vpack.c.b16 %v773, %v770
      %v783 = vpack.c.b16 %v774, %v771
      %v784 = vpack.c.b16 %v775, %v772
      %v785 = vpack.c.b16 %v779, %v776
      %v786 = vpack.c.b16 %v780, %v777
      %v787 = vpack.c.b16 %v781, %v778
      %v793 = vsel %vm354, %v784, 0
      %v796 = vsel %vm354, %v787, 0
      %798 = vmatprep.subr.bf16.mxu0 0
      %799 = vmatpush1.bf16.msra.mxu0 %v318
      %800 = vmatprep.subr.bf16.mxu0 0
      %801 = vmatpush1.bf16.msra.mxu0 %v319
      %802 = vmatprep.subr.bf16.mxu0 0
      %803 = vmatpush1.bf16.msra.mxu0 %v320
      %804 = vmatprep.subr.bf16.mxu0 0
      %805 = vmatpush1.bf16.msra.mxu0 %v321
      %806 = vmatprep.subr.bf16.mxu0 0
      %807 = vmatpush1.bf16.msra.mxu0 %v322
      %808 = vmatprep.subr.bf16.mxu0 0
      %809 = vmatpush1.bf16.msra.mxu0 %v323
      %810 = vmatprep.subr.bf16.mxu0 0
      %811 = vmatpush1.bf16.msra.mxu0 %v324
      %812 = vmatprep.subr.bf16.mxu0 0
      %813 = vmatpush1.bf16.msra.mxu0 %v325
      %814 = vmatprep.subr.bf16.mxu0 0
      %815 = vmatpush1.bf16.msra.mxu0 %v326
      %816 = vmatprep.subr.bf16.mxu0 0
      %817 = vmatpush1.bf16.msra.mxu0 %v327
      %818 = vmatprep.subr.bf16.mxu0 0
      %819 = vmatpush1.bf16.msra.mxu0 %v328
      %820 = vmatprep.subr.bf16.mxu0 0
      %821 = vmatpush1.bf16.msra.mxu0 %v329
      %822 = vmatprep.subr.bf16.mxu0 0
      %823 = vmatpush1.bf16.msra.mxu0 %v330
      %824 = vmatprep.subr.bf16.mxu0 0
      %825 = vmatpush1.bf16.msra.mxu0 %v331
      %826 = vmatprep.subr.bf16.mxu0 0
      %827 = vmatpush1.bf16.msra.mxu0 %v332
      %828 = vmatprep.subr.bf16.mxu0 0
      %829 = vmatpush1.bf16.msra.mxu0 %v333
      %830 = vmatprep.mubr.bf16.mxu0 %v783
      %831 = vmatmul.mubr.bf16.gmra.mrb[0].mxu0 %v782
      %v832 = vpop.f32.mrb[0].mxu0
      %v833 = vadd.f32 0.0, %v832
      %v834 = vpop.f32.mrb[0].mxu0
      %v835 = vpop.f32.mrb[0].mxu0
      %v836 = vadd.f32 0.0, %v835
      %v837 = vpop.f32.mrb[0].mxu0
      %838 = vmatprep.mubr.bf16.mxu0 %v786
      %839 = vmatmul.mubr.bf16.gmra.mrb[0].mxu0 %v785
      %v840 = vpop.f32.mrb[0].mxu0
      %v841 = vadd.f32 0.0, %v840
      %v842 = vpop.f32.mrb[0].mxu0
      %v843 = vpop.f32.mrb[0].mxu0
      %v844 = vadd.f32 0.0, %v843
      %v845 = vpop.f32.mrb[0].mxu0
      %846 = vdwg.mxu0
      %847 = vmatprep.subr.bf16.mxu0 0
      %848 = vmatpush1.bf16.msra.mxu0 %v334
      %849 = vmatprep.subr.bf16.mxu0 0
      %850 = vmatpush1.bf16.msra.mxu0 %v335
      %851 = vmatprep.subr.bf16.mxu0 0
      %852 = vmatpush1.bf16.msra.mxu0 0
      %853 = vmatprep.subr.bf16.mxu0 0
      %854 = vmatpush1.bf16.msra.mxu0 0
      %855 = vmatprep.subr.bf16.mxu0 0
      %856 = vmatpush1.bf16.msra.mxu0 0
      %857 = vmatprep.subr.bf16.mxu0 0
      %858 = vmatpush1.bf16.msra.mxu0 0
      %859 = vmatprep.subr.bf16.mxu0 0
      %860 = vmatpush1.bf16.msra.mxu0 0
      %861 = vmatprep.subr.bf16.mxu0 0
      %862 = vmatpush1.bf16.msra.mxu0 0
      %863 = vmatprep.subr.bf16.mxu0 0
      %864 = vmatpush1.bf16.msra.mxu0 0
      %865 = vmatprep.subr.bf16.mxu0 0
      %866 = vmatpush1.bf16.msra.mxu0 0
      %867 = vmatprep.subr.bf16.mxu0 0
      %868 = vmatpush1.bf16.msra.mxu0 0
      %869 = vmatprep.subr.bf16.mxu0 0
      %870 = vmatpush1.bf16.msra.mxu0 0
      %871 = vmatprep.subr.bf16.mxu0 0
      %872 = vmatpush1.bf16.msra.mxu0 0
      %873 = vmatprep.subr.bf16.mxu0 0
      %874 = vmatpush1.bf16.msra.mxu0 0
      %875 = vmatprep.subr.bf16.mxu0 0
      %876 = vmatpush1.bf16.msra.mxu0 0
      %877 = vmatprep.subr.bf16.mxu0 0
      %878 = vmatpush1.bf16.msra.mxu0 0
      %879 = vmatprep.mubr.bf16.mxu0 0
      %880 = vmatmul.mubr.bf16.gmra.mrb[0].mxu0 %v793
      %v881 = vpop.f32.mrb[0].mxu0
      %v882 = vadd.f32 %v833, %v881
      %v883 = vpop.f32.mrb[0].mxu0
      %v884 = vpop.f32.mrb[0].mxu0
      %v885 = vadd.f32 %v836, %v884
      %v886 = vpop.f32.mrb[0].mxu0
      %887 = vmatprep.mubr.bf16.mxu0 0
      %888 = vmatmul.mubr.bf16.gmra.mrb[0].mxu0 %v796
      %v889 = vpop.f32.mrb[0].mxu0
      %v890 = vadd.f32 %v841, %v889
      %v891 = vpop.f32.mrb[0].mxu0
      %v892 = vpop.f32.mrb[0].mxu0
      %v893 = vadd.f32 %v844, %v892
      %v894 = vpop.f32.mrb[0].mxu0
      %895 = vdwg.mxu0
      %v896 = vmax.f32 %v749, %v882
      %v897 = vmax.f32 %v750, %v885
      %v898 = vmax.f32 %v751, %v890
      %v899 = vmax.f32 %v752, %v893
      %v900 = vld [vmem:[%s2] sm:$0x1]
      %v902 = vlaneseq
      %v903 = vshrl.u32 %v902, 7
      %v904 = vsub.s32 0, %v903
      %v905 = vrot.slane %v900, %v904
      %v907 = vadd.f32 %v896, %v905
      %v908 = vadd.f32 %v897, %v905
      %v909 = vadd.f32 %v898, %v905
      %v910 = vadd.f32 %v899, %v905
      %v911 = vmax.f32 %v907, 0.0
      %v912 = vmax.f32 %v908, 0.0
      %v913 = vmax.f32 %v909, 0.0
      %v914 = vmax.f32 %v910, 0.0
      %v915 = vpack.c.bf16 %v912, %v911
      %v916 = vpack.c.bf16 %v914, %v913
      %v919 = vunpack.c.l.b16 %v915
      %v920 = vunpack.c.h.b16 %v915
      %v921 = vunpack.c.l.b16 %v916
      %v922 = vunpack.c.h.b16 %v916
      %v923 = vpack.c.b16 %v919, %v919
      %v924 = vpack.c.b16 %v920, %v920
      %v925 = vpack.c.b16 %v921, %v921
      %v926 = vpack.c.b16 %v922, %v922
      %vm931 = vcmask 519168
      %932 = vst.msk [vmem:[%s170] sm:$0xf] %vm931, %v923
      %933 = vst.msk [vmem:[%s170 + $0x4] sm:$0xf] %vm931, %v924
      %934 = vst.msk [vmem:[%s170 + $0x8] sm:$0xf] %vm931, %v925
      %vm935 = vcmask 516096
      %vm936 = vsmask.f32 256
      %vm937 = vmand %vm935, %vm936
      %v938 = vld [vmem:[%s170 + $0xc] sm:$0x1]
      %v939 = vsel %vm937, %v926, %v938
      %940 = vst [vmem:[%s170 + $0xc] sm:$0x1] %v939
      %p941 = scmp.lt.s32.totalorder %s14, 1
      %s942 = scalar_select %p941, %s14, 1
      %s943 = smul.addr %s942, 4
      %s944 = smul.addr %s943, 4
      %s945 = scalar_lea.vmem %s3, %s944
      // Predicated region
      $region33: #{classifier_forward.6} parent=31 // pred_check
        %p946 = pneg %p100
      $region34: #{classifier_forward.6} parent=31 // pred_check_branch
        %948 = sbr.rel (%p946) target = $region36
      $region35: #{classifier_forward.6} parent=31 // pred_region
        _
      $region36: #{classifier_forward.6} parent=31 // pred_fallthru
        _
    $region32: #{classifier_forward.6} parent=5 // pred_fallthru
      _
    %p949 = scmp.le.s32.totalorder 2, %s9
    // Predicated region
    $region37: #{classifier_forward.6} parent=5 // pred_check
      %p950 = pneg %p949
    $region38: #{classifier_forward.6} parent=5 // pred_check_branch
      %952 = sbr.rel (%p950) target = $region40
    $region39: #{classifier_forward.6} parent=5 // pred_region
      %s953 = ssub.s32 %s9, 2
      // Predicated region
      $region41: #{classifier_forward.6} parent=39 // pred_check
        %p954 = pneg %p106
      $region42: #{classifier_forward.6} parent=39 // pred_check_branch
        %956 = sbr.rel (%p954) target = $region44
      $region43: #{classifier_forward.6} parent=39 // pred_region
        %p957 = scmp.lt.s32.totalorder %s15, 1
        %s958 = scalar_select %p957, %s15, 1
        %s959 = smul.addr %s958, 4
        %s960 = smul.addr %s959, 4
        %s961 = scalar_lea.vmem %s3, %s960
      $region44: #{classifier_forward.6} parent=39 // pred_fallthru
        _
    $region40: #{classifier_forward.6} parent=5 // pred_fallthru
      _
  $region6: #{classifier_forward.6} parent=0 // loop_footer
    %s13 = sadd.s32 1, %s9
  $region7: #{classifier_forward.6} parent=0 // loop_footer_branch
    %8 = sbr.rel target = $region3
  $region8: #{classifier_forward.6} parent=0 // loop_exit
    _

// kernel: classifier_forward.7
$region0: #{classifier_forward.7}
  #allocation0 [shape = 'u32[]', space=smem, size = 0x4, offset = 0x4, fixed_abs, tag = 'smem constant byte address 0x4 - core index']
  #allocation1 [shape = 'u32[144,128]{1,0:T(1,128)}', space=vmem, size = 0x12000, scoped, tag = 'internal scratch']
  %s0 = inlined_call_operand.vmem [shape: bf16[2,1600], index: 0, kind: input, shape index: {}]
  %s1 = inlined_call_operand.vmem [shape: bf16[1600,10], index: 1, kind: input, shape index: {}]
  %s2 = inlined_call_operand.vmem [shape: f32[1,10], index: 2, kind: input, shape index: {}]
  %s3 = inlined_call_operand.hbm [shape: f32[2,10], index: 3, kind: output, shape index: {}]
  %s4 = sld [smem:[#allocation0]]
  $region22: #{classifier_forward.7} parent=0
    _
  %s6 = ssub.s32 1, %s4
  %s7 = scalar_select 0, %s6, %s4
  $region1: #{classifier_forward.7} parent=0
    #allocation2 [shape = 'u8[1024]{0}', space=vmem, size = 0x400, scoped, tag = 'output window, operand 0, single buffered']
    #allocation3 [shape = 's32[1]{0}', space=sflag, size = 0x4, scoped, tag = 'scoped memory for classifier_forward.7']
    %8 = vsyncpa [#allocation3], 0
    // Predicated region
    $region2: #{classifier_forward.7} parent=1 // pred_check
      _
    $region3: #{classifier_forward.7} parent=1 // pred_check_branch
      %10 = sbr.rel (0) target = $region5
    $region4: #{classifier_forward.7} parent=1 // pred_region
      _
    $region5: #{classifier_forward.7} parent=1 // pred_fallthru
      _
    // Predicated region
    $region6: #{classifier_forward.7} parent=1 // pred_check
      _
    $region7: #{classifier_forward.7} parent=1 // pred_check_branch
      %12 = sbr.rel (0) target = $region9
    $region8: #{classifier_forward.7} parent=1 // pred_region
      _
    $region9: #{classifier_forward.7} parent=1 // pred_fallthru
      _
    // Predicated region
    $region10: #{classifier_forward.7} parent=1 // pred_check
      _
    $region11: #{classifier_forward.7} parent=1 // pred_check_branch
      %14 = sbr.rel (0) target = $region13
    $region12: #{classifier_forward.7} parent=1 // pred_region
      _
    $region13: #{classifier_forward.7} parent=1 // pred_fallthru
      _
    %v16 = vld [vmem:[%s0] sm:$0xff]
    %v17 = vld [vmem:[%s0 + $0x8] sm:$0x1f]
    %v18 = vld [vmem:[%s1] sm:$0xf]
    %v19 = vld [vmem:[%s1 + $0x4] sm:$0xf]
    %v20 = vld [vmem:[%s1 + $0x8] sm:$0xf]
    %v21 = vld [vmem:[%s1 + $0xc] sm:$0xf]
    %v22 = vld [vmem:[%s1 + $0x10] sm:$0xf]
    %v23 = vld [vmem:[%s1 + $0x14] sm:$0xf]
    %v24 = vld [vmem:[%s1 + $0x18] sm:$0xf]
    %v25 = vld [vmem:[%s1 + $0x1c] sm:$0xf]
    %v26 = vld [vmem:[%s1 + $0x20] sm:$0xf]
    %v27 = vld [vmem:[%s1 + $0x24] sm:$0xf]
    %v28 = vld [vmem:[%s1 + $0x28] sm:$0xf]
    %v29 = vld [vmem:[%s1 + $0x2c] sm:$0xf]
    %v30 = vld [vmem:[%s1 + $0x30] sm:$0xf]
    %v31 = vld [vmem:[%s1 + $0x34] sm:$0xf]
    %v32 = vld [vmem:[%s1 + $0x38] sm:$0xf]
    %v33 = vld [vmem:[%s1 + $0x3c] sm:$0xf]
    %v34 = vld [vmem:[%s1 + $0x40] sm:$0xf]
    %v35 = vld [vmem:[%s1 + $0x44] sm:$0xf]
    %v36 = vld [vmem:[%s1 + $0x48] sm:$0xf]
    %v37 = vld [vmem:[%s1 + $0x4c] sm:$0xf]
    %v38 = vld [vmem:[%s1 + $0x50] sm:$0xf]
    %v39 = vld [vmem:[%s1 + $0x54] sm:$0xf]
    %v40 = vld [vmem:[%s1 + $0x58] sm:$0xf]
    %v41 = vld [vmem:[%s1 + $0x5c] sm:$0xf]
    %v42 = vld [vmem:[%s1 + $0x60] sm:$0xf]
    %v43 = vld [vmem:[%s1 + $0x64] sm:$0xf]
    %v44 = vld [vmem:[%s1 + $0x68] sm:$0xf]
    %v45 = vld [vmem:[%s1 + $0x6c] sm:$0xf]
    %v46 = vld [vmem:[%s1 + $0x70] sm:$0xf]
    %v47 = vld [vmem:[%s1 + $0x74] sm:$0xf]
    %v48 = vld [vmem:[%s1 + $0x78] sm:$0xf]
    %v49 = vld [vmem:[%s1 + $0x7c] sm:$0xf]
    %v50 = vld [vmem:[%s1 + $0x80] sm:$0xf]
    %v51 = vld [vmem:[%s1 + $0x84] sm:$0xf]
    %v52 = vld [vmem:[%s1 + $0x88] sm:$0xf]
    %v53 = vld [vmem:[%s1 + $0x8c] sm:$0xf]
    %v54 = vld [vmem:[%s1 + $0x90] sm:$0xf]
    %v55 = vld [vmem:[%s1 + $0x94] sm:$0xf]
    %v56 = vld [vmem:[%s1 + $0x98] sm:$0xf]
    %v57 = vld [vmem:[%s1 + $0x9c] sm:$0xf]
    %v58 = vld [vmem:[%s1 + $0xa0] sm:$0xf]
    %v59 = vld [vmem:[%s1 + $0xa4] sm:$0xf]
    %v60 = vld [vmem:[%s1 + $0xa8] sm:$0xf]
    %v61 = vld [vmem:[%s1 + $0xac] sm:$0xf]
    %v62 = vld [vmem:[%s1 + $0xb0] sm:$0xf]
    %v63 = vld [vmem:[%s1 + $0xb4] sm:$0xf]
    %v64 = vld [vmem:[%s1 + $0xb8] sm:$0xf]
    %v65 = vld [vmem:[%s1 + $0xbc] sm:$0xf]
    %v66 = vld [vmem:[%s1 + $0xc0] sm:$0xf]
    %v67 = vld [vmem:[%s1 + $0xc4] sm:$0xf]
    %v68 = vld [vmem:[%s1 + $0xc8] sm:$0xf]
    %v69 = vld [vmem:[%s1 + $0xcc] sm:$0xf]
    %v70 = vld [vmem:[%s1 + $0xd0] sm:$0xf]
    %v71 = vld [vmem:[%s1 + $0xd4] sm:$0xf]
    %v72 = vld [vmem:[%s1 + $0xd8] sm:$0xf]
    %v73 = vld [vmem:[%s1 + $0xdc] sm:$0xf]
    %v74 = vld [vmem:[%s1 + $0xe0] sm:$0xf]
    %v75 = vld [vmem:[%s1 + $0xe4] sm:$0xf]
    %v76 = vld [vmem:[%s1 + $0xe8] sm:$0xf]
    %v77 = vld [vmem:[%s1 + $0xec] sm:$0xf]
    %v78 = vld [vmem:[%s1 + $0xf0] sm:$0xf]
    %v79 = vld [vmem:[%s1 + $0xf4] sm:$0xf]
    %v80 = vld [vmem:[%s1 + $0xf8] sm:$0xf]
    %v81 = vld [vmem:[%s1 + $0xfc] sm:$0xf]
    %v82 = vld [vmem:[%s1 + $0x100] sm:$0xf]
    %v83 = vld [vmem:[%s1 + $0x104] sm:$0xf]
    %v84 = vld [vmem:[%s1 + $0x108] sm:$0xf]
    %v85 = vld [vmem:[%s1 + $0x10c] sm:$0xf]
    %v86 = vld [vmem:[%s1 + $0x110] sm:$0xf]
    %v87 = vld [vmem:[%s1 + $0x114] sm:$0xf]
    %v88 = vld [vmem:[%s1 + $0x118] sm:$0xf]
    %v89 = vld [vmem:[%s1 + $0x11c] sm:$0xf]
    %v90 = vld [vmem:[%s1 + $0x120] sm:$0xf]
    %v91 = vld [vmem:[%s1 + $0x124] sm:$0xf]
    %v92 = vld [vmem:[%s1 + $0x128] sm:$0xf]
    %v93 = vld [vmem:[%s1 + $0x12c] sm:$0xf]
    %v94 = vld [vmem:[%s1 + $0x130] sm:$0xf]
    %v95 = vld [vmem:[%s1 + $0x134] sm:$0xf]
    %v96 = vld [vmem:[%s1 + $0x138] sm:$0xf]
    %v97 = vld [vmem:[%s1 + $0x13c] sm:$0xf]
    %v98 = vld [vmem:[%s1 + $0x140] sm:$0xf]
    %v99 = vld [vmem:[%s1 + $0x144] sm:$0xf]
    %v100 = vld [vmem:[%s1 + $0x148] sm:$0xf]
    %v101 = vld [vmem:[%s1 + $0x14c] sm:$0xf]
    %v102 = vld [vmem:[%s1 + $0x150] sm:$0xf]
    %v103 = vld [vmem:[%s1 + $0x154] sm:$0xf]
    %v104 = vld [vmem:[%s1 + $0x158] sm:$0xf]
    %v105 = vld [vmem:[%s1 + $0x15c] sm:$0xf]
    %v106 = vld [vmem:[%s1 + $0x160] sm:$0xf]
    %v107 = vld [vmem:[%s1 + $0x164] sm:$0xf]
    %v108 = vld [vmem:[%s1 + $0x168] sm:$0xf]
    %v109 = vld [vmem:[%s1 + $0x16c] sm:$0xf]
    %v110 = vld [vmem:[%s1 + $0x170] sm:$0xf]
    %v111 = vld [vmem:[%s1 + $0x174] sm:$0xf]
    %v112 = vld [vmem:[%s1 + $0x178] sm:$0xf]
    %v113 = vld [vmem:[%s1 + $0x17c] sm:$0xf]
    %v114 = vld [vmem:[%s1 + $0x180] sm:$0xf]
    %v115 = vld [vmem:[%s1 + $0x184] sm:$0xf]
    %v116 = vld [vmem:[%s1 + $0x188] sm:$0xf]
    %v117 = vld [vmem:[%s1 + $0x18c] sm:$0xf]
    %v118 = vld [vmem:[%s1 + $0x190] sm:$0xf]
    %v119 = vld [vmem:[%s1 + $0x194] sm:$0xf]
    %v120 = vld [vmem:[%s1 + $0x198] sm:$0xf]
    %v121 = vld [vmem:[%s1 + $0x19c] sm:$0xf]
    %v122 = vld [vmem:[%s1 + $0x1a0] sm:$0xf]
    %v123 = vld [vmem:[%s1 + $0x1a4] sm:$0xf]
    %v124 = vld [vmem:[%s1 + $0x1a8] sm:$0xf]
    %v125 = vld [vmem:[%s1 + $0x1ac] sm:$0xf]
    %v126 = vld [vmem:[%s1 + $0x1b0] sm:$0xf]
    %v127 = vld [vmem:[%s1 + $0x1b4] sm:$0xf]
    %v128 = vld [vmem:[%s1 + $0x1b8] sm:$0xf]
    %v129 = vld [vmem:[%s1 + $0x1bc] sm:$0xf]
    %v130 = vld [vmem:[%s1 + $0x1c0] sm:$0xf]
    %v131 = vld [vmem:[%s1 + $0x1c4] sm:$0xf]
    %v132 = vld [vmem:[%s1 + $0x1c8] sm:$0xf]
    %v133 = vld [vmem:[%s1 + $0x1cc] sm:$0xf]
    %v134 = vld [vmem:[%s1 + $0x1d0] sm:$0xf]
    %v135 = vld [vmem:[%s1 + $0x1d4] sm:$0xf]
    %v136 = vld [vmem:[%s1 + $0x1d8] sm:$0xf]
    %v137 = vld [vmem:[%s1 + $0x1dc] sm:$0xf]
    %v138 = vld [vmem:[%s1 + $0x1e0] sm:$0xf]
    %v139 = vld [vmem:[%s1 + $0x1e4] sm:$0xf]
    %v140 = vld [vmem:[%s1 + $0x1e8] sm:$0xf]
    %v141 = vld [vmem:[%s1 + $0x1ec] sm:$0xf]
    %v142 = vld [vmem:[%s1 + $0x1f0] sm:$0xf]
    %v143 = vld [vmem:[%s1 + $0x1f4] sm:$0xf]
    %v144 = vld [vmem:[%s1 + $0x1f8] sm:$0xf]
    %v145 = vld [vmem:[%s1 + $0x1fc] sm:$0xf]
    %v146 = vld [vmem:[%s1 + $0x200] sm:$0xf]
    %v147 = vld [vmem:[%s1 + $0x204] sm:$0xf]
    %v148 = vld [vmem:[%s1 + $0x208] sm:$0xf]
    %v149 = vld [vmem:[%s1 + $0x20c] sm:$0xf]
    %v150 = vld [vmem:[%s1 + $0x210] sm:$0xf]
    %v151 = vld [vmem:[%s1 + $0x214] sm:$0xf]
    %v152 = vld [vmem:[%s1 + $0x218] sm:$0xf]
    %v153 = vld [vmem:[%s1 + $0x21c] sm:$0xf]
    %v154 = vld [vmem:[%s1 + $0x220] sm:$0xf]
    %v155 = vld [vmem:[%s1 + $0x224] sm:$0xf]
    %v156 = vld [vmem:[%s1 + $0x228] sm:$0xf]
    %v157 = vld [vmem:[%s1 + $0x22c] sm:$0xf]
    %v158 = vld [vmem:[%s1 + $0x230] sm:$0xf]
    %v159 = vld [vmem:[%s1 + $0x234] sm:$0xf]
    %v160 = vld [vmem:[%s1 + $0x238] sm:$0xf]
    %v161 = vld [vmem:[%s1 + $0x23c] sm:$0xf]
    %v162 = vld [vmem:[%s1 + $0x240] sm:$0xf]
    %v163 = vld [vmem:[%s1 + $0x244] sm:$0xf]
    %v164 = vld [vmem:[%s1 + $0x248] sm:$0xf]
    %v165 = vld [vmem:[%s1 + $0x24c] sm:$0xf]
    %v166 = vld [vmem:[%s1 + $0x250] sm:$0xf]
    %v167 = vld [vmem:[%s1 + $0x254] sm:$0xf]
    %v168 = vld [vmem:[%s1 + $0x258] sm:$0xf]
    %v169 = vld [vmem:[%s1 + $0x25c] sm:$0xf]
    %v170 = vld [vmem:[%s1 + $0x260] sm:$0xf]
    %v171 = vld [vmem:[%s1 + $0x264] sm:$0xf]
    %v172 = vld [vmem:[%s1 + $0x268] sm:$0xf]
    %v173 = vld [vmem:[%s1 + $0x26c] sm:$0xf]
    %v174 = vld [vmem:[%s1 + $0x270] sm:$0xf]
    %v175 = vld [vmem:[%s1 + $0x274] sm:$0xf]
    %v176 = vld [vmem:[%s1 + $0x278] sm:$0xf]
    %v177 = vld [vmem:[%s1 + $0x27c] sm:$0xf]
    %v178 = vld [vmem:[%s1 + $0x280] sm:$0xf]
    %v179 = vld [vmem:[%s1 + $0x284] sm:$0xf]
    %v180 = vld [vmem:[%s1 + $0x288] sm:$0xf]
    %v181 = vld [vmem:[%s1 + $0x28c] sm:$0xf]
    %v182 = vld [vmem:[%s1 + $0x290] sm:$0xf]
    %v183 = vld [vmem:[%s1 + $0x294] sm:$0xf]
    %v184 = vld [vmem:[%s1 + $0x298] sm:$0xf]
    %v185 = vld [vmem:[%s1 + $0x29c] sm:$0xf]
    %v186 = vld [vmem:[%s1 + $0x2a0] sm:$0xf]
    %v187 = vld [vmem:[%s1 + $0x2a4] sm:$0xf]
    %v188 = vld [vmem:[%s1 + $0x2a8] sm:$0xf]
    %v189 = vld [vmem:[%s1 + $0x2ac] sm:$0xf]
    %v190 = vld [vmem:[%s1 + $0x2b0] sm:$0xf]
    %v191 = vld [vmem:[%s1 + $0x2b4] sm:$0xf]
    %v192 = vld [vmem:[%s1 + $0x2b8] sm:$0xf]
    %v193 = vld [vmem:[%s1 + $0x2bc] sm:$0xf]
    %v194 = vld [vmem:[%s1 + $0x2c0] sm:$0xf]
    %v195 = vld [vmem:[%s1 + $0x2c4] sm:$0xf]
    %v196 = vld [vmem:[%s1 + $0x2c8] sm:$0xf]
    %v197 = vld [vmem:[%s1 + $0x2cc] sm:$0xf]
    %v198 = vld [vmem:[%s1 + $0x2d0] sm:$0xf]
    %v199 = vld [vmem:[%s1 + $0x2d4] sm:$0xf]
    %v200 = vld [vmem:[%s1 + $0x2d8] sm:$0xf]
    %v201 = vld [vmem:[%s1 + $0x2dc] sm:$0xf]
    %v202 = vld [vmem:[%s1 + $0x2e0] sm:$0xf]
    %v203 = vld [vmem:[%s1 + $0x2e4] sm:$0xf]
    %v204 = vld [vmem:[%s1 + $0x2e8] sm:$0xf]
    %v205 = vld [vmem:[%s1 + $0x2ec] sm:$0xf]
    %v206 = vld [vmem:[%s1 + $0x2f0] sm:$0xf]
    %v207 = vld [vmem:[%s1 + $0x2f4] sm:$0xf]
    %v208 = vld [vmem:[%s1 + $0x2f8] sm:$0xf]
    %v209 = vld [vmem:[%s1 + $0x2fc] sm:$0xf]
    %v210 = vld [vmem:[%s1 + $0x300] sm:$0xf]
    %v211 = vld [vmem:[%s1 + $0x304] sm:$0xf]
    %v212 = vld [vmem:[%s1 + $0x308] sm:$0xf]
    %v213 = vld [vmem:[%s1 + $0x30c] sm:$0xf]
    %v214 = vld [vmem:[%s1 + $0x310] sm:$0xf]
    %v215 = vld [vmem:[%s1 + $0x314] sm:$0xf]
    %v216 = vld [vmem:[%s1 + $0x318] sm:$0xf]
    %v217 = vld [vmem:[%s1 + $0x31c] sm:$0xf]
    %v218 = vld [vmem:[%s2] sm:$0x1]
    %v220 = vlaneseq
    %v221 = vshrl.u32 %v220, 7
    %v222 = vsub.s32 0, %v221
    %v223 = vrot.slane %v218, %v222
    %v227 = vcombine.high %v16, %v16
    %v229 = vunpack.c.l.s4 1966171168
    %v230 = vunpack.c.0.s8 %v229
    %v231 = vlaneseq
    %v232 = vshrl.u32 %v231, 7
    %v233 = vsub.s32 %v230, %v232
    %v234 = vrot.slane %v16, %v233
    %v236 = vunpack.c.l.s4 1966171168
    %v237 = vunpack.c.0.s8 %v236
    %v238 = vlaneseq
    %v239 = vshrl.u32 %v238, 7
    %v240 = vsub.s32 %v237, %v239
    %v241 = vrot.slane %v227, %v240
    %v242 = vcombine.high %v234, %v234
    %v243 = vcombine.high %v241, %v241
    %v245 = vunpack.c.l.s4 1966171168
    %v246 = vunpack.c.0.s8 %v245
    %v247 = vlaneseq
    %v248 = vshrl.u32 %v247, 7
    %v249 = vsub.s32 %v246, %v248
    %v250 = vrot.slane %v234, %v249
    %v252 = vunpack.c.l.s4 1966171168
    %v253 = vunpack.c.0.s8 %v252
    %v254 = vlaneseq
    %v255 = vshrl.u32 %v254, 7
    %v256 = vsub.s32 %v253, %v255
    %v257 = vrot.slane %v241, %v256
    %v259 = vunpack.c.l.s4 1966171168
    %v260 = vunpack.c.0.s8 %v259
    %v261 = vlaneseq
    %v262 = vshrl.u32 %v261, 7
    %v263 = vsub.s32 %v260, %v262
    %v264 = vrot.slane %v242, %v263
    %v266 = vunpack.c.l.s4 1966171168
    %v267 = vunpack.c.0.s8 %v266
    %v268 = vlaneseq
    %v269 = vshrl.u32 %v268, 7
    %v270 = vsub.s32 %v267, %v269
    %v271 = vrot.slane %v243, %v270
    %v272 = vcombine.high %v250, %v250
    %v273 = vcombine.high %v257, %v257
    %v274 = vcombine.high %v264, %v264
    %v275 = vcombine.high %v271, %v271
    %v276 = vcombine.high %v17, %v17
    %v278 = vunpack.c.l.s4 1966171168
    %v279 = vunpack.c.0.s8 %v278
    %v280 = vlaneseq
    %v281 = vshrl.u32 %v280, 7
    %v282 = vsub.s32 %v279, %v281
    %v283 = vrot.slane %v17, %v282
    %v285 = vunpack.c.l.s4 1966171168
    %v286 = vunpack.c.0.s8 %v285
    %v287 = vlaneseq
    %v288 = vshrl.u32 %v287, 7
    %v289 = vsub.s32 %v286, %v288
    %v290 = vrot.slane %v276, %v289
    %v291 = vcombine.high %v283, %v283
    %v293 = vunpack.c.l.s4 1966171168
    %v294 = vunpack.c.0.s8 %v293
    %v295 = vlaneseq
    %v296 = vshrl.u32 %v295, 7
    %v297 = vsub.s32 %v294, %v296
    %v298 = vrot.slane %v283, %v297
    %v300 = vunpack.c.l.s4 1966171168
    %v301 = vunpack.c.0.s8 %v300
    %v302 = vlaneseq
    %v303 = vshrl.u32 %v302, 7
    %v304 = vsub.s32 %v301, %v303
    %v305 = vrot.slane %v290, %v304
    %v307 = vunpack.c.l.s4 1966171168
    %v308 = vunpack.c.0.s8 %v307
    %v309 = vlaneseq
    %v310 = vshrl.u32 %v309, 7
    %v311 = vsub.s32 %v308, %v310
    %v312 = vrot.slane %v291, %v311
    %v313 = vcombine.high %v298, %v298
    %v314 = vcombine.high %v312, %v312
    %v527 = vunpack.c.l.b16 %v18
    %v528 = vunpack.c.l.b16 %v19
    %v529 = vunpack.c.l.b16 %v20
    %v530 = vunpack.c.l.b16 %v21
    %v531 = vunpack.c.l.b16 %v22
    %v532 = vunpack.c.l.b16 %v23
    %v533 = vunpack.c.l.b16 %v24
    %v534 = vunpack.c.l.b16 %v25
    %v535 = vunpack.c.l.b16 %v26
    %v536 = vunpack.c.l.b16 %v27
    %v537 = vunpack.c.l.b16 %v28
    %v538 = vunpack.c.l.b16 %v29
    %v539 = vunpack.c.l.b16 %v30
    %v540 = vunpack.c.l.b16 %v31
    %v541 = vunpack.c.l.b16 %v32
    %v542 = vunpack.c.l.b16 %v33
    %v543 = vunpack.c.l.b16 %v34
    %v544 = vunpack.c.l.b16 %v35
    %v545 = vunpack.c.l.b16 %v36
    %v546 = vunpack.c.l.b16 %v37
    %v547 = vunpack.c.l.b16 %v38
    %v548 = vunpack.c.l.b16 %v39
    %v549 = vunpack.c.l.b16 %v40
    %v550 = vunpack.c.l.b16 %v41
    %v551 = vunpack.c.l.b16 %v42
    %v552 = vunpack.c.l.b16 %v43
    %v553 = vunpack.c.l.b16 %v44
    %v554 = vunpack.c.l.b16 %v45
    %v555 = vunpack.c.l.b16 %v46
    %v556 = vunpack.c.l.b16 %v47
    %v557 = vunpack.c.l.b16 %v48
    %v558 = vunpack.c.l.b16 %v49
    %v559 = vunpack.c.l.b16 %v50
    %v560 = vunpack.c.l.b16 %v51
    %v561 = vunpack.c.l.b16 %v52
    %v562 = vunpack.c.l.b16 %v53
    %v563 = vunpack.c.l.b16 %v54
    %v564 = vunpack.c.l.b16 %v55
    %v565 = vunpack.c.l.b16 %v56
    %v566 = vunpack.c.l.b16 %v57
    %v567 = vunpack.c.l.b16 %v58
    %v568 = vunpack.c.l.b16 %v59
    %v569 = vunpack.c.l.b16 %v60
    %v570 = vunpack.c.l.b16 %v61
    %v571 = vunpack.c.l.b16 %v62
    %v572 = vunpack.c.l.b16 %v63
    %v573 = vunpack.c.l.b16 %v64
    %v574 = vunpack.c.l.b16 %v65
    %v575 = vunpack.c.l.b16 %v66
    %v576 = vunpack.c.l.b16 %v67
    %v577 = vunpack.c.l.b16 %v68
    %v578 = vunpack.c.l.b16 %v69
    %v579 = vunpack.c.l.b16 %v70
    %v580 = vunpack.c.l.b16 %v71
    %v581 = vunpack.c.l.b16 %v72
    %v582 = vunpack.c.l.b16 %v73
    %v583 = vunpack.c.l.b16 %v74
    %v584 = vunpack.c.l.b16 %v75
    %v585 = vunpack.c.l.b16 %v76
    %v586 = vunpack.c.l.b16 %v77
    %v587 = vunpack.c.l.b16 %v78
    %v588 = vunpack.c.l.b16 %v79
    %v589 = vunpack.c.l.b16 %v80
    %v590 = vunpack.c.l.b16 %v81
    %v591 = vunpack.c.l.b16 %v82
    %v592 = vunpack.c.l.b16 %v83
    %v593 = vunpack.c.l.b16 %v84
    %v594 = vunpack.c.l.b16 %v85
    %v595 = vunpack.c.l.b16 %v86
    %v596 = vunpack.c.l.b16 %v87
    %v597 = vunpack.c.l.b16 %v88
    %v598 = vunpack.c.l.b16 %v89
    %v599 = vunpack.c.l.b16 %v90
    %v600 = vunpack.c.l.b16 %v91
    %v601 = vunpack.c.l.b16 %v92
    %v602 = vunpack.c.l.b16 %v93
    %v603 = vunpack.c.l.b16 %v94
    %v604 = vunpack.c.l.b16 %v95
    %v605 = vunpack.c.l.b16 %v96
    %v606 = vunpack.c.l.b16 %v97
    %v607 = vunpack.c.l.b16 %v98
    %v608 = vunpack.c.l.b16 %v99
    %v609 = vunpack.c.l.b16 %v100
    %v610 = vunpack.c.l.b16 %v101
    %v611 = vunpack.c.l.b16 %v102
    %v612 = vunpack.c.l.b16 %v103
    %v613 = vunpack.c.l.b16 %v104
    %v614 = vunpack.c.l.b16 %v105
    %v615 = vunpack.c.l.b16 %v106
    %v616 = vunpack.c.l.b16 %v107
    %v617 = vunpack.c.l.b16 %v108
    %v618 = vunpack.c.l.b16 %v109
    %v619 = vunpack.c.l.b16 %v110
    %v620 = vunpack.c.l.b16 %v111
    %v621 = vunpack.c.l.b16 %v112
    %v622 = vunpack.c.l.b16 %v113
    %v623 = vunpack.c.l.b16 %v114
    %v624 = vunpack.c.l.b16 %v115
    %v625 = vunpack.c.l.b16 %v116
    %v626 = vunpack.c.l.b16 %v117
    %v627 = vunpack.c.l.b16 %v118
    %v628 = vunpack.c.l.b16 %v119
    %v629 = vunpack.c.l.b16 %v120
    %v630 = vunpack.c.l.b16 %v121
    %v631 = vunpack.c.l.b16 %v122
    %v632 = vunpack.c.l.b16 %v123
    %v633 = vunpack.c.l.b16 %v124
    %v634 = vunpack.c.l.b16 %v125
    %v635 = vunpack.c.l.b16 %v126
    %v636 = vunpack.c.l.b16 %v127
    %v637 = vunpack.c.l.b16 %v128
    %v638 = vunpack.c.l.b16 %v129
    %v639 = vunpack.c.l.b16 %v130
    %v640 = vunpack.c.l.b16 %v131
    %v641 = vunpack.c.l.b16 %v132
    %v642 = vunpack.c.l.b16 %v133
    %v643 = vunpack.c.l.b16 %v134
    %v644 = vunpack.c.l.b16 %v135
    %v645 = vunpack.c.l.b16 %v136
    %v646 = vunpack.c.l.b16 %v137
    %v647 = vunpack.c.l.b16 %v138
    %v648 = vunpack.c.l.b16 %v139
    %v649 = vunpack.c.l.b16 %v140
    %v650 = vunpack.c.l.b16 %v141
    %v651 = vunpack.c.l.b16 %v142
    %v652 = vunpack.c.l.b16 %v143
    %v653 = vunpack.c.l.b16 %v144
    %v654 = vunpack.c.l.b16 %v145
    %v655 = vunpack.c.l.b16 %v146
    %v656 = vunpack.c.l.b16 %v147
    %v657 = vunpack.c.l.b16 %v148
    %v658 = vunpack.c.l.b16 %v149
    %v659 = vunpack.c.l.b16 %v150
    %v660 = vunpack.c.l.b16 %v151
    %v661 = vunpack.c.l.b16 %v152
    %v662 = vunpack.c.l.b16 %v153
    %v663 = vunpack.c.l.b16 %v154
    %v664 = vunpack.c.l.b16 %v155
    %v665 = vunpack.c.l.b16 %v156
    %v666 = vunpack.c.l.b16 %v157
    %v667 = vunpack.c.l.b16 %v158
    %v668 = vunpack.c.l.b16 %v159
    %v669 = vunpack.c.l.b16 %v160
    %v670 = vunpack.c.l.b16 %v161
    %v671 = vunpack.c.l.b16 %v162
    %v672 = vunpack.c.l.b16 %v163
    %v673 = vunpack.c.l.b16 %v164
    %v674 = vunpack.c.l.b16 %v165
    %v675 = vunpack.c.l.b16 %v166
    %v676 = vunpack.c.l.b16 %v167
    %v677 = vunpack.c.l.b16 %v168
    %v678 = vunpack.c.l.b16 %v169
    %v679 = vunpack.c.l.b16 %v170
    %v680 = vunpack.c.l.b16 %v171
    %v681 = vunpack.c.l.b16 %v172
    %v682 = vunpack.c.l.b16 %v173
    %v683 = vunpack.c.l.b16 %v174
    %v684 = vunpack.c.l.b16 %v175
    %v685 = vunpack.c.l.b16 %v176
    %v686 = vunpack.c.l.b16 %v177
    %v687 = vunpack.c.l.b16 %v178
    %v688 = vunpack.c.l.b16 %v179
    %v689 = vunpack.c.l.b16 %v180
    %v690 = vunpack.c.l.b16 %v181
    %v691 = vunpack.c.l.b16 %v182
    %v692 = vunpack.c.l.b16 %v183
    %v693 = vunpack.c.l.b16 %v184
    %v694 = vunpack.c.l.b16 %v185
    %v695 = vunpack.c.l.b16 %v186
    %v696 = vunpack.c.l.b16 %v187
    %v697 = vunpack.c.l.b16 %v188
    %v698 = vunpack.c.l.b16 %v189
    %v699 = vunpack.c.l.b16 %v190
    %v700 = vunpack.c.l.b16 %v191
    %v701 = vunpack.c.l.b16 %v192
    %v702 = vunpack.c.l.b16 %v193
    %v703 = vunpack.c.l.b16 %v194
    %v704 = vunpack.c.l.b16 %v195
    %v705 = vunpack.c.l.b16 %v196
    %v706 = vunpack.c.l.b16 %v197
    %v707 = vunpack.c.l.b16 %v198
    %v708 = vunpack.c.l.b16 %v199
    %v709 = vunpack.c.l.b16 %v200
    %v710 = vunpack.c.l.b16 %v201
    %v711 = vunpack.c.l.b16 %v202
    %v712 = vunpack.c.l.b16 %v203
    %v713 = vunpack.c.l.b16 %v204
    %v714 = vunpack.c.l.b16 %v205
    %v715 = vunpack.c.l.b16 %v206
    %v716 = vunpack.c.l.b16 %v207
    %v717 = vunpack.c.l.b16 %v208
    %v718 = vunpack.c.l.b16 %v209
    %v719 = vunpack.c.l.b16 %v210
    %v720 = vunpack.c.l.b16 %v211
    %v721 = vunpack.c.l.b16 %v212
    %v722 = vunpack.c.l.b16 %v213
    %v723 = vunpack.c.l.b16 %v214
    %v724 = vunpack.c.l.b16 %v215
    %v725 = vunpack.c.l.b16 %v216
    %v726 = vunpack.c.l.b16 %v217
    %v727 = vpack.c.b16 %v528, %v527
    %v728 = vpack.c.b16 %v530, %v529
    %v729 = vpack.c.b16 %v532, %v531
    %v730 = vpack.c.b16 %v534, %v533
    %v731 = vpack.c.b16 %v536, %v535
    %v732 = vpack.c.b16 %v538, %v537
    %v733 = vpack.c.b16 %v540, %v539
    %v734 = vpack.c.b16 %v542, %v541
    %v735 = vpack.c.b16 %v544, %v543
    %v736 = vpack.c.b16 %v546, %v545
    %v737 = vpack.c.b16 %v548, %v547
    %v738 = vpack.c.b16 %v550, %v549
    %v739 = vpack.c.b16 %v552, %v551
    %v740 = vpack.c.b16 %v554, %v553
    %v741 = vpack.c.b16 %v556, %v555
    %v742 = vpack.c.b16 %v558, %v557
    %v743 = vpack.c.b16 %v560, %v559
    %v744 = vpack.c.b16 %v562, %v561
    %v745 = vpack.c.b16 %v564, %v563
    %v746 = vpack.c.b16 %v566, %v565
    %v747 = vpack.c.b16 %v568, %v567
    %v748 = vpack.c.b16 %v570, %v569
    %v749 = vpack.c.b16 %v572, %v571
    %v750 = vpack.c.b16 %v574, %v573
    %v751 = vpack.c.b16 %v576, %v575
    %v752 = vpack.c.b16 %v578, %v577
    %v753 = vpack.c.b16 %v580, %v579
    %v754 = vpack.c.b16 %v582, %v581
    %v755 = vpack.c.b16 %v584, %v583
    %v756 = vpack.c.b16 %v586, %v585
    %v757 = vpack.c.b16 %v588, %v587
    %v758 = vpack.c.b16 %v590, %v589
    %v759 = vpack.c.b16 %v592, %v591
    %v760 = vpack.c.b16 %v594, %v593
    %v761 = vpack.c.b16 %v596, %v595
    %v762 = vpack.c.b16 %v598, %v597
    %v763 = vpack.c.b16 %v600, %v599
    %v764 = vpack.c.b16 %v602, %v601
    %v765 = vpack.c.b16 %v604, %v603
    %v766 = vpack.c.b16 %v606, %v605
    %v767 = vpack.c.b16 %v608, %v607
    %v768 = vpack.c.b16 %v610, %v609
    %v769 = vpack.c.b16 %v612, %v611
    %v770 = vpack.c.b16 %v614, %v613
    %v771 = vpack.c.b16 %v616, %v615
    %v772 = vpack.c.b16 %v618, %v617
    %v773 = vpack.c.b16 %v620, %v619
    %v774 = vpack.c.b16 %v622, %v621
    %v775 = vpack.c.b16 %v624, %v623
    %v776 = vpack.c.b16 %v626, %v625
    %v777 = vpack.c.b16 %v628, %v627
    %v778 = vpack.c.b16 %v630, %v629
    %v779 = vpack.c.b16 %v632, %v631
    %v780 = vpack.c.b16 %v634, %v633
    %v781 = vpack.c.b16 %v636, %v635
    %v782 = vpack.c.b16 %v638, %v637
    %v783 = vpack.c.b16 %v640, %v639
    %v784 = vpack.c.b16 %v642, %v641
    %v785 = vpack.c.b16 %v644, %v643
    %v786 = vpack.c.b16 %v646, %v645
    %v787 = vpack.c.b16 %v648, %v647
    %v788 = vpack.c.b16 %v650, %v649
    %v789 = vpack.c.b16 %v652, %v651
    %v790 = vpack.c.b16 %v654, %v653
    %v791 = vpack.c.b16 %v656, %v655
    %v792 = vpack.c.b16 %v658, %v657
    %v793 = vpack.c.b16 %v660, %v659
    %v794 = vpack.c.b16 %v662, %v661
    %v795 = vpack.c.b16 %v664, %v663
    %v796 = vpack.c.b16 %v666, %v665
    %v797 = vpack.c.b16 %v668, %v667
    %v798 = vpack.c.b16 %v670, %v669
    %v799 = vpack.c.b16 %v672, %v671
    %v800 = vpack.c.b16 %v674, %v673
    %v801 = vpack.c.b16 %v676, %v675
    %v802 = vpack.c.b16 %v678, %v677
    %v803 = vpack.c.b16 %v680, %v679
    %v804 = vpack.c.b16 %v682, %v681
    %v805 = vpack.c.b16 %v684, %v683
    %v806 = vpack.c.b16 %v686, %v685
    %v807 = vpack.c.b16 %v688, %v687
    %v808 = vpack.c.b16 %v690, %v689
    %v809 = vpack.c.b16 %v692, %v691
    %v810 = vpack.c.b16 %v694, %v693
    %v811 = vpack.c.b16 %v696, %v695
    %v812 = vpack.c.b16 %v698, %v697
    %v813 = vpack.c.b16 %v700, %v699
    %v814 = vpack.c.b16 %v702, %v701
    %v815 = vpack.c.b16 %v704, %v703
    %v816 = vpack.c.b16 %v706, %v705
    %v817 = vpack.c.b16 %v708, %v707
    %v818 = vpack.c.b16 %v710, %v709
    %v819 = vpack.c.b16 %v712, %v711
    %v820 = vpack.c.b16 %v714, %v713
    %v821 = vpack.c.b16 %v716, %v715
    %v822 = vpack.c.b16 %v718, %v717
    %v823 = vpack.c.b16 %v720, %v719
    %v824 = vpack.c.b16 %v722, %v721
    %v825 = vpack.c.b16 %v724, %v723
    %v826 = vpack.c.b16 %v726, %v725
    %vm927 = vcmask 523264
    %v929 = vsel %vm927, %v305, 0
    %931 = vmatprep.subr.bf16.mxu0 0
    %932 = vmatpush1.bf16.msra.mxu0 %v727
    %933 = vmatprep.subr.bf16.mxu0 0
    %934 = vmatpush1.bf16.msra.mxu0 %v728
    %935 = vmatprep.subr.bf16.mxu0 0
    %936 = vmatpush1.bf16.msra.mxu0 %v729
    %937 = vmatprep.subr.bf16.mxu0 0
    %938 = vmatpush1.bf16.msra.mxu0 %v730
    %939 = vmatprep.subr.bf16.mxu0 0
    %940 = vmatpush1.bf16.msra.mxu0 %v731
    %941 = vmatprep.subr.bf16.mxu0 0
    %942 = vmatpush1.bf16.msra.mxu0 %v732
    %943 = vmatprep.subr.bf16.mxu0 0
    %944 = vmatpush1.bf16.msra.mxu0 %v733
    %945 = vmatprep.subr.bf16.mxu0 0
    %946 = vmatpush1.bf16.msra.mxu0 %v734
    %947 = vmatprep.subr.bf16.mxu0 0
    %948 = vmatpush1.bf16.msra.mxu0 %v735
    %949 = vmatprep.subr.bf16.mxu0 0
    %950 = vmatpush1.bf16.msra.mxu0 %v736
    %951 = vmatprep.subr.bf16.mxu0 0
    %952 = vmatpush1.bf16.msra.mxu0 %v737
    %953 = vmatprep.subr.bf16.mxu0 0
    %954 = vmatpush1.bf16.msra.mxu0 %v738
    %955 = vmatprep.subr.bf16.mxu0 0
    %956 = vmatpush1.bf16.msra.mxu0 %v739
    %957 = vmatprep.subr.bf16.mxu0 0
    %958 = vmatpush1.bf16.msra.mxu0 %v740
    %959 = vmatprep.subr.bf16.mxu0 0
    %960 = vmatpush1.bf16.msra.mxu0 %v741
    %961 = vmatprep.subr.bf16.mxu0 0
    %962 = vmatpush1.bf16.msra.mxu0 %v742
    %963 = vmatprep.mubr.bf16.mxu0 %v264
    %964 = vmatmul.mubr.bf16.gmra.mrb[0].mxu0 %v250
    %v965 = vpop.f32.mrb[0].mxu0
    %v966 = vadd.f32 %v223, %v965
    %v967 = vpop.f32.mrb[0].mxu0
    %v968 = vpop.f32.mrb[0].mxu0
    %v969 = vpop.f32.mrb[0].mxu0
    %970 = vdwg.mxu0
    %971 = vmatprep.subr.bf16.mxu0 0
    %972 = vmatpush1.bf16.msra.mxu0 %v743
    %973 = vmatprep.subr.bf16.mxu0 0
    %974 = vmatpush1.bf16.msra.mxu0 %v744
    %975 = vmatprep.subr.bf16.mxu0 0
    %976 = vmatpush1.bf16.msra.mxu0 %v745
    %977 = vmatprep.subr.bf16.mxu0 0
    %978 = vmatpush1.bf16.msra.mxu0 %v746
    %979 = vmatprep.subr.bf16.mxu0 0
    %980 = vmatpush1.bf16.msra.mxu0 %v747
    %981 = vmatprep.subr.bf16.mxu0 0
    %982 = vmatpush1.bf16.msra.mxu0 %v748
    %983 = vmatprep.subr.bf16.mxu0 0
    %984 = vmatpush1.bf16.msra.mxu0 %v749
    %985 = vmatprep.subr.bf16.mxu0 0
    %986 = vmatpush1.bf16.msra.mxu0 %v750
    %987 = vmatprep.subr.bf16.mxu0 0
    %988 = vmatpush1.bf16.msra.mxu0 %v751
    %989 = vmatprep.subr.bf16.mxu0 0
    %990 = vmatpush1.bf16.msra.mxu0 %v752
    %991 = vmatprep.subr.bf16.mxu0 0
    %992 = vmatpush1.bf16.msra.mxu0 %v753
    %993 = vmatprep.subr.bf16.mxu0 0
    %994 = vmatpush1.bf16.msra.mxu0 %v754
    %995 = vmatprep.subr.bf16.mxu0 0
    %996 = vmatpush1.bf16.msra.mxu0 %v755
    %997 = vmatprep.subr.bf16.mxu0 0
    %998 = vmatpush1.bf16.msra.mxu0 %v756
    %999 = vmatprep.subr.bf16.mxu0 0
    %1000 = vmatpush1.bf16.msra.mxu0 %v757
    %1001 = vmatprep.subr.bf16.mxu0 0
    %1002 = vmatpush1.bf16.msra.mxu0 %v758
    %1003 = vmatprep.mubr.bf16.mxu0 %v274
    %1004 = vmatmul.mubr.bf16.gmra.mrb[0].mxu0 %v272
    %v1005 = vpop.f32.mrb[0].mxu0
    %v1006 = vadd.f32 %v966, %v1005
    %v1007 = vpop.f32.mrb[0].mxu0
    %v1008 = vpop.f32.mrb[0].mxu0
    %v1009 = vpop.f32.mrb[0].mxu0
    %1010 = vdwg.mxu0
    %1011 = vmatprep.subr.bf16.mxu0 0
    %1012 = vmatpush1.bf16.msra.mxu0 %v759
    %1013 = vmatprep.subr.bf16.mxu0 0
    %1014 = vmatpush1.bf16.msra.mxu0 %v760
    %1015 = vmatprep.subr.bf16.mxu0 0
    %1016 = vmatpush1.bf16.msra.mxu0 %v761
    %1017 = vmatprep.subr.bf16.mxu0 0
    %1018 = vmatpush1.bf16.msra.mxu0 %v762
    %1019 = vmatprep.subr.bf16.mxu0 0
    %1020 = vmatpush1.bf16.msra.mxu0 %v763
    %1021 = vmatprep.subr.bf16.mxu0 0
    %1022 = vmatpush1.bf16.msra.mxu0 %v764
    %1023 = vmatprep.subr.bf16.mxu0 0
    %1024 = vmatpush1.bf16.msra.mxu0 %v765
    %1025 = vmatprep.subr.bf16.mxu0 0
    %1026 = vmatpush1.bf16.msra.mxu0 %v766
    %1027 = vmatprep.subr.bf16.mxu0 0
    %1028 = vmatpush1.bf16.msra.mxu0 %v767
    %1029 = vmatprep.subr.bf16.mxu0 0
    %1030 = vmatpush1.bf16.msra.mxu0 %v768
    %1031 = vmatprep.subr.bf16.mxu0 0
    %1032 = vmatpush1.bf16.msra.mxu0 %v769
    %1033 = vmatprep.subr.bf16.mxu0 0
    %1034 = vmatpush1.bf16.msra.mxu0 %v770
    %1035 = vmatprep.subr.bf16.mxu0 0
    %1036 = vmatpush1.bf16.msra.mxu0 %v771
    %1037 = vmatprep.subr.bf16.mxu0 0
    %1038 = vmatpush1.bf16.msra.mxu0 %v772
    %1039 = vmatprep.subr.bf16.mxu0 0
    %1040 = vmatpush1.bf16.msra.mxu0 %v773
    %1041 = vmatprep.subr.bf16.mxu0 0
    %1042 = vmatpush1.bf16.msra.mxu0 %v774
    %1043 = vmatprep.mubr.bf16.mxu0 %v271
    %1044 = vmatmul.mubr.bf16.gmra.mrb[0].mxu0 %v257
    %v1045 = vpop.f32.mrb[0].mxu0
    %v1046 = vadd.f32 %v1006, %v1045
    %v1047 = vpop.f32.mrb[0].mxu0
    %v1048 = vpop.f32.mrb[0].mxu0
    %v1049 = vpop.f32.mrb[0].mxu0
    %1050 = vdwg.mxu0
    %1051 = vmatprep.subr.bf16.mxu0 0
    %1052 = vmatpush1.bf16.msra.mxu0 %v775
    %1053 = vmatprep.subr.bf16.mxu0 0
    %1054 = vmatpush1.bf16.msra.mxu0 %v776
    %1055 = vmatprep.subr.bf16.mxu0 0
    %1056 = vmatpush1.bf16.msra.mxu0 %v777
    %1057 = vmatprep.subr.bf16.mxu0 0
    %1058 = vmatpush1.bf16.msra.mxu0 %v778
    %1059 = vmatprep.subr.bf16.mxu0 0
    %1060 = vmatpush1.bf16.msra.mxu0 %v779
    %1061 = vmatprep.subr.bf16.mxu0 0
    %1062 = vmatpush1.bf16.msra.mxu0 %v780
    %1063 = vmatprep.subr.bf16.mxu0 0
    %1064 = vmatpush1.bf16.msra.mxu0 %v781
    %1065 = vmatprep.subr.bf16.mxu0 0
    %1066 = vmatpush1.bf16.msra.mxu0 %v782
    %1067 = vmatprep.subr.bf16.mxu0 0
    %1068 = vmatpush1.bf16.msra.mxu0 %v783
    %1069 = vmatprep.subr.bf16.mxu0 0
    %1070 = vmatpush1.bf16.msra.mxu0 %v784
    %1071 = vmatprep.subr.bf16.mxu0 0
    %1072 = vmatpush1.bf16.msra.mxu0 %v785
    %1073 = vmatprep.subr.bf16.mxu0 0
    %1074 = vmatpush1.bf16.msra.mxu0 %v786
    %1075 = vmatprep.subr.bf16.mxu0 0
    %1076 = vmatpush1.bf16.msra.mxu0 %v787
    %1077 = vmatprep.subr.bf16.mxu0 0
    %1078 = vmatpush1.bf16.msra.mxu0 %v788
    %1079 = vmatprep.subr.bf16.mxu0 0
    %1080 = vmatpush1.bf16.msra.mxu0 %v789
    %1081 = vmatprep.subr.bf16.mxu0 0
    %1082 = vmatpush1.bf16.msra.mxu0 %v790
    %1083 = vmatprep.mubr.bf16.mxu0 %v275
    %1084 = vmatmul.mubr.bf16.gmra.mrb[0].mxu0 %v273
    %v1085 = vpop.f32.mrb[0].mxu0
    %v1086 = vadd.f32 %v1046, %v1085
    %v1087 = vpop.f32.mrb[0].mxu0
    %v1088 = vpop.f32.mrb[0].mxu0
    %v1089 = vpop.f32.mrb[0].mxu0
    %1090 = vdwg.mxu0
    %1091 = vmatprep.subr.bf16.mxu0 0
    %1092 = vmatpush1.bf16.msra.mxu0 %v791
    %1093 = vmatprep.subr.bf16.mxu0 0
    %1094 = vmatpush1.bf16.msra.mxu0 %v792
    %1095 = vmatprep.subr.bf16.mxu0 0
    %1096 = vmatpush1.bf16.msra.mxu0 %v793
    %1097 = vmatprep.subr.bf16.mxu0 0
    %1098 = vmatpush1.bf16.msra.mxu0 %v794
    %1099 = vmatprep.subr.bf16.mxu0 0
    %1100 = vmatpush1.bf16.msra.mxu0 %v795
    %1101 = vmatprep.subr.bf16.mxu0 0
    %1102 = vmatpush1.bf16.msra.mxu0 %v796
    %1103 = vmatprep.subr.bf16.mxu0 0
    %1104 = vmatpush1.bf16.msra.mxu0 %v797
    %1105 = vmatprep.subr.bf16.mxu0 0
    %1106 = vmatpush1.bf16.msra.mxu0 %v798
    %1107 = vmatprep.subr.bf16.mxu0 0
    %1108 = vmatpush1.bf16.msra.mxu0 %v799
    %1109 = vmatprep.subr.bf16.mxu0 0
    %1110 = vmatpush1.bf16.msra.mxu0 %v800
    %1111 = vmatprep.subr.bf16.mxu0 0
    %1112 = vmatpush1.bf16.msra.mxu0 %v801
    %1113 = vmatprep.subr.bf16.mxu0 0
    %1114 = vmatpush1.bf16.msra.mxu0 %v802
    %1115 = vmatprep.subr.bf16.mxu0 0
    %1116 = vmatpush1.bf16.msra.mxu0 %v803
    %1117 = vmatprep.subr.bf16.mxu0 0
    %1118 = vmatpush1.bf16.msra.mxu0 %v804
    %1119 = vmatprep.subr.bf16.mxu0 0
    %1120 = vmatpush1.bf16.msra.mxu0 %v805
    %1121 = vmatprep.subr.bf16.mxu0 0
    %1122 = vmatpush1.bf16.msra.mxu0 %v806
    %1123 = vmatprep.mubr.bf16.mxu0 %v312
    %1124 = vmatmul.mubr.bf16.gmra.mrb[0].mxu0 %v298
    %v1125 = vpop.f32.mrb[0].mxu0
    %v1126 = vadd.f32 %v1086, %v1125
    %v1127 = vpop.f32.mrb[0].mxu0
    %v1128 = vpop.f32.mrb[0].mxu0
    %v1129 = vpop.f32.mrb[0].mxu0
    %1130 = vdwg.mxu0
    %1131 = vmatprep.subr.bf16.mxu0 0
    %1132 = vmatpush1.bf16.msra.mxu0 %v807
    %1133 = vmatprep.subr.bf16.mxu0 0
    %1134 = vmatpush1.bf16.msra.mxu0 %v808
    %1135 = vmatprep.subr.bf16.mxu0 0
    %1136 = vmatpush1.bf16.msra.mxu0 %v809
    %1137 = vmatprep.subr.bf16.mxu0 0
    %1138 = vmatpush1.bf16.msra.mxu0 %v810
    %1139 = vmatprep.subr.bf16.mxu0 0
    %1140 = vmatpush1.bf16.msra.mxu0 %v811
    %1141 = vmatprep.subr.bf16.mxu0 0
    %1142 = vmatpush1.bf16.msra.mxu0 %v812
    %1143 = vmatprep.subr.bf16.mxu0 0
    %1144 = vmatpush1.bf16.msra.mxu0 %v813
    %1145 = vmatprep.subr.bf16.mxu0 0
    %1146 = vmatpush1.bf16.msra.mxu0 %v814
    %1147 = vmatprep.subr.bf16.mxu0 0
    %1148 = vmatpush1.bf16.msra.mxu0 %v815
    %1149 = vmatprep.subr.bf16.mxu0 0
    %1150 = vmatpush1.bf16.msra.mxu0 %v816
    %1151 = vmatprep.subr.bf16.mxu0 0
    %1152 = vmatpush1.bf16.msra.mxu0 %v817
    %1153 = vmatprep.subr.bf16.mxu0 0
    %1154 = vmatpush1.bf16.msra.mxu0 %v818
    %1155 = vmatprep.subr.bf16.mxu0 0
    %1156 = vmatpush1.bf16.msra.mxu0 %v819
    %1157 = vmatprep.subr.bf16.mxu0 0
    %1158 = vmatpush1.bf16.msra.mxu0 %v820
    %1159 = vmatprep.subr.bf16.mxu0 0
    %1160 = vmatpush1.bf16.msra.mxu0 %v821
    %1161 = vmatprep.subr.bf16.mxu0 0
    %1162 = vmatpush1.bf16.msra.mxu0 %v822
    %1163 = vmatprep.mubr.bf16.mxu0 %v314
    %1164 = vmatmul.mubr.bf16.gmra.mrb[0].mxu0 %v313
    %v1165 = vpop.f32.mrb[0].mxu0
    %v1166 = vadd.f32 %v1126, %v1165
    %v1167 = vpop.f32.mrb[0].mxu0
    %v1168 = vpop.f32.mrb[0].mxu0
    %v1169 = vpop.f32.mrb[0].mxu0
    %1170 = vdwg.mxu0
    %1171 = vmatprep.subr.bf16.mxu0 0
    %1172 = vmatpush1.bf16.msra.mxu0 %v823
    %1173 = vmatprep.subr.bf16.mxu0 0
    %1174 = vmatpush1.bf16.msra.mxu0 %v824
    %1175 = vmatprep.subr.bf16.mxu0 0
    %1176 = vmatpush1.bf16.msra.mxu0 %v825
    %1177 = vmatprep.subr.bf16.mxu0 0
    %1178 = vmatpush1.bf16.msra.mxu0 %v826
    %1179 = vmatprep.subr.bf16.mxu0 0
    %1180 = vmatpush1.bf16.msra.mxu0 0
    %1181 = vmatprep.subr.bf16.mxu0 0
    %1182 = vmatpush1.bf16.msra.mxu0 0
    %1183 = vmatprep.subr.bf16.mxu0 0
    %1184 = vmatpush1.bf16.msra.mxu0 0
    %1185 = vmatprep.subr.bf16.mxu0 0
    %1186 = vmatpush1.bf16.msra.mxu0 0
    %1187 = vmatprep.subr.bf16.mxu0 0
    %1188 = vmatpush1.bf16.msra.mxu0 0
    %1189 = vmatprep.subr.bf16.mxu0 0
    %1190 = vmatpush1.bf16.msra.mxu0 0
    %1191 = vmatprep.subr.bf16.mxu0 0
    %1192 = vmatpush1.bf16.msra.mxu0 0
    %1193 = vmatprep.subr.bf16.mxu0 0
    %1194 = vmatpush1.bf16.msra.mxu0 0
    %1195 = vmatprep.subr.bf16.mxu0 0
    %1196 = vmatpush1.bf16.msra.mxu0 0
    %1197 = vmatprep.subr.bf16.mxu0 0
    %1198 = vmatpush1.bf16.msra.mxu0 0
    %1199 = vmatprep.subr.bf16.mxu0 0
    %1200 = vmatpush1.bf16.msra.mxu0 0
    %1201 = vmatprep.subr.bf16.mxu0 0
    %1202 = vmatpush1.bf16.msra.mxu0 0
    %1203 = vmatprep.mubr.bf16.mxu0 0
    %1204 = vmatmul.mubr.bf16.gmra.mrb[0].mxu0 %v929
    %v1205 = vpop.f32.mrb[0].mxu0
    %v1206 = vadd.f32 %v1166, %v1205
    %v1207 = vpop.f32.mrb[0].mxu0
    %v1208 = vpop.f32.mrb[0].mxu0
    %v1209 = vpop.f32.mrb[0].mxu0
    %1210 = vdwg.mxu0
    %vm1211 = vcmask 74752
    %1212 = vst.msk [vmem:[#allocation2] sm:$0x3] %vm1211, %v1206
    // Predicated region
    $region14: #{classifier_forward.7} parent=1 // pred_check
      _
    $region15: #{classifier_forward.7} parent=1 // pred_check_branch
      %1214 = sbr.rel (0) target = $region17
    $region16: #{classifier_forward.7} parent=1 // pred_region
      %s1216 = ssub.s32 32, 32
      %1217 = vsyncadd [#allocation3], %s1216
      %s1219 = sshll.u32 [#allocation2], 4
      %s1220 = int_to_ptr.vmem [resolvable:$true] %s1219
      %1222 = dma.vmem_to_hbm [thread:$0]  %s1220, 32, %s3, [#allocation3]
    $region17: #{classifier_forward.7} parent=1 // pred_fallthru
      _
    // Predicated region
    $region18: #{classifier_forward.7} parent=1 // pred_check
      _
    $region19: #{classifier_forward.7} parent=1 // pred_check_branch
      %1224 = sbr.rel (0) target = $region21
    $region20: #{classifier_forward.7} parent=1 // pred_region
      %1225 = dma.done [#allocation3], 32
    $region21: #{classifier_forward.7} parent=1 // pred_fallthru
      _
    %1226 = vsyncpa [#allocation3], 1

</llo_original>
